<compile_context>
chip_gen: v5e
topology: v5e:2x2
jax: 0.10.0
libtpu: 0.0.40
codegen_flags: <defaults>
</compile_context>

<pallas_src>
import functools

import jax
import jax.numpy as jnp
from jax.experimental import pallas as pl
from jax.experimental.pallas import tpu as pltpu

KS = 3  # conv kernel size (3x3, stride=1, padding=1)


# ----------------------------------------------------------------------------
# Fused Pallas kernel: 5 directional ConvGRU flows + pmd weighting + blend
# ----------------------------------------------------------------------------
def fused_predictor_kernel(patches_ref, wq_ref, bhn_ref, wp_ref, bp_ref,
                           img_ref, out_ref, flows_ref, g_scr, flows_scr,
                           *, Ch, Cout, HW, N):
    """Single grid step; channels on sublanes, (batch*pixels) on lanes.

    patches_ref: (9*Cin+1, N*HW) bf16  im2col patches of x + ones row (bias)
    wq_ref:      (15*Ch, 9*Cin+1) bf16 stacked [z0..z4|r0..r4|n0..n4] weights
                                        with folded bias column
    bhn_ref:     (5*Ch, 1) f32          n-gate hidden biases (for r*bh term)
    wp_ref:      (Cout+1, 5*Ch) bf16    pmd 1x1 weighting
    bp_ref:      (Cout+1, 1) f32        pmd bias
    img_ref:     (Cout, N*HW) f32       image to blend with
    out_ref:     (Cout, N*HW) f32       blended output
    flows_ref:   (5*Ch, HW) f32         flow_pmd of the LAST batch element
    g_scr:       (15*Ch, N*HW) f32      VMEM scratch for the gate pre-activations
    flows_scr:   (5*Ch, N*HW) bf16      VMEM scratch, flows for the pmd matmul
    """
    # One im2col matmul for all 5 flows x 3 gates; input/hidden biases folded
    # into the extra weight column (hidden state is statically zero -> the Wh
    # conv is skipped, gh == bh).
    g_scr[...] = jnp.dot(wq_ref[...], patches_ref[...],
                         preferred_element_type=jnp.float32)   # (15*Ch, N*HW)

    last = (N - 1) * HW
    # Chunked gate math (per flow, Ch rows at a time): keeps the live vreg set
    # small instead of holding the full (15*Ch, N*HW) f32 slab + gates.
    for f in range(5):  # statically unrolled
        z = jax.nn.sigmoid(g_scr[(0 * 5 + f) * Ch:(0 * 5 + f + 1) * Ch, :])
        r = jax.nn.sigmoid(g_scr[(1 * 5 + f) * Ch:(1 * 5 + f + 1) * Ch, :])
        bh_n = bhn_ref[f * Ch:(f + 1) * Ch, :]                 # (Ch, 1)
        n = jnp.tanh(g_scr[(2 * 5 + f) * Ch:(2 * 5 + f + 1) * Ch, :] + r * bh_n)
        flow = (1.0 - z) * n                                   # h_prev == 0
        flows_scr[f * Ch:(f + 1) * Ch, :] = flow.astype(jnp.bfloat16)
        # Only the last batch element's flows are consumed (flow_pmd[-1:]).
        flows_ref[f * Ch:(f + 1) * Ch, :] = flow[:, last:last + HW]

    # pmd_weighting (1x1 conv) as ONE bf16 matmul + sigmoid-mask blend, fused.
    agg = jnp.dot(wp_ref[...], flows_scr[...],
                  preferred_element_type=jnp.float32) + bp_ref[...]  # (Cout+1, N*HW)
    pred = agg[:Cout]
    mask = jax.nn.sigmoid(agg[Cout:Cout + 1])
    out_ref[...] = img_ref[...] * mask + pred * (1.0 - mask)


# ----------------------------------------------------------------------------
# Weight assembly (hoisted; call ONCE, not per frame)
# ----------------------------------------------------------------------------
def _flatten_wx(w):
    """(3,3,Cin,3*Ch) HWIO -> (3*Ch, 9*Cin); tap order (kh, kw, cin)."""
    kh, kw, cin, co = w.shape
    return w.reshape(kh * kw * cin, co).T


def precompute_operands(params):
    """Assemble the fused-kernel operands (flips, stacking, bias fold, bf16).

    Row layout of the big weight: [z0..z4 | r0..r4 | n0..n4], Ch rows per flow,
    flow order matching torch.cat([flow0..flow4], dim=1).  The -1 direction of
    a shared cell (flip(cell(flip(x)))) is folded in by reversing the taps
    along that spatial axis (valid for symmetric zero padding, stride 1).
    """
    Ch = params["hidden_channels"]
    wx = [params["cell0"][0],                      # flow0: temporal
          params["cell1"][0],                      # flow1: 'h' +1
          jnp.flip(params["cell1"][0], axis=0),    # flow2: 'h' -1 (taps reversed)
          params["cell2"][0],                      # flow3: 'w' +1
          jnp.flip(params["cell2"][0], axis=1)]    # flow4: 'w' -1 (taps reversed)
    bx = [params["cell0"][2], params["cell1"][2], params["cell1"][2],
          params["cell2"][2], params["cell2"][2]]
    bh = [params["cell0"][3], params["cell1"][3], params["cell1"][3],
          params["cell2"][3], params["cell2"][3]]

    wt = [_flatten_wx(w) for w in wx]              # 5 x (3*Ch, 9*Cin)

    def gate_rows(g):
        return jnp.concatenate([w[g * Ch:(g + 1) * Ch] for w in wt], axis=0)

    big_w = jnp.concatenate([gate_rows(0), gate_rows(1), gate_rows(2)],
                            axis=0)                # (15*Ch, 9*Cin)

    def gate_bias(bs, g):
        return jnp.concatenate([b[0, g * Ch:(g + 1) * Ch] for b in bs], axis=0)

    # Folded bias column: (bx+bh) for z/r (hidden == 0), bx only for n.
    bias_col = jnp.concatenate([
        gate_bias(bx, 0) + gate_bias(bh, 0),
        gate_bias(bx, 1) + gate_bias(bh, 1),
        gate_bias(bx, 2),
    ], axis=0).reshape(-1, 1)                      # (15*Ch, 1)

    big_w_aug = jnp.concatenate([big_w, bias_col], axis=1).astype(jnp.bfloat16)
    bh_n = gate_bias(bh, 2).reshape(5 * Ch, 1)     # f32, n-gate hidden bias

    return {
        "big_w_aug": big_w_aug,                          # (15*Ch, 9*Cin+1) bf16
        "bh_n": bh_n,                                    # (5*Ch, 1) f32
        "wp": params["pmd_w"].astype(jnp.bfloat16),      # (Cout+1, 5*Ch) bf16
        "bp": params["pmd_b"],                           # (Cout+1, 1) f32
    }


# ----------------------------------------------------------------------------
# VideoPredictor forward (directional=True, activation=None, hidden=None)
# ----------------------------------------------------------------------------
@jax.jit
def video_predictor_forward(ops, x_nchw, out_nchw):
    x = x_nchw.astype(jnp.float32)                 # (N, Cin, H, W)
    img = out_nchw.astype(jnp.float32)             # (N, Cout, H, W)
    N, Cin, H, W = x.shape
    Cout = img.shape[1]
    HW = H * W
    Ch = ops["bh_n"].shape[0] // 5

    # im2col in the wrapper (tiny here) + ones row for the folded bias.
    xp = jnp.pad(x, ((0, 0), (0, 0), (1, 1), (1, 1)))
    patches = jnp.concatenate(
        [xp[:, :, kh:kh + H, kw:kw + W].reshape(N, Cin, HW)
         for kh in range(KS) for kw in range(KS)], axis=1)      # (N, 9*Cin, HW)
    patches = jnp.transpose(patches, (1, 0, 2)).reshape(9 * Cin, N * HW)
    ones = jnp.ones((1, N * HW), jnp.float32)
    patches_aug = jnp.concatenate([patches, ones],
                                  axis=0).astype(jnp.bfloat16)  # (9*Cin+1, N*HW)

    img_flat = jnp.transpose(img.reshape(N, Cout, HW),
                             (1, 0, 2)).reshape(Cout, N * HW)   # (Cout, N*HW)

    kernel = functools.partial(fused_predictor_kernel,
                               Ch=Ch, Cout=Cout, HW=HW, N=N)
    blended, flows_last = pl.pallas_call(
        kernel,
        out_shape=(jax.ShapeDtypeStruct((Cout, N * HW), jnp.float32),
                   jax.ShapeDtypeStruct((5 * Ch, HW), jnp.float32)),
        grid_spec=pltpu.PrefetchScalarGridSpec(
            num_scalar_prefetch=0,
            grid=(1,),
            in_specs=[
                pl.BlockSpec((9 * Cin + 1, N * HW), lambda i: (0, 0)),
                pl.BlockSpec((15 * Ch, 9 * Cin + 1), lambda i: (0, 0)),
                pl.BlockSpec((5 * Ch, 1), lambda i: (0, 0)),
                pl.BlockSpec((Cout + 1, 5 * Ch), lambda i: (0, 0)),
                pl.BlockSpec((Cout + 1, 1), lambda i: (0, 0)),
                pl.BlockSpec((Cout, N * HW), lambda i: (0, 0)),
            ],
            out_specs=[
                pl.BlockSpec((Cout, N * HW), lambda i: (0, 0)),
                pl.BlockSpec((5 * Ch, HW), lambda i: (0, 0)),
            ],
            scratch_shapes=[
                pltpu.VMEM((15 * Ch, N * HW), jnp.float32),   # gate pre-acts
                pltpu.VMEM((5 * Ch, N * HW), jnp.bfloat16),   # flows (pmd operand)
            ]),
        compiler_params=pltpu.CompilerParams(
            dimension_semantics=("arbitrary",)),
    )(patches_aug, ops["big_w_aug"], ops["bh_n"], ops["wp"], ops["bp"],
      img_flat)

    blended_nchw = jnp.transpose(blended.reshape(Cout, N, H, W), (1, 0, 2, 3))

    # new hidden: flow_pmd[-1:] split into 5 chunks along channels (as torch).
    flow_last = jax.lax.stop_gradient(flows_last).reshape(1, 5 * Ch, H, W)
    new_hidden = list(jnp.split(flow_last, 5, axis=1))          # 5 x (1,Ch,H,W)
    return blended_nchw, new_hidden


# ----------------------------------------------------------------------------
# Pure-JAX reference (for correctness check)
# ----------------------------------------------------------------------------
def reference_forward(params, x, img):
    Ch = params["hidden_channels"]
    Cout = img.shape[1]

    def conv3(xx, w, b):
        y = jax.lax.conv_general_dilated(
            xx, w, window_strides=(1, 1), padding=((1, 1), (1, 1)),
            dimension_numbers=("NCHW", "HWIO", "NCHW"))
        return y + b.reshape(1, -1, 1, 1)

    def cell(cp, xx, flip_axis=None):
        wx, _, bx, bh = cp
        if flip_axis is not None:
            xx = jnp.flip(xx, axis=flip_axis)
        g = conv3(xx, wx, bx)
        gh = jnp.broadcast_to(bh.reshape(1, -1, 1, 1), g.shape)  # hidden == 0
        z = jax.nn.sigmoid(g[:, :Ch] + gh[:, :Ch])
        r = jax.nn.sigmoid(g[:, Ch:2 * Ch] + gh[:, Ch:2 * Ch])
        n = jnp.tanh(g[:, 2 * Ch:] + r * gh[:, 2 * Ch:])
        h = (1.0 - z) * n
        if flip_axis is not None:
            h = jnp.flip(h, axis=flip_axis)
        return h

    flows = [cell(params["cell0"], x),
             cell(params["cell1"], x),
             cell(params["cell1"], x, flip_axis=2),
             cell(params["cell2"], x),
             cell(params["cell2"], x, flip_axis=3)]
    flow_pmd = jnp.concatenate(flows, axis=1)
    agg = (jnp.einsum("oc,nchw->nohw", params["pmd_w"], flow_pmd)
           + params["pmd_b"].reshape(1, -1, 1, 1))
    pred = agg[:, :Cout]
    mask = jax.nn.sigmoid(agg[:, Cout:Cout + 1])
    out = img * mask + pred * (1.0 - mask)
    hidden = list(jnp.split(flow_pmd[-1:], 5, axis=1))
    return out, hidden


# ----------------------------------------------------------------------------
# Deterministic parameter init (normal(0, 0.02) weights, zero biases)
# ----------------------------------------------------------------------------
def init_params(key, in_channels, hidden_channels, output_channels):
    def normal(k, shape):
        return 0.02 * jax.random.normal(k, shape, jnp.float32)

    keys = jax.random.split(key, 7)

    def make_cell(kx, kh):
        return (
            normal(kx, (KS, KS, in_channels, 3 * hidden_channels)),      # W_x
            normal(kh, (KS, KS, hidden_channels, 3 * hidden_channels)),  # W_h (unused: hidden is None)
            jnp.zeros((1, 3 * hidden_channels), jnp.float32),            # b_x
            jnp.zeros((1, 3 * hidden_channels), jnp.float32),            # b_h
        )

    return {
        "hidden_channels": hidden_channels,
        "cell0": make_cell(keys[0], keys[1]),
        "cell1": make_cell(keys[2], keys[3]),
        "cell2": make_cell(keys[4], keys[5]),
        "pmd_w": normal(keys[6], (output_channels + 1, 5 * hidden_channels)),
        "pmd_b": jnp.zeros((output_channels + 1, 1), jnp.float32),
    }


if __name__ == "__main__":
    N, Cin, H, W = 2, 4, 16, 16
    hidden_channels = 32
    output_channels = 4

    key = jax.random.PRNGKey(0)
    k_params, k_x, k_out = jax.random.split(key, 3)

    params = init_params(k_params, Cin, hidden_channels, output_channels)
    ops = precompute_operands(params)          # hoisted: assemble once

    x = jax.random.normal(k_x, (N, Cin, H, W), jnp.float32)          # NCHW input
    out_img = jax.random.normal(k_out, (N, output_channels, H, W),
                                jnp.float32)                          # NCHW image

    pred, new_hidden = video_predictor_forward(ops, x, out_img)
    pred = jax.block_until_ready(pred)
    jax.block_until_ready(new_hidden)

    assert pred.shape == (N, output_channels, H, W)
    assert all(h.shape == (1, hidden_channels, H, W) for h in new_hidden)
    assert bool(jnp.all(jnp.isfinite(pred)))

    # Correctness check against a pure-JAX/XLA reference (bf16 MXU tolerance).
    ref_pred, ref_hidden = reference_forward(params, x, out_img)
    assert bool(jnp.allclose(pred, ref_pred, atol=3e-2, rtol=0.0)), (
        "pred mismatch, max abs err = %f"
        % float(jnp.max(jnp.abs(pred - ref_pred))))
    for h, hr in zip(new_hidden, ref_hidden):
        assert bool(jnp.allclose(h, hr, atol=3e-2, rtol=0.0)), "hidden mismatch"

    print("KERNEL_OK")
</pallas_src>

<mosaic_0001>
module attributes {stable_mosaic.version = 11 : i64} {
  func.func @fused_predictor_kernel(%arg0: i32, %arg1: memref<37x512xbf16, #tpu.memory_space<vmem>>, %arg2: memref<480x37xbf16, #tpu.memory_space<vmem>>, %arg3: memref<160x1xf32, #tpu.memory_space<vmem>>, %arg4: memref<5x160xbf16, #tpu.memory_space<vmem>>, %arg5: memref<5x1xf32, #tpu.memory_space<vmem>>, %arg6: memref<4x512xf32, #tpu.memory_space<vmem>>, %arg7: memref<4x512xf32, #tpu.memory_space<vmem>>, %arg8: memref<160x256xf32, #tpu.memory_space<vmem>>, %arg9: memref<480x512xf32, #tpu.memory_space<vmem>>, %arg10: memref<160x512xbf16, #tpu.memory_space<vmem>>) attributes {dimension_semantics = [#tpu.dimension_semantics<arbitrary>], iteration_bounds = array<i64: 1>, scalar_prefetch = 0 : i64, scratch_operands = 2 : i64, tpu.core_type = #tpu.core_type<tc>, window_params = [{pipeline_mode = #tpu.pipeline_mode<synchronous>, transform_indices = @transform_0, window_bounds = array<i64: 37, 512>}, {pipeline_mode = #tpu.pipeline_mode<synchronous>, transform_indices = @transform_1, window_bounds = array<i64: 480, 37>}, {pipeline_mode = #tpu.pipeline_mode<synchronous>, transform_indices = @transform_2, window_bounds = array<i64: 160, 1>}, {pipeline_mode = #tpu.pipeline_mode<synchronous>, transform_indices = @transform_3, window_bounds = array<i64: 5, 160>}, {pipeline_mode = #tpu.pipeline_mode<synchronous>, transform_indices = @transform_4, window_bounds = array<i64: 5, 1>}, {pipeline_mode = #tpu.pipeline_mode<synchronous>, transform_indices = @transform_5, window_bounds = array<i64: 4, 512>}, {pipeline_mode = #tpu.pipeline_mode<synchronous>, transform_indices = @transform_6, window_bounds = array<i64: 4, 512>}, {pipeline_mode = #tpu.pipeline_mode<synchronous>, transform_indices = @transform_7, window_bounds = array<i64: 160, 256>}]} {
    %c0 = arith.constant 0 : index
    %c0_0 = arith.constant 0 : index
    %0 = vector.load %arg2[%c0, %c0_0] : memref<480x37xbf16, #tpu.memory_space<vmem>>, vector<480x37xbf16>
    %c0_1 = arith.constant 0 : index
    %c0_2 = arith.constant 0 : index
    %1 = vector.load %arg1[%c0_1, %c0_2] : memref<37x512xbf16, #tpu.memory_space<vmem>>, vector<37x512xbf16>
    %cst = arith.constant dense<0.000000e+00> : vector<480x512xf32>
    %2 = tpu.matmul %0, %1, %cst {dimension_numbers = #tpu.dot_dimension_numbers<[1], [0], [0], [1], [0, 0, 1, 1], [], []>} : vector<480x37xbf16>, vector<37x512xbf16>, vector<480x512xf32> -> vector<480x512xf32>
    %c0_3 = arith.constant 0 : index
    %c0_4 = arith.constant 0 : index
    %3 = vector.load %arg9[%c0_3, %c0_4] : memref<480x512xf32, #tpu.memory_space<vmem>>, vector<480x512xf32>
    tpu.vector_store %arg9[%c0_3, %c0_4], %2 {strides = array<i32>} : memref<480x512xf32, #tpu.memory_space<vmem>>, vector<480x512xf32>,
    %c0_5 = arith.constant 0 : index
    %c0_6 = arith.constant 0 : index
    %4 = vector.load %arg9[%c0_5, %c0_6] : memref<480x512xf32, #tpu.memory_space<vmem>>, vector<32x512xf32>
    %5 = arith.negf %4 : vector<32x512xf32>
    %6 = math.exp %5 : vector<32x512xf32>
    %cst_7 = arith.constant 1.000000e+00 : f32
    %7 = vector.broadcast %cst_7 : f32 to vector<32x512xf32>
    %8 = arith.addf %7, %6 : vector<32x512xf32>
    %9 = arith.divf %7, %8 : vector<32x512xf32>
    %c160 = arith.constant 160 : index
    %c0_8 = arith.constant 0 : index
    %10 = vector.load %arg9[%c160, %c0_8] : memref<480x512xf32, #tpu.memory_space<vmem>>, vector<32x512xf32>
    %11 = arith.negf %10 : vector<32x512xf32>
    %12 = math.exp %11 : vector<32x512xf32>
    %cst_9 = arith.constant 1.000000e+00 : f32
    %13 = vector.broadcast %cst_9 : f32 to vector<32x512xf32>
    %14 = arith.addf %13, %12 : vector<32x512xf32>
    %15 = arith.divf %13, %14 : vector<32x512xf32>
    %c0_10 = arith.constant 0 : index
    %c0_11 = arith.constant 0 : index
    %16 = vector.load %arg3[%c0_10, %c0_11] : memref<160x1xf32, #tpu.memory_space<vmem>>, vector<32x1xf32>
    %c320 = arith.constant 320 : index
    %c0_12 = arith.constant 0 : index
    %17 = vector.load %arg9[%c320, %c0_12] : memref<480x512xf32, #tpu.memory_space<vmem>>, vector<32x512xf32>
    %18 = vector.broadcast %16 : vector<32x1xf32> to vector<32x512xf32>
    %19 = arith.mulf %15, %18 : vector<32x512xf32>
    %20 = arith.addf %17, %19 : vector<32x512xf32>
    %21 = math.tanh %20 : vector<32x512xf32>
    %cst_13 = arith.constant 1.000000e+00 : f32
    %22 = vector.broadcast %cst_13 : f32 to vector<32x512xf32>
    %23 = arith.subf %22, %9 : vector<32x512xf32>
    %24 = arith.mulf %23, %21 : vector<32x512xf32>
    %25 = arith.truncf %24 : vector<32x512xf32> to vector<32x512xbf16>
    %c0_14 = arith.constant 0 : index
    %c0_15 = arith.constant 0 : index
    %26 = vector.load %arg10[%c0_14, %c0_15] : memref<160x512xbf16, #tpu.memory_space<vmem>>, vector<32x512xbf16>
    tpu.vector_store %arg10[%c0_14, %c0_15], %25 {strides = array<i32>} : memref<160x512xbf16, #tpu.memory_space<vmem>>, vector<32x512xbf16>,
    %27 = vector.extract_strided_slice %24 {offsets = [0, 256], sizes = [32, 256], strides = [1, 1]} : vector<32x512xf32> to vector<32x256xf32>
    %c0_16 = arith.constant 0 : index
    %c0_17 = arith.constant 0 : index
    %28 = vector.load %arg8[%c0_16, %c0_17] : memref<160x256xf32, #tpu.memory_space<vmem>>, vector<32x256xf32>
    tpu.vector_store %arg8[%c0_16, %c0_17], %27 {strides = array<i32>} : memref<160x256xf32, #tpu.memory_space<vmem>>, vector<32x256xf32>,
    %c32 = arith.constant 32 : index
    %c0_18 = arith.constant 0 : index
    %29 = vector.load %arg9[%c32, %c0_18] : memref<480x512xf32, #tpu.memory_space<vmem>>, vector<32x512xf32>
    %30 = arith.negf %29 : vector<32x512xf32>
    %31 = math.exp %30 : vector<32x512xf32>
    %cst_19 = arith.constant 1.000000e+00 : f32
    %32 = vector.broadcast %cst_19 : f32 to vector<32x512xf32>
    %33 = arith.addf %32, %31 : vector<32x512xf32>
    %34 = arith.divf %32, %33 : vector<32x512xf32>
    %c192 = arith.constant 192 : index
    %c0_20 = arith.constant 0 : index
    %35 = vector.load %arg9[%c192, %c0_20] : memref<480x512xf32, #tpu.memory_space<vmem>>, vector<32x512xf32>
    %36 = arith.negf %35 : vector<32x512xf32>
    %37 = math.exp %36 : vector<32x512xf32>
    %cst_21 = arith.constant 1.000000e+00 : f32
    %38 = vector.broadcast %cst_21 : f32 to vector<32x512xf32>
    %39 = arith.addf %38, %37 : vector<32x512xf32>
    %40 = arith.divf %38, %39 : vector<32x512xf32>
    %c32_22 = arith.constant 32 : index
    %c0_23 = arith.constant 0 : index
    %41 = vector.load %arg3[%c32_22, %c0_23] : memref<160x1xf32, #tpu.memory_space<vmem>>, vector<32x1xf32>
    %c352 = arith.constant 352 : index
    %c0_24 = arith.constant 0 : index
    %42 = vector.load %arg9[%c352, %c0_24] : memref<480x512xf32, #tpu.memory_space<vmem>>, vector<32x512xf32>
    %43 = vector.broadcast %41 : vector<32x1xf32> to vector<32x512xf32>
    %44 = arith.mulf %40, %43 : vector<32x512xf32>
    %45 = arith.addf %42, %44 : vector<32x512xf32>
    %46 = math.tanh %45 : vector<32x512xf32>
    %cst_25 = arith.constant 1.000000e+00 : f32
    %47 = vector.broadcast %cst_25 : f32 to vector<32x512xf32>
    %48 = arith.subf %47, %34 : vector<32x512xf32>
    %49 = arith.mulf %48, %46 : vector<32x512xf32>
    %50 = arith.truncf %49 : vector<32x512xf32> to vector<32x512xbf16>
    %c32_26 = arith.constant 32 : index
    %c0_27 = arith.constant 0 : index
    %51 = vector.load %arg10[%c32_26, %c0_27] : memref<160x512xbf16, #tpu.memory_space<vmem>>, vector<32x512xbf16>
    tpu.vector_store %arg10[%c32_26, %c0_27], %50 {strides = array<i32>} : memref<160x512xbf16, #tpu.memory_space<vmem>>, vector<32x512xbf16>,
    %52 = vector.extract_strided_slice %49 {offsets = [0, 256], sizes = [32, 256], strides = [1, 1]} : vector<32x512xf32> to vector<32x256xf32>
    %c32_28 = arith.constant 32 : index
    %c0_29 = arith.constant 0 : index
    %53 = vector.load %arg8[%c32_28, %c0_29] : memref<160x256xf32, #tpu.memory_space<vmem>>, vector<32x256xf32>
    tpu.vector_store %arg8[%c32_28, %c0_29], %52 {strides = array<i32>} : memref<160x256xf32, #tpu.memory_space<vmem>>, vector<32x256xf32>,
    %c64 = arith.constant 64 : index
    %c0_30 = arith.constant 0 : index
    %54 = vector.load %arg9[%c64, %c0_30] : memref<480x512xf32, #tpu.memory_space<vmem>>, vector<32x512xf32>
    %55 = arith.negf %54 : vector<32x512xf32>
    %56 = math.exp %55 : vector<32x512xf32>
    %cst_31 = arith.constant 1.000000e+00 : f32
    %57 = vector.broadcast %cst_31 : f32 to vector<32x512xf32>
    %58 = arith.addf %57, %56 : vector<32x512xf32>
    %59 = arith.divf %57, %58 : vector<32x512xf32>
    %c224 = arith.constant 224 : index
    %c0_32 = arith.constant 0 : index
    %60 = vector.load %arg9[%c224, %c0_32] : memref<480x512xf32, #tpu.memory_space<vmem>>, vector<32x512xf32>
    %61 = arith.negf %60 : vector<32x512xf32>
    %62 = math.exp %61 : vector<32x512xf32>
    %cst_33 = arith.constant 1.000000e+00 : f32
    %63 = vector.broadcast %cst_33 : f32 to vector<32x512xf32>
    %64 = arith.addf %63, %62 : vector<32x512xf32>
    %65 = arith.divf %63, %64 : vector<32x512xf32>
    %c64_34 = arith.constant 64 : index
    %c0_35 = arith.constant 0 : index
    %66 = vector.load %arg3[%c64_34, %c0_35] : memref<160x1xf32, #tpu.memory_space<vmem>>, vector<32x1xf32>
    %c384 = arith.constant 384 : index
    %c0_36 = arith.constant 0 : index
    %67 = vector.load %arg9[%c384, %c0_36] : memref<480x512xf32, #tpu.memory_space<vmem>>, vector<32x512xf32>
    %68 = vector.broadcast %66 : vector<32x1xf32> to vector<32x512xf32>
    %69 = arith.mulf %65, %68 : vector<32x512xf32>
    %70 = arith.addf %67, %69 : vector<32x512xf32>
    %71 = math.tanh %70 : vector<32x512xf32>
    %cst_37 = arith.constant 1.000000e+00 : f32
    %72 = vector.broadcast %cst_37 : f32 to vector<32x512xf32>
    %73 = arith.subf %72, %59 : vector<32x512xf32>
    %74 = arith.mulf %73, %71 : vector<32x512xf32>
    %75 = arith.truncf %74 : vector<32x512xf32> to vector<32x512xbf16>
    %c64_38 = arith.constant 64 : index
    %c0_39 = arith.constant 0 : index
    %76 = vector.load %arg10[%c64_38, %c0_39] : memref<160x512xbf16, #tpu.memory_space<vmem>>, vector<32x512xbf16>
    tpu.vector_store %arg10[%c64_38, %c0_39], %75 {strides = array<i32>} : memref<160x512xbf16, #tpu.memory_space<vmem>>, vector<32x512xbf16>,
    %77 = vector.extract_strided_slice %74 {offsets = [0, 256], sizes = [32, 256], strides = [1, 1]} : vector<32x512xf32> to vector<32x256xf32>
    %c64_40 = arith.constant 64 : index
    %c0_41 = arith.constant 0 : index
    %78 = vector.load %arg8[%c64_40, %c0_41] : memref<160x256xf32, #tpu.memory_space<vmem>>, vector<32x256xf32>
    tpu.vector_store %arg8[%c64_40, %c0_41], %77 {strides = array<i32>} : memref<160x256xf32, #tpu.memory_space<vmem>>, vector<32x256xf32>,
    %c96 = arith.constant 96 : index
    %c0_42 = arith.constant 0 : index
    %79 = vector.load %arg9[%c96, %c0_42] : memref<480x512xf32, #tpu.memory_space<vmem>>, vector<32x512xf32>
    %80 = arith.negf %79 : vector<32x512xf32>
    %81 = math.exp %80 : vector<32x512xf32>
    %cst_43 = arith.constant 1.000000e+00 : f32
    %82 = vector.broadcast %cst_43 : f32 to vector<32x512xf32>
    %83 = arith.addf %82, %81 : vector<32x512xf32>
    %84 = arith.divf %82, %83 : vector<32x512xf32>
    %c256 = arith.constant 256 : index
    %c0_44 = arith.constant 0 : index
    %85 = vector.load %arg9[%c256, %c0_44] : memref<480x512xf32, #tpu.memory_space<vmem>>, vector<32x512xf32>
    %86 = arith.negf %85 : vector<32x512xf32>
    %87 = math.exp %86 : vector<32x512xf32>
    %cst_45 = arith.constant 1.000000e+00 : f32
    %88 = vector.broadcast %cst_45 : f32 to vector<32x512xf32>
    %89 = arith.addf %88, %87 : vector<32x512xf32>
    %90 = arith.divf %88, %89 : vector<32x512xf32>
    %c96_46 = arith.constant 96 : index
    %c0_47 = arith.constant 0 : index
    %91 = vector.load %arg3[%c96_46, %c0_47] : memref<160x1xf32, #tpu.memory_space<vmem>>, vector<32x1xf32>
    %c416 = arith.constant 416 : index
    %c0_48 = arith.constant 0 : index
    %92 = vector.load %arg9[%c416, %c0_48] : memref<480x512xf32, #tpu.memory_space<vmem>>, vector<32x512xf32>
    %93 = vector.broadcast %91 : vector<32x1xf32> to vector<32x512xf32>
    %94 = arith.mulf %90, %93 : vector<32x512xf32>
    %95 = arith.addf %92, %94 : vector<32x512xf32>
    %96 = math.tanh %95 : vector<32x512xf32>
    %cst_49 = arith.constant 1.000000e+00 : f32
    %97 = vector.broadcast %cst_49 : f32 to vector<32x512xf32>
    %98 = arith.subf %97, %84 : vector<32x512xf32>
    %99 = arith.mulf %98, %96 : vector<32x512xf32>
    %100 = arith.truncf %99 : vector<32x512xf32> to vector<32x512xbf16>
    %c96_50 = arith.constant 96 : index
    %c0_51 = arith.constant 0 : index
    %101 = vector.load %arg10[%c96_50, %c0_51] : memref<160x512xbf16, #tpu.memory_space<vmem>>, vector<32x512xbf16>
    tpu.vector_store %arg10[%c96_50, %c0_51], %100 {strides = array<i32>} : memref<160x512xbf16, #tpu.memory_space<vmem>>, vector<32x512xbf16>,
    %102 = vector.extract_strided_slice %99 {offsets = [0, 256], sizes = [32, 256], strides = [1, 1]} : vector<32x512xf32> to vector<32x256xf32>
    %c96_52 = arith.constant 96 : index
    %c0_53 = arith.constant 0 : index
    %103 = vector.load %arg8[%c96_52, %c0_53] : memref<160x256xf32, #tpu.memory_space<vmem>>, vector<32x256xf32>
    tpu.vector_store %arg8[%c96_52, %c0_53], %102 {strides = array<i32>} : memref<160x256xf32, #tpu.memory_space<vmem>>, vector<32x256xf32>,
    %c128 = arith.constant 128 : index
    %c0_54 = arith.constant 0 : index
    %104 = vector.load %arg9[%c128, %c0_54] : memref<480x512xf32, #tpu.memory_space<vmem>>, vector<32x512xf32>
    %105 = arith.negf %104 : vector<32x512xf32>
    %106 = math.exp %105 : vector<32x512xf32>
    %cst_55 = arith.constant 1.000000e+00 : f32
    %107 = vector.broadcast %cst_55 : f32 to vector<32x512xf32>
    %108 = arith.addf %107, %106 : vector<32x512xf32>
    %109 = arith.divf %107, %108 : vector<32x512xf32>
    %c288 = arith.constant 288 : index
    %c0_56 = arith.constant 0 : index
    %110 = vector.load %arg9[%c288, %c0_56] : memref<480x512xf32, #tpu.memory_space<vmem>>, vector<32x512xf32>
    %111 = arith.negf %110 : vector<32x512xf32>
    %112 = math.exp %111 : vector<32x512xf32>
    %cst_57 = arith.constant 1.000000e+00 : f32
    %113 = vector.broadcast %cst_57 : f32 to vector<32x512xf32>
    %114 = arith.addf %113, %112 : vector<32x512xf32>
    %115 = arith.divf %113, %114 : vector<32x512xf32>
    %c128_58 = arith.constant 128 : index
    %c0_59 = arith.constant 0 : index
    %116 = vector.load %arg3[%c128_58, %c0_59] : memref<160x1xf32, #tpu.memory_space<vmem>>, vector<32x1xf32>
    %c448 = arith.constant 448 : index
    %c0_60 = arith.constant 0 : index
    %117 = vector.load %arg9[%c448, %c0_60] : memref<480x512xf32, #tpu.memory_space<vmem>>, vector<32x512xf32>
    %118 = vector.broadcast %116 : vector<32x1xf32> to vector<32x512xf32>
    %119 = arith.mulf %115, %118 : vector<32x512xf32>
    %120 = arith.addf %117, %119 : vector<32x512xf32>
    %121 = math.tanh %120 : vector<32x512xf32>
    %cst_61 = arith.constant 1.000000e+00 : f32
    %122 = vector.broadcast %cst_61 : f32 to vector<32x512xf32>
    %123 = arith.subf %122, %109 : vector<32x512xf32>
    %124 = arith.mulf %123, %121 : vector<32x512xf32>
    %125 = arith.truncf %124 : vector<32x512xf32> to vector<32x512xbf16>
    %c128_62 = arith.constant 128 : index
    %c0_63 = arith.constant 0 : index
    %126 = vector.load %arg10[%c128_62, %c0_63] : memref<160x512xbf16, #tpu.memory_space<vmem>>, vector<32x512xbf16>
    tpu.vector_store %arg10[%c128_62, %c0_63], %125 {strides = array<i32>} : memref<160x512xbf16, #tpu.memory_space<vmem>>, vector<32x512xbf16>,
    %127 = vector.extract_strided_slice %124 {offsets = [0, 256], sizes = [32, 256], strides = [1, 1]} : vector<32x512xf32> to vector<32x256xf32>
    %c128_64 = arith.constant 128 : index
    %c0_65 = arith.constant 0 : index
    %128 = vector.load %arg8[%c128_64, %c0_65] : memref<160x256xf32, #tpu.memory_space<vmem>>, vector<32x256xf32>
    tpu.vector_store %arg8[%c128_64, %c0_65], %127 {strides = array<i32>} : memref<160x256xf32, #tpu.memory_space<vmem>>, vector<32x256xf32>,
    %c0_66 = arith.constant 0 : index
    %c0_67 = arith.constant 0 : index
    %129 = vector.load %arg4[%c0_66, %c0_67] : memref<5x160xbf16, #tpu.memory_space<vmem>>, vector<5x160xbf16>
    %c0_68 = arith.constant 0 : index
    %c0_69 = arith.constant 0 : index
    %130 = vector.load %arg10[%c0_68, %c0_69] : memref<160x512xbf16, #tpu.memory_space<vmem>>, vector<160x512xbf16>
    %cst_70 = arith.constant dense<0.000000e+00> : vector<5x512xf32>
    %131 = tpu.matmul %129, %130, %cst_70 {dimension_numbers = #tpu.dot_dimension_numbers<[1], [0], [0], [1], [0, 0, 1, 1], [], []>} : vector<5x160xbf16>, vector<160x512xbf16>, vector<5x512xf32> -> vector<5x512xf32>
    %c0_71 = arith.constant 0 : index
    %c0_72 = arith.constant 0 : index
    %132 = vector.load %arg5[%c0_71, %c0_72] : memref<5x1xf32, #tpu.memory_space<vmem>>, vector<5x1xf32>
    %133 = vector.broadcast %132 : vector<5x1xf32> to vector<5x512xf32>
    %134 = arith.addf %131, %133 : vector<5x512xf32>
    %135 = vector.extract_strided_slice %134 {offsets = [0, 0], sizes = [4, 512], strides = [1, 1]} : vector<5x512xf32> to vector<4x512xf32>
    %136 = vector.extract_strided_slice %134 {offsets = [4, 0], sizes = [1, 512], strides = [1, 1]} : vector<5x512xf32> to vector<1x512xf32>
    %137 = arith.negf %136 : vector<1x512xf32>
    %138 = math.exp %137 : vector<1x512xf32>
    %cst_73 = arith.constant 1.000000e+00 : f32
    %139 = vector.broadcast %cst_73 : f32 to vector<1x512xf32>
    %140 = arith.addf %139, %138 : vector<1x512xf32>
    %141 = arith.divf %139, %140 : vector<1x512xf32>
    %c0_74 = arith.constant 0 : index
    %c0_75 = arith.constant 0 : index
    %142 = vector.load %arg6[%c0_74, %c0_75] : memref<4x512xf32, #tpu.memory_space<vmem>>, vector<4x512xf32>
    %143 = vector.broadcast %141 : vector<1x512xf32> to vector<4x512xf32>
    %144 = arith.mulf %142, %143 : vector<4x512xf32>
    %cst_76 = arith.constant 1.000000e+00 : f32
    %145 = vector.broadcast %cst_76 : f32 to vector<1x512xf32>
    %146 = arith.subf %145, %141 : vector<1x512xf32>
    %147 = vector.broadcast %146 : vector<1x512xf32> to vector<4x512xf32>
    %148 = arith.mulf %135, %147 : vector<4x512xf32>
    %149 = arith.addf %144, %148 : vector<4x512xf32>
    %c0_77 = arith.constant 0 : index
    %c0_78 = arith.constant 0 : index
    %150 = vector.load %arg7[%c0_77, %c0_78] : memref<4x512xf32, #tpu.memory_space<vmem>>, vector<4x512xf32>
    tpu.vector_store %arg7[%c0_77, %c0_78], %149 {strides = array<i32>} : memref<4x512xf32, #tpu.memory_space<vmem>>, vector<4x512xf32>,
    return
  }
  func.func @transform_0(%arg0: i32) -> (i32, i32) {
    %c0_i32 = arith.constant 0 : i32
    %c0_i32_0 = arith.constant 0 : i32
    %c0_i32_1 = arith.constant 0 : i32
    return %c0_i32, %c0_i32_0 : i32, i32
  }
  func.func @transform_1(%arg0: i32) -> (i32, i32) {
    %c0_i32 = arith.constant 0 : i32
    %c0_i32_0 = arith.constant 0 : i32
    %c0_i32_1 = arith.constant 0 : i32
    return %c0_i32, %c0_i32_0 : i32, i32
  }
  func.func @transform_2(%arg0: i32) -> (i32, i32) {
    %c0_i32 = arith.constant 0 : i32
    %c0_i32_0 = arith.constant 0 : i32
    %c0_i32_1 = arith.constant 0 : i32
    return %c0_i32, %c0_i32_0 : i32, i32
  }
  func.func @transform_3(%arg0: i32) -> (i32, i32) {
    %c0_i32 = arith.constant 0 : i32
    %c0_i32_0 = arith.constant 0 : i32
    %c0_i32_1 = arith.constant 0 : i32
    return %c0_i32, %c0_i32_0 : i32, i32
  }
  func.func @transform_4(%arg0: i32) -> (i32, i32) {
    %c0_i32 = arith.constant 0 : i32
    %c0_i32_0 = arith.constant 0 : i32
    %c0_i32_1 = arith.constant 0 : i32
    return %c0_i32, %c0_i32_0 : i32, i32
  }
  func.func @transform_5(%arg0: i32) -> (i32, i32) {
    %c0_i32 = arith.constant 0 : i32
    %c0_i32_0 = arith.constant 0 : i32
    %c0_i32_1 = arith.constant 0 : i32
    return %c0_i32, %c0_i32_0 : i32, i32
  }
  func.func @transform_6(%arg0: i32) -> (i32, i32) {
    %c0_i32 = arith.constant 0 : i32
    %c0_i32_0 = arith.constant 0 : i32
    %c0_i32_1 = arith.constant 0 : i32
    return %c0_i32, %c0_i32_0 : i32, i32
  }
  func.func @transform_7(%arg0: i32) -> (i32, i32) {
    %c0_i32 = arith.constant 0 : i32
    %c0_i32_0 = arith.constant 0 : i32
    %c0_i32_1 = arith.constant 0 : i32
    return %c0_i32, %c0_i32_0 : i32, i32
  }
}

</mosaic_0001>

<llo_original>
// kernel: video_predictor_forward.1
$region0: #{video_predictor_forward.1}
  #allocation0 [shape = 'u32[]', space=smem, size = 0x4, offset = 0x4, fixed_abs, tag = 'smem constant byte address 0x4 - core index']
  #allocation1 [shape = 'u32[72,128]{1,0:T(1,128)}', space=vmem, size = 0x9000, scoped, tag = 'internal scratch']
  #allocation2 [shape = 'f32[480,512]{1,0:T(8,128)}', space=vmem, size = 0xf0000, scoped, tag = 'scratch operand']
  #allocation3 [shape = 'bf16[160,512]{1,0:T(8,128)(2,1)}', space=vmem, size = 0x28000, scoped, tag = 'scratch operand']
  %s0 = inlined_call_operand.vmem [shape: bf16[37,512], index: 0, kind: input, shape index: {}]
  %s1 = inlined_call_operand.vmem [shape: bf16[480,37], index: 1, kind: input, shape index: {}]
  %s2 = inlined_call_operand.vmem [shape: f32[160,1], index: 2, kind: input, shape index: {}]
  %s3 = inlined_call_operand.vmem [shape: bf16[5,160], index: 3, kind: input, shape index: {}]
  %s4 = inlined_call_operand.vmem [shape: f32[5,1], index: 4, kind: input, shape index: {}]
  %s5 = inlined_call_operand.vmem [shape: f32[4,512], index: 5, kind: input, shape index: {}]
  %s6 = inlined_call_operand.vmem [shape: f32[4,512], index: 6, kind: output, shape index: {0}]
  %s7 = inlined_call_operand.vmem [shape: f32[160,256], index: 7, kind: output, shape index: {1}]
  %8 = xla_tuple %s6, %s7
  %s9 = sld [smem:[#allocation0]]
  $region42: #{video_predictor_forward.1} parent=0
    _
  %s11 = ssub.s32 1, %s9
  %s12 = scalar_select 0, %s11, %s9
  // Predicated region
  $region2: #{video_predictor_forward.1} parent=0 // pred_check
    _
  $region3: #{video_predictor_forward.1} parent=0 // pred_check_branch
    %14 = sbr.rel (0) target = $region5
  $region4: #{video_predictor_forward.1} parent=0 // pred_region
    _
  $region5: #{video_predictor_forward.1} parent=0 // pred_fallthru
    _
  // Predicated region
  $region6: #{video_predictor_forward.1} parent=0 // pred_check
    _
  $region7: #{video_predictor_forward.1} parent=0 // pred_check_branch
    %16 = sbr.rel (0) target = $region9
  $region8: #{video_predictor_forward.1} parent=0 // pred_region
    _
  $region9: #{video_predictor_forward.1} parent=0 // pred_fallthru
    _
  // Predicated region
  $region10: #{video_predictor_forward.1} parent=0 // pred_check
    _
  $region11: #{video_predictor_forward.1} parent=0 // pred_check_branch
    %18 = sbr.rel (0) target = $region13
  $region12: #{video_predictor_forward.1} parent=0 // pred_region
    _
  $region13: #{video_predictor_forward.1} parent=0 // pred_fallthru
    _
  // Predicated region
  $region14: #{video_predictor_forward.1} parent=0 // pred_check
    _
  $region15: #{video_predictor_forward.1} parent=0 // pred_check_branch
    %20 = sbr.rel (0) target = $region17
  $region16: #{video_predictor_forward.1} parent=0 // pred_region
    _
  $region17: #{video_predictor_forward.1} parent=0 // pred_fallthru
    _
  // Predicated region
  $region18: #{video_predictor_forward.1} parent=0 // pred_check
    _
  $region19: #{video_predictor_forward.1} parent=0 // pred_check_branch
    %22 = sbr.rel (0) target = $region21
  $region20: #{video_predictor_forward.1} parent=0 // pred_region
    _
  $region21: #{video_predictor_forward.1} parent=0 // pred_fallthru
    _
  // Predicated region
  $region22: #{video_predictor_forward.1} parent=0 // pred_check
    _
  $region23: #{video_predictor_forward.1} parent=0 // pred_check_branch
    %24 = sbr.rel (0) target = $region25
  $region24: #{video_predictor_forward.1} parent=0 // pred_region
    _
  $region25: #{video_predictor_forward.1} parent=0 // pred_fallthru
    _
  %v26 = vld [vmem:[%s1] sm:$0xf]
  %v27 = vld [vmem:[%s1 + $0x4] sm:$0xf]
  %v28 = vld [vmem:[%s1 + $0x8] sm:$0xf]
  %v29 = vld [vmem:[%s1 + $0xc] sm:$0xf]
  %v30 = vld [vmem:[%s1 + $0x10] sm:$0xf]
  %v31 = vld [vmem:[%s1 + $0x14] sm:$0xf]
  %v32 = vld [vmem:[%s1 + $0x18] sm:$0xf]
  %v33 = vld [vmem:[%s1 + $0x1c] sm:$0xf]
  %v34 = vld [vmem:[%s1 + $0x20] sm:$0xf]
  %v35 = vld [vmem:[%s1 + $0x24] sm:$0xf]
  %v36 = vld [vmem:[%s1 + $0x28] sm:$0xf]
  %v37 = vld [vmem:[%s1 + $0x2c] sm:$0xf]
  %v38 = vld [vmem:[%s1 + $0x30] sm:$0xf]
  %v39 = vld [vmem:[%s1 + $0x34] sm:$0xf]
  %v40 = vld [vmem:[%s1 + $0x38] sm:$0xf]
  %v41 = vld [vmem:[%s1 + $0x3c] sm:$0xf]
  %v42 = vld [vmem:[%s1 + $0x40] sm:$0xf]
  %v43 = vld [vmem:[%s1 + $0x44] sm:$0xf]
  %v44 = vld [vmem:[%s1 + $0x48] sm:$0xf]
  %v45 = vld [vmem:[%s1 + $0x4c] sm:$0xf]
  %v46 = vld [vmem:[%s1 + $0x50] sm:$0xf]
  %v47 = vld [vmem:[%s1 + $0x54] sm:$0xf]
  %v48 = vld [vmem:[%s1 + $0x58] sm:$0xf]
  %v49 = vld [vmem:[%s1 + $0x5c] sm:$0xf]
  %v50 = vld [vmem:[%s1 + $0x60] sm:$0xf]
  %v51 = vld [vmem:[%s1 + $0x64] sm:$0xf]
  %v52 = vld [vmem:[%s1 + $0x68] sm:$0xf]
  %v53 = vld [vmem:[%s1 + $0x6c] sm:$0xf]
  %v54 = vld [vmem:[%s1 + $0x70] sm:$0xf]
  %v55 = vld [vmem:[%s1 + $0x74] sm:$0xf]
  %v56 = vld [vmem:[%s1 + $0x78] sm:$0xf]
  %v57 = vld [vmem:[%s1 + $0x7c] sm:$0xf]
  %v58 = vld [vmem:[%s1 + $0x80] sm:$0xf]
  %v59 = vld [vmem:[%s1 + $0x84] sm:$0xf]
  %v60 = vld [vmem:[%s1 + $0x88] sm:$0xf]
  %v61 = vld [vmem:[%s1 + $0x8c] sm:$0xf]
  %v62 = vld [vmem:[%s1 + $0x90] sm:$0xf]
  %v63 = vld [vmem:[%s1 + $0x94] sm:$0xf]
  %v64 = vld [vmem:[%s1 + $0x98] sm:$0xf]
  %v65 = vld [vmem:[%s1 + $0x9c] sm:$0xf]
  %v66 = vld [vmem:[%s1 + $0xa0] sm:$0xf]
  %v67 = vld [vmem:[%s1 + $0xa4] sm:$0xf]
  %v68 = vld [vmem:[%s1 + $0xa8] sm:$0xf]
  %v69 = vld [vmem:[%s1 + $0xac] sm:$0xf]
  %v70 = vld [vmem:[%s1 + $0xb0] sm:$0xf]
  %v71 = vld [vmem:[%s1 + $0xb4] sm:$0xf]
  %v72 = vld [vmem:[%s1 + $0xb8] sm:$0xf]
  %v73 = vld [vmem:[%s1 + $0xbc] sm:$0xf]
  %v74 = vld [vmem:[%s1 + $0xc0] sm:$0xf]
  %v75 = vld [vmem:[%s1 + $0xc4] sm:$0xf]
  %v76 = vld [vmem:[%s1 + $0xc8] sm:$0xf]
  %v77 = vld [vmem:[%s1 + $0xcc] sm:$0xf]
  %v78 = vld [vmem:[%s1 + $0xd0] sm:$0xf]
  %v79 = vld [vmem:[%s1 + $0xd4] sm:$0xf]
  %v80 = vld [vmem:[%s1 + $0xd8] sm:$0xf]
  %v81 = vld [vmem:[%s1 + $0xdc] sm:$0xf]
  %v82 = vld [vmem:[%s1 + $0xe0] sm:$0xf]
  %v83 = vld [vmem:[%s1 + $0xe4] sm:$0xf]
  %v84 = vld [vmem:[%s1 + $0xe8] sm:$0xf]
  %v85 = vld [vmem:[%s1 + $0xec] sm:$0xf]
  %v86 = vld [vmem:[%s0] sm:$0xff]
  %v87 = vld [vmem:[%s0 + $0x8] sm:$0xff]
  %v88 = vld [vmem:[%s0 + $0x10] sm:$0xff]
  %v89 = vld [vmem:[%s0 + $0x18] sm:$0xff]
  %v90 = vld [vmem:[%s0 + $0x20] sm:$0xff]
  %v91 = vld [vmem:[%s0 + $0x28] sm:$0xff]
  %v92 = vld [vmem:[%s0 + $0x30] sm:$0xff]
  %v93 = vld [vmem:[%s0 + $0x38] sm:$0xff]
  %v94 = vld [vmem:[%s0 + $0x40] sm:$0x77]
  %v95 = vld [vmem:[%s0 + $0x48] sm:$0x77]
  %v156 = vunpack.c.l.b16 %v26
  %v157 = vunpack.c.l.b16 %v27
  %v158 = vunpack.c.l.b16 %v28
  %v159 = vunpack.c.l.b16 %v29
  %v160 = vunpack.c.l.b16 %v30
  %v161 = vunpack.c.l.b16 %v31
  %v162 = vunpack.c.l.b16 %v32
  %v163 = vunpack.c.l.b16 %v33
  %v164 = vunpack.c.l.b16 %v34
  %v165 = vunpack.c.l.b16 %v35
  %v166 = vunpack.c.l.b16 %v36
  %v167 = vunpack.c.l.b16 %v37
  %v168 = vunpack.c.l.b16 %v38
  %v169 = vunpack.c.l.b16 %v39
  %v170 = vunpack.c.l.b16 %v40
  %v171 = vunpack.c.l.b16 %v41
  %v172 = vunpack.c.l.b16 %v42
  %v173 = vunpack.c.l.b16 %v43
  %v174 = vunpack.c.l.b16 %v44
  %v175 = vunpack.c.l.b16 %v45
  %v176 = vunpack.c.l.b16 %v46
  %v177 = vunpack.c.l.b16 %v47
  %v178 = vunpack.c.l.b16 %v48
  %v179 = vunpack.c.l.b16 %v49
  %v180 = vunpack.c.l.b16 %v50
  %v181 = vunpack.c.l.b16 %v51
  %v182 = vunpack.c.l.b16 %v52
  %v183 = vunpack.c.l.b16 %v53
  %v184 = vunpack.c.l.b16 %v54
  %v185 = vunpack.c.l.b16 %v55
  %v186 = vunpack.c.l.b16 %v56
  %v187 = vunpack.c.l.b16 %v57
  %v188 = vunpack.c.l.b16 %v58
  %v189 = vunpack.c.l.b16 %v59
  %v190 = vunpack.c.l.b16 %v60
  %v191 = vunpack.c.l.b16 %v61
  %v192 = vunpack.c.l.b16 %v62
  %v193 = vunpack.c.l.b16 %v63
  %v194 = vunpack.c.l.b16 %v64
  %v195 = vunpack.c.l.b16 %v65
  %v196 = vunpack.c.l.b16 %v66
  %v197 = vunpack.c.l.b16 %v67
  %v198 = vunpack.c.l.b16 %v68
  %v199 = vunpack.c.l.b16 %v69
  %v200 = vunpack.c.l.b16 %v70
  %v201 = vunpack.c.l.b16 %v71
  %v202 = vunpack.c.l.b16 %v72
  %v203 = vunpack.c.l.b16 %v73
  %v204 = vunpack.c.l.b16 %v74
  %v205 = vunpack.c.l.b16 %v75
  %v206 = vunpack.c.l.b16 %v76
  %v207 = vunpack.c.l.b16 %v77
  %v208 = vunpack.c.l.b16 %v78
  %v209 = vunpack.c.l.b16 %v79
  %v210 = vunpack.c.l.b16 %v80
  %v211 = vunpack.c.l.b16 %v81
  %v212 = vunpack.c.l.b16 %v82
  %v213 = vunpack.c.l.b16 %v83
  %v214 = vunpack.c.l.b16 %v84
  %v215 = vunpack.c.l.b16 %v85
  %v216 = vpack.c.b16 %v157, %v156
  %v217 = vpack.c.b16 %v159, %v158
  %v218 = vpack.c.b16 %v161, %v160
  %v219 = vpack.c.b16 %v163, %v162
  %v220 = vpack.c.b16 %v165, %v164
  %v221 = vpack.c.b16 %v167, %v166
  %v222 = vpack.c.b16 %v169, %v168
  %v223 = vpack.c.b16 %v171, %v170
  %v224 = vpack.c.b16 %v173, %v172
  %v225 = vpack.c.b16 %v175, %v174
  %v226 = vpack.c.b16 %v177, %v176
  %v227 = vpack.c.b16 %v179, %v178
  %v228 = vpack.c.b16 %v181, %v180
  %v229 = vpack.c.b16 %v183, %v182
  %v230 = vpack.c.b16 %v185, %v184
  %v231 = vpack.c.b16 %v187, %v186
  %v232 = vpack.c.b16 %v189, %v188
  %v233 = vpack.c.b16 %v191, %v190
  %v234 = vpack.c.b16 %v193, %v192
  %v235 = vpack.c.b16 %v195, %v194
  %v236 = vpack.c.b16 %v197, %v196
  %v237 = vpack.c.b16 %v199, %v198
  %v238 = vpack.c.b16 %v201, %v200
  %v239 = vpack.c.b16 %v203, %v202
  %v240 = vpack.c.b16 %v205, %v204
  %v241 = vpack.c.b16 %v207, %v206
  %v242 = vpack.c.b16 %v209, %v208
  %v243 = vpack.c.b16 %v211, %v210
  %v244 = vpack.c.b16 %v213, %v212
  %v245 = vpack.c.b16 %v215, %v214
  %v256 = vunpack.c.l.b16 %v86
  %v257 = vunpack.c.h.b16 %v86
  %v258 = vunpack.c.l.b16 %v87
  %v259 = vunpack.c.h.b16 %v87
  %v260 = vunpack.c.l.b16 %v88
  %v261 = vunpack.c.h.b16 %v88
  %v262 = vunpack.c.l.b16 %v89
  %v263 = vunpack.c.h.b16 %v89
  %v264 = vunpack.c.l.b16 %v90
  %v265 = vunpack.c.h.b16 %v90
  %v266 = vunpack.c.l.b16 %v91
  %v267 = vunpack.c.h.b16 %v91
  %v268 = vunpack.c.l.b16 %v92
  %v269 = vunpack.c.h.b16 %v92
  %v270 = vunpack.c.l.b16 %v93
  %v271 = vunpack.c.h.b16 %v93
  %v272 = vunpack.c.l.b16 %v94
  %v273 = vunpack.c.h.b16 %v94
  %v274 = vunpack.c.l.b16 %v95
  %v275 = vunpack.c.h.b16 %v95
  %v276 = vpack.c.b16 %v260, %v256
  %v277 = vpack.c.b16 %v261, %v257
  %v278 = vpack.c.b16 %v262, %v258
  %v279 = vpack.c.b16 %v263, %v259
  %v280 = vpack.c.b16 %v268, %v264
  %v281 = vpack.c.b16 %v269, %v265
  %v282 = vpack.c.b16 %v270, %v266
  %v283 = vpack.c.b16 %v271, %v267
  %v284 = vpack.c.b16 %v272, %v272
  %v285 = vpack.c.b16 %v273, %v273
  %v286 = vpack.c.b16 %v274, %v274
  %v287 = vpack.c.b16 %v275, %v275
  %vm296 = vcmask 302080
  %v298 = vsel %vm296, %v216, 0
  %v301 = vsel %vm296, %v217, 0
  %v304 = vsel %vm296, %v218, 0
  %v307 = vsel %vm296, %v219, 0
  %v310 = vsel %vm296, %v220, 0
  %v313 = vsel %vm296, %v221, 0
  %v316 = vsel %vm296, %v222, 0
  %v319 = vsel %vm296, %v223, 0
  %v322 = vsel %vm296, %v224, 0
  %v325 = vsel %vm296, %v225, 0
  %v328 = vsel %vm296, %v226, 0
  %v331 = vsel %vm296, %v227, 0
  %v334 = vsel %vm296, %v228, 0
  %v337 = vsel %vm296, %v229, 0
  %v340 = vsel %vm296, %v230, 0
  %v343 = vsel %vm296, %v231, 0
  %v346 = vsel %vm296, %v232, 0
  %v349 = vsel %vm296, %v233, 0
  %v352 = vsel %vm296, %v234, 0
  %v355 = vsel %vm296, %v235, 0
  %v358 = vsel %vm296, %v236, 0
  %v361 = vsel %vm296, %v237, 0
  %v364 = vsel %vm296, %v238, 0
  %v367 = vsel %vm296, %v239, 0
  %v370 = vsel %vm296, %v240, 0
  %v373 = vsel %vm296, %v241, 0
  %v376 = vsel %vm296, %v242, 0
  %v379 = vsel %vm296, %v243, 0
  %v382 = vsel %vm296, %v244, 0
  %v385 = vsel %vm296, %v245, 0
  %vm387 = vcmask 1041408
  %vm388 = vcmask 1042432
  %v389 = vsel %vm387, 4294967295, 65535
  %v390 = vsel %vm388, %v389, 0
  %v392 = vand.u32 %v284, %v390
  %v395 = vand.u32 %v285, %v390
  %v398 = vand.u32 %v286, %v390
  %v401 = vand.u32 %v287, %v390
  %403 = vmatpush.bf16.msra.mxu0 0
  %404 = vmatpush.bf16.msra.mxu0 0
  %405 = vmatpush.bf16.msra.mxu0 0
  %406 = vmatpush.bf16.msra.mxu0 0
  %407 = vmatpush.bf16.msra.mxu0 0
  %408 = vmatpush.bf16.msra.mxu0 %v392
  %409 = vmatpush.bf16.msra.mxu0 %v280
  %410 = vmatpush.bf16.msra.mxu0 %v276
  %411 = vmatmul.bf16.gmra.mxu0 %v298
  %v412 = vpop.f32.mrf.mxu0
  %v413 = vadd.f32 0.0, %v412
  %v414 = vpop.f32.mrf.mxu0
  %v415 = vadd.f32 0.0, %v414
  %416 = vmatmul.bf16.gmra.mxu0 %v301
  %v417 = vpop.f32.mrf.mxu0
  %v418 = vadd.f32 0.0, %v417
  %v419 = vpop.f32.mrf.mxu0
  %v420 = vadd.f32 0.0, %v419
  %421 = vmatmul.bf16.gmra.mxu0 %v304
  %v422 = vpop.f32.mrf.mxu0
  %v423 = vadd.f32 0.0, %v422
  %v424 = vpop.f32.mrf.mxu0
  %v425 = vadd.f32 0.0, %v424
  %426 = vmatmul.bf16.gmra.mxu0 %v307
  %v427 = vpop.f32.mrf.mxu0
  %v428 = vadd.f32 0.0, %v427
  %v429 = vpop.f32.mrf.mxu0
  %v430 = vadd.f32 0.0, %v429
  %431 = vmatmul.bf16.gmra.mxu0 %v310
  %v432 = vpop.f32.mrf.mxu0
  %v433 = vadd.f32 0.0, %v432
  %v434 = vpop.f32.mrf.mxu0
  %v435 = vadd.f32 0.0, %v434
  %436 = vmatmul.bf16.gmra.mxu0 %v313
  %v437 = vpop.f32.mrf.mxu0
  %v438 = vadd.f32 0.0, %v437
  %v439 = vpop.f32.mrf.mxu0
  %v440 = vadd.f32 0.0, %v439
  %441 = vmatmul.bf16.gmra.mxu0 %v316
  %v442 = vpop.f32.mrf.mxu0
  %v443 = vadd.f32 0.0, %v442
  %v444 = vpop.f32.mrf.mxu0
  %v445 = vadd.f32 0.0, %v444
  %446 = vmatmul.bf16.gmra.mxu0 %v319
  %v447 = vpop.f32.mrf.mxu0
  %v448 = vadd.f32 0.0, %v447
  %v449 = vpop.f32.mrf.mxu0
  %v450 = vadd.f32 0.0, %v449
  %451 = vmatmul.bf16.gmra.mxu0 %v322
  %v452 = vpop.f32.mrf.mxu0
  %v453 = vadd.f32 0.0, %v452
  %v454 = vpop.f32.mrf.mxu0
  %v455 = vadd.f32 0.0, %v454
  %456 = vmatmul.bf16.gmra.mxu0 %v325
  %v457 = vpop.f32.mrf.mxu0
  %v458 = vadd.f32 0.0, %v457
  %v459 = vpop.f32.mrf.mxu0
  %v460 = vadd.f32 0.0, %v459
  %461 = vmatmul.bf16.gmra.mxu0 %v328
  %v462 = vpop.f32.mrf.mxu0
  %v463 = vadd.f32 0.0, %v462
  %v464 = vpop.f32.mrf.mxu0
  %v465 = vadd.f32 0.0, %v464
  %466 = vmatmul.bf16.gmra.mxu0 %v331
  %v467 = vpop.f32.mrf.mxu0
  %v468 = vadd.f32 0.0, %v467
  %v469 = vpop.f32.mrf.mxu0
  %v470 = vadd.f32 0.0, %v469
  %471 = vmatmul.bf16.gmra.mxu0 %v334
  %v472 = vpop.f32.mrf.mxu0
  %v473 = vadd.f32 0.0, %v472
  %v474 = vpop.f32.mrf.mxu0
  %v475 = vadd.f32 0.0, %v474
  %476 = vmatmul.bf16.gmra.mxu0 %v337
  %v477 = vpop.f32.mrf.mxu0
  %v478 = vadd.f32 0.0, %v477
  %v479 = vpop.f32.mrf.mxu0
  %v480 = vadd.f32 0.0, %v479
  %481 = vmatmul.bf16.gmra.mxu0 %v340
  %v482 = vpop.f32.mrf.mxu0
  %v483 = vadd.f32 0.0, %v482
  %v484 = vpop.f32.mrf.mxu0
  %v485 = vadd.f32 0.0, %v484
  %486 = vmatmul.bf16.gmra.mxu0 %v343
  %v487 = vpop.f32.mrf.mxu0
  %v488 = vadd.f32 0.0, %v487
  %v489 = vpop.f32.mrf.mxu0
  %v490 = vadd.f32 0.0, %v489
  %491 = vmatmul.bf16.gmra.mxu0 %v346
  %v492 = vpop.f32.mrf.mxu0
  %v493 = vadd.f32 0.0, %v492
  %v494 = vpop.f32.mrf.mxu0
  %v495 = vadd.f32 0.0, %v494
  %496 = vmatmul.bf16.gmra.mxu0 %v349
  %v497 = vpop.f32.mrf.mxu0
  %v498 = vadd.f32 0.0, %v497
  %v499 = vpop.f32.mrf.mxu0
  %v500 = vadd.f32 0.0, %v499
  %501 = vmatmul.bf16.gmra.mxu0 %v352
  %v502 = vpop.f32.mrf.mxu0
  %v503 = vadd.f32 0.0, %v502
  %v504 = vpop.f32.mrf.mxu0
  %v505 = vadd.f32 0.0, %v504
  %506 = vmatmul.bf16.gmra.mxu0 %v355
  %v507 = vpop.f32.mrf.mxu0
  %v508 = vadd.f32 0.0, %v507
  %v509 = vpop.f32.mrf.mxu0
  %v510 = vadd.f32 0.0, %v509
  %511 = vmatmul.bf16.gmra.mxu0 %v358
  %v512 = vpop.f32.mrf.mxu0
  %v513 = vadd.f32 0.0, %v512
  %v514 = vpop.f32.mrf.mxu0
  %v515 = vadd.f32 0.0, %v514
  %516 = vmatmul.bf16.gmra.mxu0 %v361
  %v517 = vpop.f32.mrf.mxu0
  %v518 = vadd.f32 0.0, %v517
  %v519 = vpop.f32.mrf.mxu0
  %v520 = vadd.f32 0.0, %v519
  %521 = vmatmul.bf16.gmra.mxu0 %v364
  %v522 = vpop.f32.mrf.mxu0
  %v523 = vadd.f32 0.0, %v522
  %v524 = vpop.f32.mrf.mxu0
  %v525 = vadd.f32 0.0, %v524
  %526 = vmatmul.bf16.gmra.mxu0 %v367
  %v527 = vpop.f32.mrf.mxu0
  %v528 = vadd.f32 0.0, %v527
  %v529 = vpop.f32.mrf.mxu0
  %v530 = vadd.f32 0.0, %v529
  %531 = vmatmul.bf16.gmra.mxu0 %v370
  %v532 = vpop.f32.mrf.mxu0
  %v533 = vadd.f32 0.0, %v532
  %v534 = vpop.f32.mrf.mxu0
  %v535 = vadd.f32 0.0, %v534
  %536 = vmatmul.bf16.gmra.mxu0 %v373
  %v537 = vpop.f32.mrf.mxu0
  %v538 = vadd.f32 0.0, %v537
  %v539 = vpop.f32.mrf.mxu0
  %v540 = vadd.f32 0.0, %v539
  %541 = vmatmul.bf16.gmra.mxu0 %v376
  %v542 = vpop.f32.mrf.mxu0
  %v543 = vadd.f32 0.0, %v542
  %v544 = vpop.f32.mrf.mxu0
  %v545 = vadd.f32 0.0, %v544
  %546 = vmatmul.bf16.gmra.mxu0 %v379
  %v547 = vpop.f32.mrf.mxu0
  %v548 = vadd.f32 0.0, %v547
  %v549 = vpop.f32.mrf.mxu0
  %v550 = vadd.f32 0.0, %v549
  %551 = vmatmul.bf16.gmra.mxu0 %v382
  %v552 = vpop.f32.mrf.mxu0
  %v553 = vadd.f32 0.0, %v552
  %v554 = vpop.f32.mrf.mxu0
  %v555 = vadd.f32 0.0, %v554
  %556 = vmatmul.bf16.gmra.mxu0 %v385
  %v557 = vpop.f32.mrf.mxu0
  %v558 = vadd.f32 0.0, %v557
  %v559 = vpop.f32.mrf.mxu0
  %v560 = vadd.f32 0.0, %v559
  %561 = vdwg.mxu0
  %562 = vmatpush.bf16.msra.mxu0 0
  %563 = vmatpush.bf16.msra.mxu0 0
  %564 = vmatpush.bf16.msra.mxu0 0
  %565 = vmatpush.bf16.msra.mxu0 0
  %566 = vmatpush.bf16.msra.mxu0 0
  %567 = vmatpush.bf16.msra.mxu0 %v395
  %568 = vmatpush.bf16.msra.mxu0 %v281
  %569 = vmatpush.bf16.msra.mxu0 %v277
  %570 = vmatmul.bf16.gmra.mxu0 %v298
  %v571 = vpop.f32.mrf.mxu0
  %v572 = vadd.f32 0.0, %v571
  %v573 = vpop.f32.mrf.mxu0
  %v574 = vadd.f32 0.0, %v573
  %575 = vmatmul.bf16.gmra.mxu0 %v301
  %v576 = vpop.f32.mrf.mxu0
  %v577 = vadd.f32 0.0, %v576
  %v578 = vpop.f32.mrf.mxu0
  %v579 = vadd.f32 0.0, %v578
  %580 = vmatmul.bf16.gmra.mxu0 %v304
  %v581 = vpop.f32.mrf.mxu0
  %v582 = vadd.f32 0.0, %v581
  %v583 = vpop.f32.mrf.mxu0
  %v584 = vadd.f32 0.0, %v583
  %585 = vmatmul.bf16.gmra.mxu0 %v307
  %v586 = vpop.f32.mrf.mxu0
  %v587 = vadd.f32 0.0, %v586
  %v588 = vpop.f32.mrf.mxu0
  %v589 = vadd.f32 0.0, %v588
  %590 = vmatmul.bf16.gmra.mxu0 %v310
  %v591 = vpop.f32.mrf.mxu0
  %v592 = vadd.f32 0.0, %v591
  %v593 = vpop.f32.mrf.mxu0
  %v594 = vadd.f32 0.0, %v593
  %595 = vmatmul.bf16.gmra.mxu0 %v313
  %v596 = vpop.f32.mrf.mxu0
  %v597 = vadd.f32 0.0, %v596
  %v598 = vpop.f32.mrf.mxu0
  %v599 = vadd.f32 0.0, %v598
  %600 = vmatmul.bf16.gmra.mxu0 %v316
  %v601 = vpop.f32.mrf.mxu0
  %v602 = vadd.f32 0.0, %v601
  %v603 = vpop.f32.mrf.mxu0
  %v604 = vadd.f32 0.0, %v603
  %605 = vmatmul.bf16.gmra.mxu0 %v319
  %v606 = vpop.f32.mrf.mxu0
  %v607 = vadd.f32 0.0, %v606
  %v608 = vpop.f32.mrf.mxu0
  %v609 = vadd.f32 0.0, %v608
  %610 = vmatmul.bf16.gmra.mxu0 %v322
  %v611 = vpop.f32.mrf.mxu0
  %v612 = vadd.f32 0.0, %v611
  %v613 = vpop.f32.mrf.mxu0
  %v614 = vadd.f32 0.0, %v613
  %615 = vmatmul.bf16.gmra.mxu0 %v325
  %v616 = vpop.f32.mrf.mxu0
  %v617 = vadd.f32 0.0, %v616
  %v618 = vpop.f32.mrf.mxu0
  %v619 = vadd.f32 0.0, %v618
  %620 = vmatmul.bf16.gmra.mxu0 %v328
  %v621 = vpop.f32.mrf.mxu0
  %v622 = vadd.f32 0.0, %v621
  %v623 = vpop.f32.mrf.mxu0
  %v624 = vadd.f32 0.0, %v623
  %625 = vmatmul.bf16.gmra.mxu0 %v331
  %v626 = vpop.f32.mrf.mxu0
  %v627 = vadd.f32 0.0, %v626
  %v628 = vpop.f32.mrf.mxu0
  %v629 = vadd.f32 0.0, %v628
  %630 = vmatmul.bf16.gmra.mxu0 %v334
  %v631 = vpop.f32.mrf.mxu0
  %v632 = vadd.f32 0.0, %v631
  %v633 = vpop.f32.mrf.mxu0
  %v634 = vadd.f32 0.0, %v633
  %635 = vmatmul.bf16.gmra.mxu0 %v337
  %v636 = vpop.f32.mrf.mxu0
  %v637 = vadd.f32 0.0, %v636
  %v638 = vpop.f32.mrf.mxu0
  %v639 = vadd.f32 0.0, %v638
  %640 = vmatmul.bf16.gmra.mxu0 %v340
  %v641 = vpop.f32.mrf.mxu0
  %v642 = vadd.f32 0.0, %v641
  %v643 = vpop.f32.mrf.mxu0
  %v644 = vadd.f32 0.0, %v643
  %645 = vmatmul.bf16.gmra.mxu0 %v343
  %v646 = vpop.f32.mrf.mxu0
  %v647 = vadd.f32 0.0, %v646
  %v648 = vpop.f32.mrf.mxu0
  %v649 = vadd.f32 0.0, %v648
  %650 = vmatmul.bf16.gmra.mxu0 %v346
  %v651 = vpop.f32.mrf.mxu0
  %v652 = vadd.f32 0.0, %v651
  %v653 = vpop.f32.mrf.mxu0
  %v654 = vadd.f32 0.0, %v653
  %655 = vmatmul.bf16.gmra.mxu0 %v349
  %v656 = vpop.f32.mrf.mxu0
  %v657 = vadd.f32 0.0, %v656
  %v658 = vpop.f32.mrf.mxu0
  %v659 = vadd.f32 0.0, %v658
  %660 = vmatmul.bf16.gmra.mxu0 %v352
  %v661 = vpop.f32.mrf.mxu0
  %v662 = vadd.f32 0.0, %v661
  %v663 = vpop.f32.mrf.mxu0
  %v664 = vadd.f32 0.0, %v663
  %665 = vmatmul.bf16.gmra.mxu0 %v355
  %v666 = vpop.f32.mrf.mxu0
  %v667 = vadd.f32 0.0, %v666
  %v668 = vpop.f32.mrf.mxu0
  %v669 = vadd.f32 0.0, %v668
  %670 = vmatmul.bf16.gmra.mxu0 %v358
  %v671 = vpop.f32.mrf.mxu0
  %v672 = vadd.f32 0.0, %v671
  %v673 = vpop.f32.mrf.mxu0
  %v674 = vadd.f32 0.0, %v673
  %675 = vmatmul.bf16.gmra.mxu0 %v361
  %v676 = vpop.f32.mrf.mxu0
  %v677 = vadd.f32 0.0, %v676
  %v678 = vpop.f32.mrf.mxu0
  %v679 = vadd.f32 0.0, %v678
  %680 = vmatmul.bf16.gmra.mxu0 %v364
  %v681 = vpop.f32.mrf.mxu0
  %v682 = vadd.f32 0.0, %v681
  %v683 = vpop.f32.mrf.mxu0
  %v684 = vadd.f32 0.0, %v683
  %685 = vmatmul.bf16.gmra.mxu0 %v367
  %v686 = vpop.f32.mrf.mxu0
  %v687 = vadd.f32 0.0, %v686
  %v688 = vpop.f32.mrf.mxu0
  %v689 = vadd.f32 0.0, %v688
  %690 = vmatmul.bf16.gmra.mxu0 %v370
  %v691 = vpop.f32.mrf.mxu0
  %v692 = vadd.f32 0.0, %v691
  %v693 = vpop.f32.mrf.mxu0
  %v694 = vadd.f32 0.0, %v693
  %695 = vmatmul.bf16.gmra.mxu0 %v373
  %v696 = vpop.f32.mrf.mxu0
  %v697 = vadd.f32 0.0, %v696
  %v698 = vpop.f32.mrf.mxu0
  %v699 = vadd.f32 0.0, %v698
  %700 = vmatmul.bf16.gmra.mxu0 %v376
  %v701 = vpop.f32.mrf.mxu0
  %v702 = vadd.f32 0.0, %v701
  %v703 = vpop.f32.mrf.mxu0
  %v704 = vadd.f32 0.0, %v703
  %705 = vmatmul.bf16.gmra.mxu0 %v379
  %v706 = vpop.f32.mrf.mxu0
  %v707 = vadd.f32 0.0, %v706
  %v708 = vpop.f32.mrf.mxu0
  %v709 = vadd.f32 0.0, %v708
  %710 = vmatmul.bf16.gmra.mxu0 %v382
  %v711 = vpop.f32.mrf.mxu0
  %v712 = vadd.f32 0.0, %v711
  %v713 = vpop.f32.mrf.mxu0
  %v714 = vadd.f32 0.0, %v713
  %715 = vmatmul.bf16.gmra.mxu0 %v385
  %v716 = vpop.f32.mrf.mxu0
  %v717 = vadd.f32 0.0, %v716
  %v718 = vpop.f32.mrf.mxu0
  %v719 = vadd.f32 0.0, %v718
  %720 = vdwg.mxu0
  %721 = vmatpush.bf16.msra.mxu0 0
  %722 = vmatpush.bf16.msra.mxu0 0
  %723 = vmatpush.bf16.msra.mxu0 0
  %724 = vmatpush.bf16.msra.mxu0 0
  %725 = vmatpush.bf16.msra.mxu0 0
  %726 = vmatpush.bf16.msra.mxu0 %v398
  %727 = vmatpush.bf16.msra.mxu0 %v282
  %728 = vmatpush.bf16.msra.mxu0 %v278
  %729 = vmatmul.bf16.gmra.mxu0 %v298
  %v730 = vpop.f32.mrf.mxu0
  %v731 = vadd.f32 0.0, %v730
  %v732 = vpop.f32.mrf.mxu0
  %v733 = vadd.f32 0.0, %v732
  %734 = vmatmul.bf16.gmra.mxu0 %v301
  %v735 = vpop.f32.mrf.mxu0
  %v736 = vadd.f32 0.0, %v735
  %v737 = vpop.f32.mrf.mxu0
  %v738 = vadd.f32 0.0, %v737
  %739 = vmatmul.bf16.gmra.mxu0 %v304
  %v740 = vpop.f32.mrf.mxu0
  %v741 = vadd.f32 0.0, %v740
  %v742 = vpop.f32.mrf.mxu0
  %v743 = vadd.f32 0.0, %v742
  %744 = vmatmul.bf16.gmra.mxu0 %v307
  %v745 = vpop.f32.mrf.mxu0
  %v746 = vadd.f32 0.0, %v745
  %v747 = vpop.f32.mrf.mxu0
  %v748 = vadd.f32 0.0, %v747
  %749 = vmatmul.bf16.gmra.mxu0 %v310
  %v750 = vpop.f32.mrf.mxu0
  %v751 = vadd.f32 0.0, %v750
  %v752 = vpop.f32.mrf.mxu0
  %v753 = vadd.f32 0.0, %v752
  %754 = vmatmul.bf16.gmra.mxu0 %v313
  %v755 = vpop.f32.mrf.mxu0
  %v756 = vadd.f32 0.0, %v755
  %v757 = vpop.f32.mrf.mxu0
  %v758 = vadd.f32 0.0, %v757
  %759 = vmatmul.bf16.gmra.mxu0 %v316
  %v760 = vpop.f32.mrf.mxu0
  %v761 = vadd.f32 0.0, %v760
  %v762 = vpop.f32.mrf.mxu0
  %v763 = vadd.f32 0.0, %v762
  %764 = vmatmul.bf16.gmra.mxu0 %v319
  %v765 = vpop.f32.mrf.mxu0
  %v766 = vadd.f32 0.0, %v765
  %v767 = vpop.f32.mrf.mxu0
  %v768 = vadd.f32 0.0, %v767
  %769 = vmatmul.bf16.gmra.mxu0 %v322
  %v770 = vpop.f32.mrf.mxu0
  %v771 = vadd.f32 0.0, %v770
  %v772 = vpop.f32.mrf.mxu0
  %v773 = vadd.f32 0.0, %v772
  %774 = vmatmul.bf16.gmra.mxu0 %v325
  %v775 = vpop.f32.mrf.mxu0
  %v776 = vadd.f32 0.0, %v775
  %v777 = vpop.f32.mrf.mxu0
  %v778 = vadd.f32 0.0, %v777
  %779 = vmatmul.bf16.gmra.mxu0 %v328
  %v780 = vpop.f32.mrf.mxu0
  %v781 = vadd.f32 0.0, %v780
  %v782 = vpop.f32.mrf.mxu0
  %v783 = vadd.f32 0.0, %v782
  %784 = vmatmul.bf16.gmra.mxu0 %v331
  %v785 = vpop.f32.mrf.mxu0
  %v786 = vadd.f32 0.0, %v785
  %v787 = vpop.f32.mrf.mxu0
  %v788 = vadd.f32 0.0, %v787
  %789 = vmatmul.bf16.gmra.mxu0 %v334
  %v790 = vpop.f32.mrf.mxu0
  %v791 = vadd.f32 0.0, %v790
  %v792 = vpop.f32.mrf.mxu0
  %v793 = vadd.f32 0.0, %v792
  %794 = vmatmul.bf16.gmra.mxu0 %v337
  %v795 = vpop.f32.mrf.mxu0
  %v796 = vadd.f32 0.0, %v795
  %v797 = vpop.f32.mrf.mxu0
  %v798 = vadd.f32 0.0, %v797
  %799 = vmatmul.bf16.gmra.mxu0 %v340
  %v800 = vpop.f32.mrf.mxu0
  %v801 = vadd.f32 0.0, %v800
  %v802 = vpop.f32.mrf.mxu0
  %v803 = vadd.f32 0.0, %v802
  %804 = vmatmul.bf16.gmra.mxu0 %v343
  %v805 = vpop.f32.mrf.mxu0
  %v806 = vadd.f32 0.0, %v805
  %v807 = vpop.f32.mrf.mxu0
  %v808 = vadd.f32 0.0, %v807
  %809 = vmatmul.bf16.gmra.mxu0 %v346
  %v810 = vpop.f32.mrf.mxu0
  %v811 = vadd.f32 0.0, %v810
  %v812 = vpop.f32.mrf.mxu0
  %v813 = vadd.f32 0.0, %v812
  %814 = vmatmul.bf16.gmra.mxu0 %v349
  %v815 = vpop.f32.mrf.mxu0
  %v816 = vadd.f32 0.0, %v815
  %v817 = vpop.f32.mrf.mxu0
  %v818 = vadd.f32 0.0, %v817
  %819 = vmatmul.bf16.gmra.mxu0 %v352
  %v820 = vpop.f32.mrf.mxu0
  %v821 = vadd.f32 0.0, %v820
  %v822 = vpop.f32.mrf.mxu0
  %v823 = vadd.f32 0.0, %v822
  %824 = vmatmul.bf16.gmra.mxu0 %v355
  %v825 = vpop.f32.mrf.mxu0
  %v826 = vadd.f32 0.0, %v825
  %v827 = vpop.f32.mrf.mxu0
  %v828 = vadd.f32 0.0, %v827
  %829 = vmatmul.bf16.gmra.mxu0 %v358
  %v830 = vpop.f32.mrf.mxu0
  %v831 = vadd.f32 0.0, %v830
  %v832 = vpop.f32.mrf.mxu0
  %v833 = vadd.f32 0.0, %v832
  %834 = vmatmul.bf16.gmra.mxu0 %v361
  %v835 = vpop.f32.mrf.mxu0
  %v836 = vadd.f32 0.0, %v835
  %v837 = vpop.f32.mrf.mxu0
  %v838 = vadd.f32 0.0, %v837
  %839 = vmatmul.bf16.gmra.mxu0 %v364
  %v840 = vpop.f32.mrf.mxu0
  %v841 = vadd.f32 0.0, %v840
  %v842 = vpop.f32.mrf.mxu0
  %v843 = vadd.f32 0.0, %v842
  %844 = vmatmul.bf16.gmra.mxu0 %v367
  %v845 = vpop.f32.mrf.mxu0
  %v846 = vadd.f32 0.0, %v845
  %v847 = vpop.f32.mrf.mxu0
  %v848 = vadd.f32 0.0, %v847
  %849 = vmatmul.bf16.gmra.mxu0 %v370
  %v850 = vpop.f32.mrf.mxu0
  %v851 = vadd.f32 0.0, %v850
  %v852 = vpop.f32.mrf.mxu0
  %v853 = vadd.f32 0.0, %v852
  %854 = vmatmul.bf16.gmra.mxu0 %v373
  %v855 = vpop.f32.mrf.mxu0
  %v856 = vadd.f32 0.0, %v855
  %v857 = vpop.f32.mrf.mxu0
  %v858 = vadd.f32 0.0, %v857
  %859 = vmatmul.bf16.gmra.mxu0 %v376
  %v860 = vpop.f32.mrf.mxu0
  %v861 = vadd.f32 0.0, %v860
  %v862 = vpop.f32.mrf.mxu0
  %v863 = vadd.f32 0.0, %v862
  %864 = vmatmul.bf16.gmra.mxu0 %v379
  %v865 = vpop.f32.mrf.mxu0
  %v866 = vadd.f32 0.0, %v865
  %v867 = vpop.f32.mrf.mxu0
  %v868 = vadd.f32 0.0, %v867
  %869 = vmatmul.bf16.gmra.mxu0 %v382
  %v870 = vpop.f32.mrf.mxu0
  %v871 = vadd.f32 0.0, %v870
  %v872 = vpop.f32.mrf.mxu0
  %v873 = vadd.f32 0.0, %v872
  %874 = vmatmul.bf16.gmra.mxu0 %v385
  %v875 = vpop.f32.mrf.mxu0
  %v876 = vadd.f32 0.0, %v875
  %v877 = vpop.f32.mrf.mxu0
  %v878 = vadd.f32 0.0, %v877
  %879 = vdwg.mxu0
  %880 = vmatpush.bf16.msra.mxu0 0
  %881 = vmatpush.bf16.msra.mxu0 0
  %882 = vmatpush.bf16.msra.mxu0 0
  %883 = vmatpush.bf16.msra.mxu0 0
  %884 = vmatpush.bf16.msra.mxu0 0
  %885 = vmatpush.bf16.msra.mxu0 %v401
  %886 = vmatpush.bf16.msra.mxu0 %v283
  %887 = vmatpush.bf16.msra.mxu0 %v279
  %888 = vmatmul.bf16.gmra.mxu0 %v298
  %v889 = vpop.f32.mrf.mxu0
  %v890 = vadd.f32 0.0, %v889
  %v891 = vpop.f32.mrf.mxu0
  %v892 = vadd.f32 0.0, %v891
  %893 = vmatmul.bf16.gmra.mxu0 %v301
  %v894 = vpop.f32.mrf.mxu0
  %v895 = vadd.f32 0.0, %v894
  %v896 = vpop.f32.mrf.mxu0
  %v897 = vadd.f32 0.0, %v896
  %898 = vmatmul.bf16.gmra.mxu0 %v304
  %v899 = vpop.f32.mrf.mxu0
  %v900 = vadd.f32 0.0, %v899
  %v901 = vpop.f32.mrf.mxu0
  %v902 = vadd.f32 0.0, %v901
  %903 = vmatmul.bf16.gmra.mxu0 %v307
  %v904 = vpop.f32.mrf.mxu0
  %v905 = vadd.f32 0.0, %v904
  %v906 = vpop.f32.mrf.mxu0
  %v907 = vadd.f32 0.0, %v906
  %908 = vmatmul.bf16.gmra.mxu0 %v310
  %v909 = vpop.f32.mrf.mxu0
  %v910 = vadd.f32 0.0, %v909
  %v911 = vpop.f32.mrf.mxu0
  %v912 = vadd.f32 0.0, %v911
  %913 = vmatmul.bf16.gmra.mxu0 %v313
  %v914 = vpop.f32.mrf.mxu0
  %v915 = vadd.f32 0.0, %v914
  %v916 = vpop.f32.mrf.mxu0
  %v917 = vadd.f32 0.0, %v916
  %918 = vmatmul.bf16.gmra.mxu0 %v316
  %v919 = vpop.f32.mrf.mxu0
  %v920 = vadd.f32 0.0, %v919
  %v921 = vpop.f32.mrf.mxu0
  %v922 = vadd.f32 0.0, %v921
  %923 = vmatmul.bf16.gmra.mxu0 %v319
  %v924 = vpop.f32.mrf.mxu0
  %v925 = vadd.f32 0.0, %v924
  %v926 = vpop.f32.mrf.mxu0
  %v927 = vadd.f32 0.0, %v926
  %928 = vmatmul.bf16.gmra.mxu0 %v322
  %v929 = vpop.f32.mrf.mxu0
  %v930 = vadd.f32 0.0, %v929
  %v931 = vpop.f32.mrf.mxu0
  %v932 = vadd.f32 0.0, %v931
  %933 = vmatmul.bf16.gmra.mxu0 %v325
  %v934 = vpop.f32.mrf.mxu0
  %v935 = vadd.f32 0.0, %v934
  %v936 = vpop.f32.mrf.mxu0
  %v937 = vadd.f32 0.0, %v936
  %938 = vmatmul.bf16.gmra.mxu0 %v328
  %v939 = vpop.f32.mrf.mxu0
  %v940 = vadd.f32 0.0, %v939
  %v941 = vpop.f32.mrf.mxu0
  %v942 = vadd.f32 0.0, %v941
  %943 = vmatmul.bf16.gmra.mxu0 %v331
  %v944 = vpop.f32.mrf.mxu0
  %v945 = vadd.f32 0.0, %v944
  %v946 = vpop.f32.mrf.mxu0
  %v947 = vadd.f32 0.0, %v946
  %948 = vmatmul.bf16.gmra.mxu0 %v334
  %v949 = vpop.f32.mrf.mxu0
  %v950 = vadd.f32 0.0, %v949
  %v951 = vpop.f32.mrf.mxu0
  %v952 = vadd.f32 0.0, %v951
  %953 = vmatmul.bf16.gmra.mxu0 %v337
  %v954 = vpop.f32.mrf.mxu0
  %v955 = vadd.f32 0.0, %v954
  %v956 = vpop.f32.mrf.mxu0
  %v957 = vadd.f32 0.0, %v956
  %958 = vmatmul.bf16.gmra.mxu0 %v340
  %v959 = vpop.f32.mrf.mxu0
  %v960 = vadd.f32 0.0, %v959
  %v961 = vpop.f32.mrf.mxu0
  %v962 = vadd.f32 0.0, %v961
  %963 = vmatmul.bf16.gmra.mxu0 %v343
  %v964 = vpop.f32.mrf.mxu0
  %v965 = vadd.f32 0.0, %v964
  %v966 = vpop.f32.mrf.mxu0
  %v967 = vadd.f32 0.0, %v966
  %968 = vmatmul.bf16.gmra.mxu0 %v346
  %v969 = vpop.f32.mrf.mxu0
  %v970 = vadd.f32 0.0, %v969
  %v971 = vpop.f32.mrf.mxu0
  %v972 = vadd.f32 0.0, %v971
  %973 = vmatmul.bf16.gmra.mxu0 %v349
  %v974 = vpop.f32.mrf.mxu0
  %v975 = vadd.f32 0.0, %v974
  %v976 = vpop.f32.mrf.mxu0
  %v977 = vadd.f32 0.0, %v976
  %978 = vmatmul.bf16.gmra.mxu0 %v352
  %v979 = vpop.f32.mrf.mxu0
  %v980 = vadd.f32 0.0, %v979
  %v981 = vpop.f32.mrf.mxu0
  %v982 = vadd.f32 0.0, %v981
  %983 = vmatmul.bf16.gmra.mxu0 %v355
  %v984 = vpop.f32.mrf.mxu0
  %v985 = vadd.f32 0.0, %v984
  %v986 = vpop.f32.mrf.mxu0
  %v987 = vadd.f32 0.0, %v986
  %988 = vmatmul.bf16.gmra.mxu0 %v358
  %v989 = vpop.f32.mrf.mxu0
  %v990 = vadd.f32 0.0, %v989
  %v991 = vpop.f32.mrf.mxu0
  %v992 = vadd.f32 0.0, %v991
  %993 = vmatmul.bf16.gmra.mxu0 %v361
  %v994 = vpop.f32.mrf.mxu0
  %v995 = vadd.f32 0.0, %v994
  %v996 = vpop.f32.mrf.mxu0
  %v997 = vadd.f32 0.0, %v996
  %998 = vmatmul.bf16.gmra.mxu0 %v364
  %v999 = vpop.f32.mrf.mxu0
  %v1000 = vadd.f32 0.0, %v999
  %v1001 = vpop.f32.mrf.mxu0
  %v1002 = vadd.f32 0.0, %v1001
  %1003 = vmatmul.bf16.gmra.mxu0 %v367
  %v1004 = vpop.f32.mrf.mxu0
  %v1005 = vadd.f32 0.0, %v1004
  %v1006 = vpop.f32.mrf.mxu0
  %v1007 = vadd.f32 0.0, %v1006
  %1008 = vmatmul.bf16.gmra.mxu0 %v370
  %v1009 = vpop.f32.mrf.mxu0
  %v1010 = vadd.f32 0.0, %v1009
  %v1011 = vpop.f32.mrf.mxu0
  %v1012 = vadd.f32 0.0, %v1011
  %1013 = vmatmul.bf16.gmra.mxu0 %v373
  %v1014 = vpop.f32.mrf.mxu0
  %v1015 = vadd.f32 0.0, %v1014
  %v1016 = vpop.f32.mrf.mxu0
  %v1017 = vadd.f32 0.0, %v1016
  %1018 = vmatmul.bf16.gmra.mxu0 %v376
  %v1019 = vpop.f32.mrf.mxu0
  %v1020 = vadd.f32 0.0, %v1019
  %v1021 = vpop.f32.mrf.mxu0
  %v1022 = vadd.f32 0.0, %v1021
  %1023 = vmatmul.bf16.gmra.mxu0 %v379
  %v1024 = vpop.f32.mrf.mxu0
  %v1025 = vadd.f32 0.0, %v1024
  %v1026 = vpop.f32.mrf.mxu0
  %v1027 = vadd.f32 0.0, %v1026
  %1028 = vmatmul.bf16.gmra.mxu0 %v382
  %v1029 = vpop.f32.mrf.mxu0
  %v1030 = vadd.f32 0.0, %v1029
  %v1031 = vpop.f32.mrf.mxu0
  %v1032 = vadd.f32 0.0, %v1031
  %1033 = vmatmul.bf16.gmra.mxu0 %v385
  %v1034 = vpop.f32.mrf.mxu0
  %v1035 = vadd.f32 0.0, %v1034
  %v1036 = vpop.f32.mrf.mxu0
  %v1037 = vadd.f32 0.0, %v1036
  %1038 = vdwg.mxu0
  %1039 = vst [vmem:[#allocation2] sm:$0xff] %v413
  %1040 = vst [vmem:[#allocation2 + $0x8] sm:$0xff] %v572
  %1041 = vst [vmem:[#allocation2 + $0x10] sm:$0xff] %v731
  %1042 = vst [vmem:[#allocation2 + $0x18] sm:$0xff] %v890
  %1043 = vst [vmem:[#allocation2 + $0x20] sm:$0xff] %v415
  %1044 = vst [vmem:[#allocation2 + $0x28] sm:$0xff] %v574
  %1045 = vst [vmem:[#allocation2 + $0x30] sm:$0xff] %v733
  %1046 = vst [vmem:[#allocation2 + $0x38] sm:$0xff] %v892
  %1047 = vst [vmem:[#allocation2 + $0x40] sm:$0xff] %v418
  %1048 = vst [vmem:[#allocation2 + $0x48] sm:$0xff] %v577
  %1049 = vst [vmem:[#allocation2 + $0x50] sm:$0xff] %v736
  %1050 = vst [vmem:[#allocation2 + $0x58] sm:$0xff] %v895
  %1051 = vst [vmem:[#allocation2 + $0x60] sm:$0xff] %v420
  %1052 = vst [vmem:[#allocation2 + $0x68] sm:$0xff] %v579
  %1053 = vst [vmem:[#allocation2 + $0x70] sm:$0xff] %v738
  %1054 = vst [vmem:[#allocation2 + $0x78] sm:$0xff] %v897
  %1055 = vst [vmem:[#allocation2 + $0x80] sm:$0xff] %v423
  %1056 = vst [vmem:[#allocation2 + $0x88] sm:$0xff] %v582
  %1057 = vst [vmem:[#allocation2 + $0x90] sm:$0xff] %v741
  %1058 = vst [vmem:[#allocation2 + $0x98] sm:$0xff] %v900
  %1059 = vst [vmem:[#allocation2 + $0xa0] sm:$0xff] %v425
  %1060 = vst [vmem:[#allocation2 + $0xa8] sm:$0xff] %v584
  %1061 = vst [vmem:[#allocation2 + $0xb0] sm:$0xff] %v743
  %1062 = vst [vmem:[#allocation2 + $0xb8] sm:$0xff] %v902
  %1063 = vst [vmem:[#allocation2 + $0xc0] sm:$0xff] %v428
  %1064 = vst [vmem:[#allocation2 + $0xc8] sm:$0xff] %v587
  %1065 = vst [vmem:[#allocation2 + $0xd0] sm:$0xff] %v746
  %1066 = vst [vmem:[#allocation2 + $0xd8] sm:$0xff] %v905
  %1067 = vst [vmem:[#allocation2 + $0xe0] sm:$0xff] %v430
  %1068 = vst [vmem:[#allocation2 + $0xe8] sm:$0xff] %v589
  %1069 = vst [vmem:[#allocation2 + $0xf0] sm:$0xff] %v748
  %1070 = vst [vmem:[#allocation2 + $0xf8] sm:$0xff] %v907
  %1071 = vst [vmem:[#allocation2 + $0x100] sm:$0xff] %v433
  %1072 = vst [vmem:[#allocation2 + $0x108] sm:$0xff] %v592
  %1073 = vst [vmem:[#allocation2 + $0x110] sm:$0xff] %v751
  %1074 = vst [vmem:[#allocation2 + $0x118] sm:$0xff] %v910
  %1075 = vst [vmem:[#allocation2 + $0x120] sm:$0xff] %v435
  %1076 = vst [vmem:[#allocation2 + $0x128] sm:$0xff] %v594
  %1077 = vst [vmem:[#allocation2 + $0x130] sm:$0xff] %v753
  %1078 = vst [vmem:[#allocation2 + $0x138] sm:$0xff] %v912
  %1079 = vst [vmem:[#allocation2 + $0x140] sm:$0xff] %v438
  %1080 = vst [vmem:[#allocation2 + $0x148] sm:$0xff] %v597
  %1081 = vst [vmem:[#allocation2 + $0x150] sm:$0xff] %v756
  %1082 = vst [vmem:[#allocation2 + $0x158] sm:$0xff] %v915
  %1083 = vst [vmem:[#allocation2 + $0x160] sm:$0xff] %v440
  %1084 = vst [vmem:[#allocation2 + $0x168] sm:$0xff] %v599
  %1085 = vst [vmem:[#allocation2 + $0x170] sm:$0xff] %v758
  %1086 = vst [vmem:[#allocation2 + $0x178] sm:$0xff] %v917
  %1087 = vst [vmem:[#allocation2 + $0x180] sm:$0xff] %v443
  %1088 = vst [vmem:[#allocation2 + $0x188] sm:$0xff] %v602
  %1089 = vst [vmem:[#allocation2 + $0x190] sm:$0xff] %v761
  %1090 = vst [vmem:[#allocation2 + $0x198] sm:$0xff] %v920
  %1091 = vst [vmem:[#allocation2 + $0x1a0] sm:$0xff] %v445
  %1092 = vst [vmem:[#allocation2 + $0x1a8] sm:$0xff] %v604
  %1093 = vst [vmem:[#allocation2 + $0x1b0] sm:$0xff] %v763
  %1094 = vst [vmem:[#allocation2 + $0x1b8] sm:$0xff] %v922
  %1095 = vst [vmem:[#allocation2 + $0x1c0] sm:$0xff] %v448
  %1096 = vst [vmem:[#allocation2 + $0x1c8] sm:$0xff] %v607
  %1097 = vst [vmem:[#allocation2 + $0x1d0] sm:$0xff] %v766
  %1098 = vst [vmem:[#allocation2 + $0x1d8] sm:$0xff] %v925
  %1099 = vst [vmem:[#allocation2 + $0x1e0] sm:$0xff] %v450
  %1100 = vst [vmem:[#allocation2 + $0x1e8] sm:$0xff] %v609
  %1101 = vst [vmem:[#allocation2 + $0x1f0] sm:$0xff] %v768
  %1102 = vst [vmem:[#allocation2 + $0x1f8] sm:$0xff] %v927
  %1103 = vst [vmem:[#allocation2 + $0x200] sm:$0xff] %v453
  %1104 = vst [vmem:[#allocation2 + $0x208] sm:$0xff] %v612
  %1105 = vst [vmem:[#allocation2 + $0x210] sm:$0xff] %v771
  %1106 = vst [vmem:[#allocation2 + $0x218] sm:$0xff] %v930
  %1107 = vst [vmem:[#allocation2 + $0x220] sm:$0xff] %v455
  %1108 = vst [vmem:[#allocation2 + $0x228] sm:$0xff] %v614
  %1109 = vst [vmem:[#allocation2 + $0x230] sm:$0xff] %v773
  %1110 = vst [vmem:[#allocation2 + $0x238] sm:$0xff] %v932
  %1111 = vst [vmem:[#allocation2 + $0x240] sm:$0xff] %v458
  %1112 = vst [vmem:[#allocation2 + $0x248] sm:$0xff] %v617
  %1113 = vst [vmem:[#allocation2 + $0x250] sm:$0xff] %v776
  %1114 = vst [vmem:[#allocation2 + $0x258] sm:$0xff] %v935
  %1115 = vst [vmem:[#allocation2 + $0x260] sm:$0xff] %v460
  %1116 = vst [vmem:[#allocation2 + $0x268] sm:$0xff] %v619
  %1117 = vst [vmem:[#allocation2 + $0x270] sm:$0xff] %v778
  %1118 = vst [vmem:[#allocation2 + $0x278] sm:$0xff] %v937
  %1119 = vst [vmem:[#allocation2 + $0x280] sm:$0xff] %v463
  %1120 = vst [vmem:[#allocation2 + $0x288] sm:$0xff] %v622
  %1121 = vst [vmem:[#allocation2 + $0x290] sm:$0xff] %v781
  %1122 = vst [vmem:[#allocation2 + $0x298] sm:$0xff] %v940
  %1123 = vst [vmem:[#allocation2 + $0x2a0] sm:$0xff] %v465
  %1124 = vst [vmem:[#allocation2 + $0x2a8] sm:$0xff] %v624
  %1125 = vst [vmem:[#allocation2 + $0x2b0] sm:$0xff] %v783
  %1126 = vst [vmem:[#allocation2 + $0x2b8] sm:$0xff] %v942
  %1127 = vst [vmem:[#allocation2 + $0x2c0] sm:$0xff] %v468
  %1128 = vst [vmem:[#allocation2 + $0x2c8] sm:$0xff] %v627
  %1129 = vst [vmem:[#allocation2 + $0x2d0] sm:$0xff] %v786
  %1130 = vst [vmem:[#allocation2 + $0x2d8] sm:$0xff] %v945
  %1131 = vst [vmem:[#allocation2 + $0x2e0] sm:$0xff] %v470
  %1132 = vst [vmem:[#allocation2 + $0x2e8] sm:$0xff] %v629
  %1133 = vst [vmem:[#allocation2 + $0x2f0] sm:$0xff] %v788
  %1134 = vst [vmem:[#allocation2 + $0x2f8] sm:$0xff] %v947
  %1135 = vst [vmem:[#allocation2 + $0x300] sm:$0xff] %v473
  %1136 = vst [vmem:[#allocation2 + $0x308] sm:$0xff] %v632
  %1137 = vst [vmem:[#allocation2 + $0x310] sm:$0xff] %v791
  %1138 = vst [vmem:[#allocation2 + $0x318] sm:$0xff] %v950
  %1139 = vst [vmem:[#allocation2 + $0x320] sm:$0xff] %v475
  %1140 = vst [vmem:[#allocation2 + $0x328] sm:$0xff] %v634
  %1141 = vst [vmem:[#allocation2 + $0x330] sm:$0xff] %v793
  %1142 = vst [vmem:[#allocation2 + $0x338] sm:$0xff] %v952
  %1143 = vst [vmem:[#allocation2 + $0x340] sm:$0xff] %v478
  %1144 = vst [vmem:[#allocation2 + $0x348] sm:$0xff] %v637
  %1145 = vst [vmem:[#allocation2 + $0x350] sm:$0xff] %v796
  %1146 = vst [vmem:[#allocation2 + $0x358] sm:$0xff] %v955
  %1147 = vst [vmem:[#allocation2 + $0x360] sm:$0xff] %v480
  %1148 = vst [vmem:[#allocation2 + $0x368] sm:$0xff] %v639
  %1149 = vst [vmem:[#allocation2 + $0x370] sm:$0xff] %v798
  %1150 = vst [vmem:[#allocation2 + $0x378] sm:$0xff] %v957
  %1151 = vst [vmem:[#allocation2 + $0x380] sm:$0xff] %v483
  %1152 = vst [vmem:[#allocation2 + $0x388] sm:$0xff] %v642
  %1153 = vst [vmem:[#allocation2 + $0x390] sm:$0xff] %v801
  %1154 = vst [vmem:[#allocation2 + $0x398] sm:$0xff] %v960
  %1155 = vst [vmem:[#allocation2 + $0x3a0] sm:$0xff] %v485
  %1156 = vst [vmem:[#allocation2 + $0x3a8] sm:$0xff] %v644
  %1157 = vst [vmem:[#allocation2 + $0x3b0] sm:$0xff] %v803
  %1158 = vst [vmem:[#allocation2 + $0x3b8] sm:$0xff] %v962
  %1159 = vst [vmem:[#allocation2 + $0x3c0] sm:$0xff] %v488
  %1160 = vst [vmem:[#allocation2 + $0x3c8] sm:$0xff] %v647
  %1161 = vst [vmem:[#allocation2 + $0x3d0] sm:$0xff] %v806
  %1162 = vst [vmem:[#allocation2 + $0x3d8] sm:$0xff] %v965
  %1163 = vst [vmem:[#allocation2 + $0x3e0] sm:$0xff] %v490
  %1164 = vst [vmem:[#allocation2 + $0x3e8] sm:$0xff] %v649
  %1165 = vst [vmem:[#allocation2 + $0x3f0] sm:$0xff] %v808
  %1166 = vst [vmem:[#allocation2 + $0x3f8] sm:$0xff] %v967
  %1167 = vst [vmem:[#allocation2 + $0x400] sm:$0xff] %v493
  %1168 = vst [vmem:[#allocation2 + $0x408] sm:$0xff] %v652
  %1169 = vst [vmem:[#allocation2 + $0x410] sm:$0xff] %v811
  %1170 = vst [vmem:[#allocation2 + $0x418] sm:$0xff] %v970
  %1171 = vst [vmem:[#allocation2 + $0x420] sm:$0xff] %v495
  %1172 = vst [vmem:[#allocation2 + $0x428] sm:$0xff] %v654
  %1173 = vst [vmem:[#allocation2 + $0x430] sm:$0xff] %v813
  %1174 = vst [vmem:[#allocation2 + $0x438] sm:$0xff] %v972
  %1175 = vst [vmem:[#allocation2 + $0x440] sm:$0xff] %v498
  %1176 = vst [vmem:[#allocation2 + $0x448] sm:$0xff] %v657
  %1177 = vst [vmem:[#allocation2 + $0x450] sm:$0xff] %v816
  %1178 = vst [vmem:[#allocation2 + $0x458] sm:$0xff] %v975
  %1179 = vst [vmem:[#allocation2 + $0x460] sm:$0xff] %v500
  %1180 = vst [vmem:[#allocation2 + $0x468] sm:$0xff] %v659
  %1181 = vst [vmem:[#allocation2 + $0x470] sm:$0xff] %v818
  %1182 = vst [vmem:[#allocation2 + $0x478] sm:$0xff] %v977
  %1183 = vst [vmem:[#allocation2 + $0x480] sm:$0xff] %v503
  %1184 = vst [vmem:[#allocation2 + $0x488] sm:$0xff] %v662
  %1185 = vst [vmem:[#allocation2 + $0x490] sm:$0xff] %v821
  %1186 = vst [vmem:[#allocation2 + $0x498] sm:$0xff] %v980
  %1187 = vst [vmem:[#allocation2 + $0x4a0] sm:$0xff] %v505
  %1188 = vst [vmem:[#allocation2 + $0x4a8] sm:$0xff] %v664
  %1189 = vst [vmem:[#allocation2 + $0x4b0] sm:$0xff] %v823
  %1190 = vst [vmem:[#allocation2 + $0x4b8] sm:$0xff] %v982
  %1191 = vst [vmem:[#allocation2 + $0x4c0] sm:$0xff] %v508
  %1192 = vst [vmem:[#allocation2 + $0x4c8] sm:$0xff] %v667
  %1193 = vst [vmem:[#allocation2 + $0x4d0] sm:$0xff] %v826
  %1194 = vst [vmem:[#allocation2 + $0x4d8] sm:$0xff] %v985
  %1195 = vst [vmem:[#allocation2 + $0x4e0] sm:$0xff] %v510
  %1196 = vst [vmem:[#allocation2 + $0x4e8] sm:$0xff] %v669
  %1197 = vst [vmem:[#allocation2 + $0x4f0] sm:$0xff] %v828
  %1198 = vst [vmem:[#allocation2 + $0x4f8] sm:$0xff] %v987
  %1199 = vst [vmem:[#allocation2 + $0x500] sm:$0xff] %v513
  %1200 = vst [vmem:[#allocation2 + $0x508] sm:$0xff] %v672
  %1201 = vst [vmem:[#allocation2 + $0x510] sm:$0xff] %v831
  %1202 = vst [vmem:[#allocation2 + $0x518] sm:$0xff] %v990
  %1203 = vst [vmem:[#allocation2 + $0x520] sm:$0xff] %v515
  %1204 = vst [vmem:[#allocation2 + $0x528] sm:$0xff] %v674
  %1205 = vst [vmem:[#allocation2 + $0x530] sm:$0xff] %v833
  %1206 = vst [vmem:[#allocation2 + $0x538] sm:$0xff] %v992
  %1207 = vst [vmem:[#allocation2 + $0x540] sm:$0xff] %v518
  %1208 = vst [vmem:[#allocation2 + $0x548] sm:$0xff] %v677
  %1209 = vst [vmem:[#allocation2 + $0x550] sm:$0xff] %v836
  %1210 = vst [vmem:[#allocation2 + $0x558] sm:$0xff] %v995
  %1211 = vst [vmem:[#allocation2 + $0x560] sm:$0xff] %v520
  %1212 = vst [vmem:[#allocation2 + $0x568] sm:$0xff] %v679
  %1213 = vst [vmem:[#allocation2 + $0x570] sm:$0xff] %v838
  %1214 = vst [vmem:[#allocation2 + $0x578] sm:$0xff] %v997
  %1215 = vst [vmem:[#allocation2 + $0x580] sm:$0xff] %v523
  %1216 = vst [vmem:[#allocation2 + $0x588] sm:$0xff] %v682
  %1217 = vst [vmem:[#allocation2 + $0x590] sm:$0xff] %v841
  %1218 = vst [vmem:[#allocation2 + $0x598] sm:$0xff] %v1000
  %1219 = vst [vmem:[#allocation2 + $0x5a0] sm:$0xff] %v525
  %1220 = vst [vmem:[#allocation2 + $0x5a8] sm:$0xff] %v684
  %1221 = vst [vmem:[#allocation2 + $0x5b0] sm:$0xff] %v843
  %1222 = vst [vmem:[#allocation2 + $0x5b8] sm:$0xff] %v1002
  %1223 = vst [vmem:[#allocation2 + $0x5c0] sm:$0xff] %v528
  %1224 = vst [vmem:[#allocation2 + $0x5c8] sm:$0xff] %v687
  %1225 = vst [vmem:[#allocation2 + $0x5d0] sm:$0xff] %v846
  %1226 = vst [vmem:[#allocation2 + $0x5d8] sm:$0xff] %v1005
  %1227 = vst [vmem:[#allocation2 + $0x5e0] sm:$0xff] %v530
  %1228 = vst [vmem:[#allocation2 + $0x5e8] sm:$0xff] %v689
  %1229 = vst [vmem:[#allocation2 + $0x5f0] sm:$0xff] %v848
  %1230 = vst [vmem:[#allocation2 + $0x5f8] sm:$0xff] %v1007
  %1231 = vst [vmem:[#allocation2 + $0x600] sm:$0xff] %v533
  %1232 = vst [vmem:[#allocation2 + $0x608] sm:$0xff] %v692
  %1233 = vst [vmem:[#allocation2 + $0x610] sm:$0xff] %v851
  %1234 = vst [vmem:[#allocation2 + $0x618] sm:$0xff] %v1010
  %1235 = vst [vmem:[#allocation2 + $0x620] sm:$0xff] %v535
  %1236 = vst [vmem:[#allocation2 + $0x628] sm:$0xff] %v694
  %1237 = vst [vmem:[#allocation2 + $0x630] sm:$0xff] %v853
  %1238 = vst [vmem:[#allocation2 + $0x638] sm:$0xff] %v1012
  %1239 = vst [vmem:[#allocation2 + $0x640] sm:$0xff] %v538
  %1240 = vst [vmem:[#allocation2 + $0x648] sm:$0xff] %v697
  %1241 = vst [vmem:[#allocation2 + $0x650] sm:$0xff] %v856
  %1242 = vst [vmem:[#allocation2 + $0x658] sm:$0xff] %v1015
  %1243 = vst [vmem:[#allocation2 + $0x660] sm:$0xff] %v540
  %1244 = vst [vmem:[#allocation2 + $0x668] sm:$0xff] %v699
  %1245 = vst [vmem:[#allocation2 + $0x670] sm:$0xff] %v858
  %1246 = vst [vmem:[#allocation2 + $0x678] sm:$0xff] %v1017
  %1247 = vst [vmem:[#allocation2 + $0x680] sm:$0xff] %v543
  %1248 = vst [vmem:[#allocation2 + $0x688] sm:$0xff] %v702
  %1249 = vst [vmem:[#allocation2 + $0x690] sm:$0xff] %v861
  %1250 = vst [vmem:[#allocation2 + $0x698] sm:$0xff] %v1020
  %1251 = vst [vmem:[#allocation2 + $0x6a0] sm:$0xff] %v545
  %1252 = vst [vmem:[#allocation2 + $0x6a8] sm:$0xff] %v704
  %1253 = vst [vmem:[#allocation2 + $0x6b0] sm:$0xff] %v863
  %1254 = vst [vmem:[#allocation2 + $0x6b8] sm:$0xff] %v1022
  %1255 = vst [vmem:[#allocation2 + $0x6c0] sm:$0xff] %v548
  %1256 = vst [vmem:[#allocation2 + $0x6c8] sm:$0xff] %v707
  %1257 = vst [vmem:[#allocation2 + $0x6d0] sm:$0xff] %v866
  %1258 = vst [vmem:[#allocation2 + $0x6d8] sm:$0xff] %v1025
  %1259 = vst [vmem:[#allocation2 + $0x6e0] sm:$0xff] %v550
  %1260 = vst [vmem:[#allocation2 + $0x6e8] sm:$0xff] %v709
  %1261 = vst [vmem:[#allocation2 + $0x6f0] sm:$0xff] %v868
  %1262 = vst [vmem:[#allocation2 + $0x6f8] sm:$0xff] %v1027
  %1263 = vst [vmem:[#allocation2 + $0x700] sm:$0xff] %v553
  %1264 = vst [vmem:[#allocation2 + $0x708] sm:$0xff] %v712
  %1265 = vst [vmem:[#allocation2 + $0x710] sm:$0xff] %v871
  %1266 = vst [vmem:[#allocation2 + $0x718] sm:$0xff] %v1030
  %1267 = vst [vmem:[#allocation2 + $0x720] sm:$0xff] %v555
  %1268 = vst [vmem:[#allocation2 + $0x728] sm:$0xff] %v714
  %1269 = vst [vmem:[#allocation2 + $0x730] sm:$0xff] %v873
  %1270 = vst [vmem:[#allocation2 + $0x738] sm:$0xff] %v1032
  %1271 = vst [vmem:[#allocation2 + $0x740] sm:$0xff] %v558
  %1272 = vst [vmem:[#allocation2 + $0x748] sm:$0xff] %v717
  %1273 = vst [vmem:[#allocation2 + $0x750] sm:$0xff] %v876
  %1274 = vst [vmem:[#allocation2 + $0x758] sm:$0xff] %v1035
  %1275 = vst [vmem:[#allocation2 + $0x760] sm:$0xff] %v560
  %1276 = vst [vmem:[#allocation2 + $0x768] sm:$0xff] %v719
  %1277 = vst [vmem:[#allocation2 + $0x770] sm:$0xff] %v878
  %1278 = vst [vmem:[#allocation2 + $0x778] sm:$0xff] %v1037
  %v1279 = vld [vmem:[#allocation2] sm:$0xff]
  %v1280 = vld [vmem:[#allocation2 + $0x8] sm:$0xff]
  %v1281 = vld [vmem:[#allocation2 + $0x10] sm:$0xff]
  %v1282 = vld [vmem:[#allocation2 + $0x18] sm:$0xff]
  %v1283 = vld [vmem:[#allocation2 + $0x20] sm:$0xff]
  %v1284 = vld [vmem:[#allocation2 + $0x28] sm:$0xff]
  %v1285 = vld [vmem:[#allocation2 + $0x30] sm:$0xff]
  %v1286 = vld [vmem:[#allocation2 + $0x38] sm:$0xff]
  %v1287 = vld [vmem:[#allocation2 + $0x40] sm:$0xff]
  %v1288 = vld [vmem:[#allocation2 + $0x48] sm:$0xff]
  %v1289 = vld [vmem:[#allocation2 + $0x50] sm:$0xff]
  %v1290 = vld [vmem:[#allocation2 + $0x58] sm:$0xff]
  %v1291 = vld [vmem:[#allocation2 + $0x60] sm:$0xff]
  %v1292 = vld [vmem:[#allocation2 + $0x68] sm:$0xff]
  %v1293 = vld [vmem:[#allocation2 + $0x70] sm:$0xff]
  %v1294 = vld [vmem:[#allocation2 + $0x78] sm:$0xff]
  %v1295 = vxor.u32 %v1279, 2147483648
  %v1296 = vxor.u32 %v1280, 2147483648
  %v1297 = vxor.u32 %v1281, 2147483648
  %v1298 = vxor.u32 %v1282, 2147483648
  %v1299 = vxor.u32 %v1283, 2147483648
  %v1300 = vxor.u32 %v1284, 2147483648
  %v1301 = vxor.u32 %v1285, 2147483648
  %v1302 = vxor.u32 %v1286, 2147483648
  %v1303 = vxor.u32 %v1287, 2147483648
  %v1304 = vxor.u32 %v1288, 2147483648
  %v1305 = vxor.u32 %v1289, 2147483648
  %v1306 = vxor.u32 %v1290, 2147483648
  %v1307 = vxor.u32 %v1291, 2147483648
  %v1308 = vxor.u32 %v1292, 2147483648
  %v1309 = vxor.u32 %v1293, 2147483648
  %v1310 = vxor.u32 %v1294, 2147483648
  %v1311 = vmul.f32 %v1295, 1.442695
  %v1312 = vpow.pop %v1311
  %v1313 = vmul.f32 %v1296, 1.442695
  %v1314 = vpow.pop %v1313
  %v1315 = vmul.f32 %v1297, 1.442695
  %v1316 = vpow.pop %v1315
  %v1317 = vmul.f32 %v1298, 1.442695
  %v1318 = vpow.pop %v1317
  %v1319 = vmul.f32 %v1299, 1.442695
  %v1320 = vpow.pop %v1319
  %v1321 = vmul.f32 %v1300, 1.442695
  %v1322 = vpow.pop %v1321
  %v1323 = vmul.f32 %v1301, 1.442695
  %v1324 = vpow.pop %v1323
  %v1325 = vmul.f32 %v1302, 1.442695
  %v1326 = vpow.pop %v1325
  %v1327 = vmul.f32 %v1303, 1.442695
  %v1328 = vpow.pop %v1327
  %v1329 = vmul.f32 %v1304, 1.442695
  %v1330 = vpow.pop %v1329
  %v1331 = vmul.f32 %v1305, 1.442695
  %v1332 = vpow.pop %v1331
  %v1333 = vmul.f32 %v1306, 1.442695
  %v1334 = vpow.pop %v1333
  %v1335 = vmul.f32 %v1307, 1.442695
  %v1336 = vpow.pop %v1335
  %v1337 = vmul.f32 %v1308, 1.442695
  %v1338 = vpow.pop %v1337
  %v1339 = vmul.f32 %v1309, 1.442695
  %v1340 = vpow.pop %v1339
  %v1341 = vmul.f32 %v1310, 1.442695
  %v1342 = vpow.pop %v1341
  %v1343 = vadd.f32 %v1312, 1.0
  %v1344 = vadd.f32 %v1314, 1.0
  %v1345 = vadd.f32 %v1316, 1.0
  %v1346 = vadd.f32 %v1318, 1.0
  %v1347 = vadd.f32 %v1320, 1.0
  %v1348 = vadd.f32 %v1322, 1.0
  %v1349 = vadd.f32 %v1324, 1.0
  %v1350 = vadd.f32 %v1326, 1.0
  %v1351 = vadd.f32 %v1328, 1.0
  %v1352 = vadd.f32 %v1330, 1.0
  %v1353 = vadd.f32 %v1332, 1.0
  %v1354 = vadd.f32 %v1334, 1.0
  %v1355 = vadd.f32 %v1336, 1.0
  %v1356 = vadd.f32 %v1338, 1.0
  %v1357 = vadd.f32 %v1340, 1.0
  %v1358 = vadd.f32 %v1342, 1.0
  %v1359 = vrcp.pop %v1343
  %v1360 = vmul.f32 %v1343, %v1359
  %v1361 = vsub.f32 1.0, %v1360
  %v1362 = vmul.f32 %v1359, %v1361
  %v1363 = vadd.f32 %v1359, %v1362
  %vm1364 = vweird.f32 %v1343
  %vm1365 = vweird.f32 %v1359
  %vm1366 = vmor %vm1364, %vm1365
  %v1367 = vsel %vm1366, %v1359, %v1363
  %v1368 = vand.u32 2147483647, %v1343
  %vm1369 = vcmp.eq.f32.partialorder %v1368, 8.507059e+37
  %v1370 = vand.u32 %v1343, 2147483648
  %v1371 = vor.u32 1.1754944e-38, %v1370
  %v1372 = vsel %vm1369, %v1371, %v1367
  %v1373 = vmul.f32 1.0, %v1372
  %v1374 = vrcp.pop %v1344
  %v1375 = vmul.f32 %v1344, %v1374
  %v1376 = vsub.f32 1.0, %v1375
  %v1377 = vmul.f32 %v1374, %v1376
  %v1378 = vadd.f32 %v1374, %v1377
  %vm1379 = vweird.f32 %v1344
  %vm1380 = vweird.f32 %v1374
  %vm1381 = vmor %vm1379, %vm1380
  %v1382 = vsel %vm1381, %v1374, %v1378
  %v1383 = vand.u32 2147483647, %v1344
  %vm1384 = vcmp.eq.f32.partialorder %v1383, 8.507059e+37
  %v1385 = vand.u32 %v1344, 2147483648
  %v1386 = vor.u32 1.1754944e-38, %v1385
  %v1387 = vsel %vm1384, %v1386, %v1382
  %v1388 = vmul.f32 1.0, %v1387
  %v1389 = vrcp.pop %v1345
  %v1390 = vmul.f32 %v1345, %v1389
  %v1391 = vsub.f32 1.0, %v1390
  %v1392 = vmul.f32 %v1389, %v1391
  %v1393 = vadd.f32 %v1389, %v1392
  %vm1394 = vweird.f32 %v1345
  %vm1395 = vweird.f32 %v1389
  %vm1396 = vmor %vm1394, %vm1395
  %v1397 = vsel %vm1396, %v1389, %v1393
  %v1398 = vand.u32 2147483647, %v1345
  %vm1399 = vcmp.eq.f32.partialorder %v1398, 8.507059e+37
  %v1400 = vand.u32 %v1345, 2147483648
  %v1401 = vor.u32 1.1754944e-38, %v1400
  %v1402 = vsel %vm1399, %v1401, %v1397
  %v1403 = vmul.f32 1.0, %v1402
  %v1404 = vrcp.pop %v1346
  %v1405 = vmul.f32 %v1346, %v1404
  %v1406 = vsub.f32 1.0, %v1405
  %v1407 = vmul.f32 %v1404, %v1406
  %v1408 = vadd.f32 %v1404, %v1407
  %vm1409 = vweird.f32 %v1346
  %vm1410 = vweird.f32 %v1404
  %vm1411 = vmor %vm1409, %vm1410
  %v1412 = vsel %vm1411, %v1404, %v1408
  %v1413 = vand.u32 2147483647, %v1346
  %vm1414 = vcmp.eq.f32.partialorder %v1413, 8.507059e+37
  %v1415 = vand.u32 %v1346, 2147483648
  %v1416 = vor.u32 1.1754944e-38, %v1415
  %v1417 = vsel %vm1414, %v1416, %v1412
  %v1418 = vmul.f32 1.0, %v1417
  %v1419 = vrcp.pop %v1347
  %v1420 = vmul.f32 %v1347, %v1419
  %v1421 = vsub.f32 1.0, %v1420
  %v1422 = vmul.f32 %v1419, %v1421
  %v1423 = vadd.f32 %v1419, %v1422
  %vm1424 = vweird.f32 %v1347
  %vm1425 = vweird.f32 %v1419
  %vm1426 = vmor %vm1424, %vm1425
  %v1427 = vsel %vm1426, %v1419, %v1423
  %v1428 = vand.u32 2147483647, %v1347
  %vm1429 = vcmp.eq.f32.partialorder %v1428, 8.507059e+37
  %v1430 = vand.u32 %v1347, 2147483648
  %v1431 = vor.u32 1.1754944e-38, %v1430
  %v1432 = vsel %vm1429, %v1431, %v1427
  %v1433 = vmul.f32 1.0, %v1432
  %v1434 = vrcp.pop %v1348
  %v1435 = vmul.f32 %v1348, %v1434
  %v1436 = vsub.f32 1.0, %v1435
  %v1437 = vmul.f32 %v1434, %v1436
  %v1438 = vadd.f32 %v1434, %v1437
  %vm1439 = vweird.f32 %v1348
  %vm1440 = vweird.f32 %v1434
  %vm1441 = vmor %vm1439, %vm1440
  %v1442 = vsel %vm1441, %v1434, %v1438
  %v1443 = vand.u32 2147483647, %v1348
  %vm1444 = vcmp.eq.f32.partialorder %v1443, 8.507059e+37
  %v1445 = vand.u32 %v1348, 2147483648
  %v1446 = vor.u32 1.1754944e-38, %v1445
  %v1447 = vsel %vm1444, %v1446, %v1442
  %v1448 = vmul.f32 1.0, %v1447
  %v1449 = vrcp.pop %v1349
  %v1450 = vmul.f32 %v1349, %v1449
  %v1451 = vsub.f32 1.0, %v1450
  %v1452 = vmul.f32 %v1449, %v1451
  %v1453 = vadd.f32 %v1449, %v1452
  %vm1454 = vweird.f32 %v1349
  %vm1455 = vweird.f32 %v1449
  %vm1456 = vmor %vm1454, %vm1455
  %v1457 = vsel %vm1456, %v1449, %v1453
  %v1458 = vand.u32 2147483647, %v1349
  %vm1459 = vcmp.eq.f32.partialorder %v1458, 8.507059e+37
  %v1460 = vand.u32 %v1349, 2147483648
  %v1461 = vor.u32 1.1754944e-38, %v1460
  %v1462 = vsel %vm1459, %v1461, %v1457
  %v1463 = vmul.f32 1.0, %v1462
  %v1464 = vrcp.pop %v1350
  %v1465 = vmul.f32 %v1350, %v1464
  %v1466 = vsub.f32 1.0, %v1465
  %v1467 = vmul.f32 %v1464, %v1466
  %v1468 = vadd.f32 %v1464, %v1467
  %vm1469 = vweird.f32 %v1350
  %vm1470 = vweird.f32 %v1464
  %vm1471 = vmor %vm1469, %vm1470
  %v1472 = vsel %vm1471, %v1464, %v1468
  %v1473 = vand.u32 2147483647, %v1350
  %vm1474 = vcmp.eq.f32.partialorder %v1473, 8.507059e+37
  %v1475 = vand.u32 %v1350, 2147483648
  %v1476 = vor.u32 1.1754944e-38, %v1475
  %v1477 = vsel %vm1474, %v1476, %v1472
  %v1478 = vmul.f32 1.0, %v1477
  %v1479 = vrcp.pop %v1351
  %v1480 = vmul.f32 %v1351, %v1479
  %v1481 = vsub.f32 1.0, %v1480
  %v1482 = vmul.f32 %v1479, %v1481
  %v1483 = vadd.f32 %v1479, %v1482
  %vm1484 = vweird.f32 %v1351
  %vm1485 = vweird.f32 %v1479
  %vm1486 = vmor %vm1484, %vm1485
  %v1487 = vsel %vm1486, %v1479, %v1483
  %v1488 = vand.u32 2147483647, %v1351
  %vm1489 = vcmp.eq.f32.partialorder %v1488, 8.507059e+37
  %v1490 = vand.u32 %v1351, 2147483648
  %v1491 = vor.u32 1.1754944e-38, %v1490
  %v1492 = vsel %vm1489, %v1491, %v1487
  %v1493 = vmul.f32 1.0, %v1492
  %v1494 = vrcp.pop %v1352
  %v1495 = vmul.f32 %v1352, %v1494
  %v1496 = vsub.f32 1.0, %v1495
  %v1497 = vmul.f32 %v1494, %v1496
  %v1498 = vadd.f32 %v1494, %v1497
  %vm1499 = vweird.f32 %v1352
  %vm1500 = vweird.f32 %v1494
  %vm1501 = vmor %vm1499, %vm1500
  %v1502 = vsel %vm1501, %v1494, %v1498
  %v1503 = vand.u32 2147483647, %v1352
  %vm1504 = vcmp.eq.f32.partialorder %v1503, 8.507059e+37
  %v1505 = vand.u32 %v1352, 2147483648
  %v1506 = vor.u32 1.1754944e-38, %v1505
  %v1507 = vsel %vm1504, %v1506, %v1502
  %v1508 = vmul.f32 1.0, %v1507
  %v1509 = vrcp.pop %v1353
  %v1510 = vmul.f32 %v1353, %v1509
  %v1511 = vsub.f32 1.0, %v1510
  %v1512 = vmul.f32 %v1509, %v1511
  %v1513 = vadd.f32 %v1509, %v1512
  %vm1514 = vweird.f32 %v1353
  %vm1515 = vweird.f32 %v1509
  %vm1516 = vmor %vm1514, %vm1515
  %v1517 = vsel %vm1516, %v1509, %v1513
  %v1518 = vand.u32 2147483647, %v1353
  %vm1519 = vcmp.eq.f32.partialorder %v1518, 8.507059e+37
  %v1520 = vand.u32 %v1353, 2147483648
  %v1521 = vor.u32 1.1754944e-38, %v1520
  %v1522 = vsel %vm1519, %v1521, %v1517
  %v1523 = vmul.f32 1.0, %v1522
  %v1524 = vrcp.pop %v1354
  %v1525 = vmul.f32 %v1354, %v1524
  %v1526 = vsub.f32 1.0, %v1525
  %v1527 = vmul.f32 %v1524, %v1526
  %v1528 = vadd.f32 %v1524, %v1527
  %vm1529 = vweird.f32 %v1354
  %vm1530 = vweird.f32 %v1524
  %vm1531 = vmor %vm1529, %vm1530
  %v1532 = vsel %vm1531, %v1524, %v1528
  %v1533 = vand.u32 2147483647, %v1354
  %vm1534 = vcmp.eq.f32.partialorder %v1533, 8.507059e+37
  %v1535 = vand.u32 %v1354, 2147483648
  %v1536 = vor.u32 1.1754944e-38, %v1535
  %v1537 = vsel %vm1534, %v1536, %v1532
  %v1538 = vmul.f32 1.0, %v1537
  %v1539 = vrcp.pop %v1355
  %v1540 = vmul.f32 %v1355, %v1539
  %v1541 = vsub.f32 1.0, %v1540
  %v1542 = vmul.f32 %v1539, %v1541
  %v1543 = vadd.f32 %v1539, %v1542
  %vm1544 = vweird.f32 %v1355
  %vm1545 = vweird.f32 %v1539
  %vm1546 = vmor %vm1544, %vm1545
  %v1547 = vsel %vm1546, %v1539, %v1543
  %v1548 = vand.u32 2147483647, %v1355
  %vm1549 = vcmp.eq.f32.partialorder %v1548, 8.507059e+37
  %v1550 = vand.u32 %v1355, 2147483648
  %v1551 = vor.u32 1.1754944e-38, %v1550
  %v1552 = vsel %vm1549, %v1551, %v1547
  %v1553 = vmul.f32 1.0, %v1552
  %v1554 = vrcp.pop %v1356
  %v1555 = vmul.f32 %v1356, %v1554
  %v1556 = vsub.f32 1.0, %v1555
  %v1557 = vmul.f32 %v1554, %v1556
  %v1558 = vadd.f32 %v1554, %v1557
  %vm1559 = vweird.f32 %v1356
  %vm1560 = vweird.f32 %v1554
  %vm1561 = vmor %vm1559, %vm1560
  %v1562 = vsel %vm1561, %v1554, %v1558
  %v1563 = vand.u32 2147483647, %v1356
  %vm1564 = vcmp.eq.f32.partialorder %v1563, 8.507059e+37
  %v1565 = vand.u32 %v1356, 2147483648
  %v1566 = vor.u32 1.1754944e-38, %v1565
  %v1567 = vsel %vm1564, %v1566, %v1562
  %v1568 = vmul.f32 1.0, %v1567
  %v1569 = vrcp.pop %v1357
  %v1570 = vmul.f32 %v1357, %v1569
  %v1571 = vsub.f32 1.0, %v1570
  %v1572 = vmul.f32 %v1569, %v1571
  %v1573 = vadd.f32 %v1569, %v1572
  %vm1574 = vweird.f32 %v1357
  %vm1575 = vweird.f32 %v1569
  %vm1576 = vmor %vm1574, %vm1575
  %v1577 = vsel %vm1576, %v1569, %v1573
  %v1578 = vand.u32 2147483647, %v1357
  %vm1579 = vcmp.eq.f32.partialorder %v1578, 8.507059e+37
  %v1580 = vand.u32 %v1357, 2147483648
  %v1581 = vor.u32 1.1754944e-38, %v1580
  %v1582 = vsel %vm1579, %v1581, %v1577
  %v1583 = vmul.f32 1.0, %v1582
  %v1584 = vrcp.pop %v1358
  %v1585 = vmul.f32 %v1358, %v1584
  %v1586 = vsub.f32 1.0, %v1585
  %v1587 = vmul.f32 %v1584, %v1586
  %v1588 = vadd.f32 %v1584, %v1587
  %vm1589 = vweird.f32 %v1358
  %vm1590 = vweird.f32 %v1584
  %vm1591 = vmor %vm1589, %vm1590
  %v1592 = vsel %vm1591, %v1584, %v1588
  %v1593 = vand.u32 2147483647, %v1358
  %vm1594 = vcmp.eq.f32.partialorder %v1593, 8.507059e+37
  %v1595 = vand.u32 %v1358, 2147483648
  %v1596 = vor.u32 1.1754944e-38, %v1595
  %v1597 = vsel %vm1594, %v1596, %v1592
  %v1598 = vmul.f32 1.0, %v1597
  %v1599 = vld [vmem:[#allocation2 + $0x280] sm:$0xff]
  %v1600 = vld [vmem:[#allocation2 + $0x288] sm:$0xff]
  %v1601 = vld [vmem:[#allocation2 + $0x290] sm:$0xff]
  %v1602 = vld [vmem:[#allocation2 + $0x298] sm:$0xff]
  %v1603 = vld [vmem:[#allocation2 + $0x2a0] sm:$0xff]
  %v1604 = vld [vmem:[#allocation2 + $0x2a8] sm:$0xff]
  %v1605 = vld [vmem:[#allocation2 + $0x2b0] sm:$0xff]
  %v1606 = vld [vmem:[#allocation2 + $0x2b8] sm:$0xff]
  %v1607 = vld [vmem:[#allocation2 + $0x2c0] sm:$0xff]
  %v1608 = vld [vmem:[#allocation2 + $0x2c8] sm:$0xff]
  %v1609 = vld [vmem:[#allocation2 + $0x2d0] sm:$0xff]
  %v1610 = vld [vmem:[#allocation2 + $0x2d8] sm:$0xff]
  %v1611 = vld [vmem:[#allocation2 + $0x2e0] sm:$0xff]
  %v1612 = vld [vmem:[#allocation2 + $0x2e8] sm:$0xff]
  %v1613 = vld [vmem:[#allocation2 + $0x2f0] sm:$0xff]
  %v1614 = vld [vmem:[#allocation2 + $0x2f8] sm:$0xff]
  %v1615 = vxor.u32 %v1599, 2147483648
  %v1616 = vxor.u32 %v1600, 2147483648
  %v1617 = vxor.u32 %v1601, 2147483648
  %v1618 = vxor.u32 %v1602, 2147483648
  %v1619 = vxor.u32 %v1603, 2147483648
  %v1620 = vxor.u32 %v1604, 2147483648
  %v1621 = vxor.u32 %v1605, 2147483648
  %v1622 = vxor.u32 %v1606, 2147483648
  %v1623 = vxor.u32 %v1607, 2147483648
  %v1624 = vxor.u32 %v1608, 2147483648
  %v1625 = vxor.u32 %v1609, 2147483648
  %v1626 = vxor.u32 %v1610, 2147483648
  %v1627 = vxor.u32 %v1611, 2147483648
  %v1628 = vxor.u32 %v1612, 2147483648
  %v1629 = vxor.u32 %v1613, 2147483648
  %v1630 = vxor.u32 %v1614, 2147483648
  %v1631 = vmul.f32 %v1615, 1.442695
  %v1632 = vpow.pop %v1631
  %v1633 = vmul.f32 %v1616, 1.442695
  %v1634 = vpow.pop %v1633
  %v1635 = vmul.f32 %v1617, 1.442695
  %v1636 = vpow.pop %v1635
  %v1637 = vmul.f32 %v1618, 1.442695
  %v1638 = vpow.pop %v1637
  %v1639 = vmul.f32 %v1619, 1.442695
  %v1640 = vpow.pop %v1639
  %v1641 = vmul.f32 %v1620, 1.442695
  %v1642 = vpow.pop %v1641
  %v1643 = vmul.f32 %v1621, 1.442695
  %v1644 = vpow.pop %v1643
  %v1645 = vmul.f32 %v1622, 1.442695
  %v1646 = vpow.pop %v1645
  %v1647 = vmul.f32 %v1623, 1.442695
  %v1648 = vpow.pop %v1647
  %v1649 = vmul.f32 %v1624, 1.442695
  %v1650 = vpow.pop %v1649
  %v1651 = vmul.f32 %v1625, 1.442695
  %v1652 = vpow.pop %v1651
  %v1653 = vmul.f32 %v1626, 1.442695
  %v1654 = vpow.pop %v1653
  %v1655 = vmul.f32 %v1627, 1.442695
  %v1656 = vpow.pop %v1655
  %v1657 = vmul.f32 %v1628, 1.442695
  %v1658 = vpow.pop %v1657
  %v1659 = vmul.f32 %v1629, 1.442695
  %v1660 = vpow.pop %v1659
  %v1661 = vmul.f32 %v1630, 1.442695
  %v1662 = vpow.pop %v1661
  %v1663 = vadd.f32 %v1632, 1.0
  %v1664 = vadd.f32 %v1634, 1.0
  %v1665 = vadd.f32 %v1636, 1.0
  %v1666 = vadd.f32 %v1638, 1.0
  %v1667 = vadd.f32 %v1640, 1.0
  %v1668 = vadd.f32 %v1642, 1.0
  %v1669 = vadd.f32 %v1644, 1.0
  %v1670 = vadd.f32 %v1646, 1.0
  %v1671 = vadd.f32 %v1648, 1.0
  %v1672 = vadd.f32 %v1650, 1.0
  %v1673 = vadd.f32 %v1652, 1.0
  %v1674 = vadd.f32 %v1654, 1.0
  %v1675 = vadd.f32 %v1656, 1.0
  %v1676 = vadd.f32 %v1658, 1.0
  %v1677 = vadd.f32 %v1660, 1.0
  %v1678 = vadd.f32 %v1662, 1.0
  %v1679 = vrcp.pop %v1663
  %v1680 = vmul.f32 %v1663, %v1679
  %v1681 = vsub.f32 1.0, %v1680
  %v1682 = vmul.f32 %v1679, %v1681
  %v1683 = vadd.f32 %v1679, %v1682
  %vm1684 = vweird.f32 %v1663
  %vm1685 = vweird.f32 %v1679
  %vm1686 = vmor %vm1684, %vm1685
  %v1687 = vsel %vm1686, %v1679, %v1683
  %v1688 = vand.u32 2147483647, %v1663
  %vm1689 = vcmp.eq.f32.partialorder %v1688, 8.507059e+37
  %v1690 = vand.u32 %v1663, 2147483648
  %v1691 = vor.u32 1.1754944e-38, %v1690
  %v1692 = vsel %vm1689, %v1691, %v1687
  %v1693 = vmul.f32 1.0, %v1692
  %v1694 = vrcp.pop %v1664
  %v1695 = vmul.f32 %v1664, %v1694
  %v1696 = vsub.f32 1.0, %v1695
  %v1697 = vmul.f32 %v1694, %v1696
  %v1698 = vadd.f32 %v1694, %v1697
  %vm1699 = vweird.f32 %v1664
  %vm1700 = vweird.f32 %v1694
  %vm1701 = vmor %vm1699, %vm1700
  %v1702 = vsel %vm1701, %v1694, %v1698
  %v1703 = vand.u32 2147483647, %v1664
  %vm1704 = vcmp.eq.f32.partialorder %v1703, 8.507059e+37
  %v1705 = vand.u32 %v1664, 2147483648
  %v1706 = vor.u32 1.1754944e-38, %v1705
  %v1707 = vsel %vm1704, %v1706, %v1702
  %v1708 = vmul.f32 1.0, %v1707
  %v1709 = vrcp.pop %v1665
  %v1710 = vmul.f32 %v1665, %v1709
  %v1711 = vsub.f32 1.0, %v1710
  %v1712 = vmul.f32 %v1709, %v1711
  %v1713 = vadd.f32 %v1709, %v1712
  %vm1714 = vweird.f32 %v1665
  %vm1715 = vweird.f32 %v1709
  %vm1716 = vmor %vm1714, %vm1715
  %v1717 = vsel %vm1716, %v1709, %v1713
  %v1718 = vand.u32 2147483647, %v1665
  %vm1719 = vcmp.eq.f32.partialorder %v1718, 8.507059e+37
  %v1720 = vand.u32 %v1665, 2147483648
  %v1721 = vor.u32 1.1754944e-38, %v1720
  %v1722 = vsel %vm1719, %v1721, %v1717
  %v1723 = vmul.f32 1.0, %v1722
  %v1724 = vrcp.pop %v1666
  %v1725 = vmul.f32 %v1666, %v1724
  %v1726 = vsub.f32 1.0, %v1725
  %v1727 = vmul.f32 %v1724, %v1726
  %v1728 = vadd.f32 %v1724, %v1727
  %vm1729 = vweird.f32 %v1666
  %vm1730 = vweird.f32 %v1724
  %vm1731 = vmor %vm1729, %vm1730
  %v1732 = vsel %vm1731, %v1724, %v1728
  %v1733 = vand.u32 2147483647, %v1666
  %vm1734 = vcmp.eq.f32.partialorder %v1733, 8.507059e+37
  %v1735 = vand.u32 %v1666, 2147483648
  %v1736 = vor.u32 1.1754944e-38, %v1735
  %v1737 = vsel %vm1734, %v1736, %v1732
  %v1738 = vmul.f32 1.0, %v1737
  %v1739 = vrcp.pop %v1667
  %v1740 = vmul.f32 %v1667, %v1739
  %v1741 = vsub.f32 1.0, %v1740
  %v1742 = vmul.f32 %v1739, %v1741
  %v1743 = vadd.f32 %v1739, %v1742
  %vm1744 = vweird.f32 %v1667
  %vm1745 = vweird.f32 %v1739
  %vm1746 = vmor %vm1744, %vm1745
  %v1747 = vsel %vm1746, %v1739, %v1743
  %v1748 = vand.u32 2147483647, %v1667
  %vm1749 = vcmp.eq.f32.partialorder %v1748, 8.507059e+37
  %v1750 = vand.u32 %v1667, 2147483648
  %v1751 = vor.u32 1.1754944e-38, %v1750
  %v1752 = vsel %vm1749, %v1751, %v1747
  %v1753 = vmul.f32 1.0, %v1752
  %v1754 = vrcp.pop %v1668
  %v1755 = vmul.f32 %v1668, %v1754
  %v1756 = vsub.f32 1.0, %v1755
  %v1757 = vmul.f32 %v1754, %v1756
  %v1758 = vadd.f32 %v1754, %v1757
  %vm1759 = vweird.f32 %v1668
  %vm1760 = vweird.f32 %v1754
  %vm1761 = vmor %vm1759, %vm1760
  %v1762 = vsel %vm1761, %v1754, %v1758
  %v1763 = vand.u32 2147483647, %v1668
  %vm1764 = vcmp.eq.f32.partialorder %v1763, 8.507059e+37
  %v1765 = vand.u32 %v1668, 2147483648
  %v1766 = vor.u32 1.1754944e-38, %v1765
  %v1767 = vsel %vm1764, %v1766, %v1762
  %v1768 = vmul.f32 1.0, %v1767
  %v1769 = vrcp.pop %v1669
  %v1770 = vmul.f32 %v1669, %v1769
  %v1771 = vsub.f32 1.0, %v1770
  %v1772 = vmul.f32 %v1769, %v1771
  %v1773 = vadd.f32 %v1769, %v1772
  %vm1774 = vweird.f32 %v1669
  %vm1775 = vweird.f32 %v1769
  %vm1776 = vmor %vm1774, %vm1775
  %v1777 = vsel %vm1776, %v1769, %v1773
  %v1778 = vand.u32 2147483647, %v1669
  %vm1779 = vcmp.eq.f32.partialorder %v1778, 8.507059e+37
  %v1780 = vand.u32 %v1669, 2147483648
  %v1781 = vor.u32 1.1754944e-38, %v1780
  %v1782 = vsel %vm1779, %v1781, %v1777
  %v1783 = vmul.f32 1.0, %v1782
  %v1784 = vrcp.pop %v1670
  %v1785 = vmul.f32 %v1670, %v1784
  %v1786 = vsub.f32 1.0, %v1785
  %v1787 = vmul.f32 %v1784, %v1786
  %v1788 = vadd.f32 %v1784, %v1787
  %vm1789 = vweird.f32 %v1670
  %vm1790 = vweird.f32 %v1784
  %vm1791 = vmor %vm1789, %vm1790
  %v1792 = vsel %vm1791, %v1784, %v1788
  %v1793 = vand.u32 2147483647, %v1670
  %vm1794 = vcmp.eq.f32.partialorder %v1793, 8.507059e+37
  %v1795 = vand.u32 %v1670, 2147483648
  %v1796 = vor.u32 1.1754944e-38, %v1795
  %v1797 = vsel %vm1794, %v1796, %v1792
  %v1798 = vmul.f32 1.0, %v1797
  %v1799 = vrcp.pop %v1671
  %v1800 = vmul.f32 %v1671, %v1799
  %v1801 = vsub.f32 1.0, %v1800
  %v1802 = vmul.f32 %v1799, %v1801
  %v1803 = vadd.f32 %v1799, %v1802
  %vm1804 = vweird.f32 %v1671
  %vm1805 = vweird.f32 %v1799
  %vm1806 = vmor %vm1804, %vm1805
  %v1807 = vsel %vm1806, %v1799, %v1803
  %v1808 = vand.u32 2147483647, %v1671
  %vm1809 = vcmp.eq.f32.partialorder %v1808, 8.507059e+37
  %v1810 = vand.u32 %v1671, 2147483648
  %v1811 = vor.u32 1.1754944e-38, %v1810
  %v1812 = vsel %vm1809, %v1811, %v1807
  %v1813 = vmul.f32 1.0, %v1812
  %v1814 = vrcp.pop %v1672
  %v1815 = vmul.f32 %v1672, %v1814
  %v1816 = vsub.f32 1.0, %v1815
  %v1817 = vmul.f32 %v1814, %v1816
  %v1818 = vadd.f32 %v1814, %v1817
  %vm1819 = vweird.f32 %v1672
  %vm1820 = vweird.f32 %v1814
  %vm1821 = vmor %vm1819, %vm1820
  %v1822 = vsel %vm1821, %v1814, %v1818
  %v1823 = vand.u32 2147483647, %v1672
  %vm1824 = vcmp.eq.f32.partialorder %v1823, 8.507059e+37
  %v1825 = vand.u32 %v1672, 2147483648
  %v1826 = vor.u32 1.1754944e-38, %v1825
  %v1827 = vsel %vm1824, %v1826, %v1822
  %v1828 = vmul.f32 1.0, %v1827
  %v1829 = vrcp.pop %v1673
  %v1830 = vmul.f32 %v1673, %v1829
  %v1831 = vsub.f32 1.0, %v1830
  %v1832 = vmul.f32 %v1829, %v1831
  %v1833 = vadd.f32 %v1829, %v1832
  %vm1834 = vweird.f32 %v1673
  %vm1835 = vweird.f32 %v1829
  %vm1836 = vmor %vm1834, %vm1835
  %v1837 = vsel %vm1836, %v1829, %v1833
  %v1838 = vand.u32 2147483647, %v1673
  %vm1839 = vcmp.eq.f32.partialorder %v1838, 8.507059e+37
  %v1840 = vand.u32 %v1673, 2147483648
  %v1841 = vor.u32 1.1754944e-38, %v1840
  %v1842 = vsel %vm1839, %v1841, %v1837
  %v1843 = vmul.f32 1.0, %v1842
  %v1844 = vrcp.pop %v1674
  %v1845 = vmul.f32 %v1674, %v1844
  %v1846 = vsub.f32 1.0, %v1845
  %v1847 = vmul.f32 %v1844, %v1846
  %v1848 = vadd.f32 %v1844, %v1847
  %vm1849 = vweird.f32 %v1674
  %vm1850 = vweird.f32 %v1844
  %vm1851 = vmor %vm1849, %vm1850
  %v1852 = vsel %vm1851, %v1844, %v1848
  %v1853 = vand.u32 2147483647, %v1674
  %vm1854 = vcmp.eq.f32.partialorder %v1853, 8.507059e+37
  %v1855 = vand.u32 %v1674, 2147483648
  %v1856 = vor.u32 1.1754944e-38, %v1855
  %v1857 = vsel %vm1854, %v1856, %v1852
  %v1858 = vmul.f32 1.0, %v1857
  %v1859 = vrcp.pop %v1675
  %v1860 = vmul.f32 %v1675, %v1859
  %v1861 = vsub.f32 1.0, %v1860
  %v1862 = vmul.f32 %v1859, %v1861
  %v1863 = vadd.f32 %v1859, %v1862
  %vm1864 = vweird.f32 %v1675
  %vm1865 = vweird.f32 %v1859
  %vm1866 = vmor %vm1864, %vm1865
  %v1867 = vsel %vm1866, %v1859, %v1863
  %v1868 = vand.u32 2147483647, %v1675
  %vm1869 = vcmp.eq.f32.partialorder %v1868, 8.507059e+37
  %v1870 = vand.u32 %v1675, 2147483648
  %v1871 = vor.u32 1.1754944e-38, %v1870
  %v1872 = vsel %vm1869, %v1871, %v1867
  %v1873 = vmul.f32 1.0, %v1872
  %v1874 = vrcp.pop %v1676
  %v1875 = vmul.f32 %v1676, %v1874
  %v1876 = vsub.f32 1.0, %v1875
  %v1877 = vmul.f32 %v1874, %v1876
  %v1878 = vadd.f32 %v1874, %v1877
  %vm1879 = vweird.f32 %v1676
  %vm1880 = vweird.f32 %v1874
  %vm1881 = vmor %vm1879, %vm1880
  %v1882 = vsel %vm1881, %v1874, %v1878
  %v1883 = vand.u32 2147483647, %v1676
  %vm1884 = vcmp.eq.f32.partialorder %v1883, 8.507059e+37
  %v1885 = vand.u32 %v1676, 2147483648
  %v1886 = vor.u32 1.1754944e-38, %v1885
  %v1887 = vsel %vm1884, %v1886, %v1882
  %v1888 = vmul.f32 1.0, %v1887
  %v1889 = vrcp.pop %v1677
  %v1890 = vmul.f32 %v1677, %v1889
  %v1891 = vsub.f32 1.0, %v1890
  %v1892 = vmul.f32 %v1889, %v1891
  %v1893 = vadd.f32 %v1889, %v1892
  %vm1894 = vweird.f32 %v1677
  %vm1895 = vweird.f32 %v1889
  %vm1896 = vmor %vm1894, %vm1895
  %v1897 = vsel %vm1896, %v1889, %v1893
  %v1898 = vand.u32 2147483647, %v1677
  %vm1899 = vcmp.eq.f32.partialorder %v1898, 8.507059e+37
  %v1900 = vand.u32 %v1677, 2147483648
  %v1901 = vor.u32 1.1754944e-38, %v1900
  %v1902 = vsel %vm1899, %v1901, %v1897
  %v1903 = vmul.f32 1.0, %v1902
  %v1904 = vrcp.pop %v1678
  %v1905 = vmul.f32 %v1678, %v1904
  %v1906 = vsub.f32 1.0, %v1905
  %v1907 = vmul.f32 %v1904, %v1906
  %v1908 = vadd.f32 %v1904, %v1907
  %vm1909 = vweird.f32 %v1678
  %vm1910 = vweird.f32 %v1904
  %vm1911 = vmor %vm1909, %vm1910
  %v1912 = vsel %vm1911, %v1904, %v1908
  %v1913 = vand.u32 2147483647, %v1678
  %vm1914 = vcmp.eq.f32.partialorder %v1913, 8.507059e+37
  %v1915 = vand.u32 %v1678, 2147483648
  %v1916 = vor.u32 1.1754944e-38, %v1915
  %v1917 = vsel %vm1914, %v1916, %v1912
  %v1918 = vmul.f32 1.0, %v1917
  %v1919 = vld [vmem:[%s2] sm:$0xff]
  %v1920 = vld [vmem:[%s2 + $0x8] sm:$0xff]
  %v1921 = vld [vmem:[%s2 + $0x10] sm:$0xff]
  %v1922 = vld [vmem:[%s2 + $0x18] sm:$0xff]
  %v1923 = vld [vmem:[#allocation2 + $0x500] sm:$0xff]
  %v1924 = vld [vmem:[#allocation2 + $0x508] sm:$0xff]
  %v1925 = vld [vmem:[#allocation2 + $0x510] sm:$0xff]
  %v1926 = vld [vmem:[#allocation2 + $0x518] sm:$0xff]
  %v1927 = vld [vmem:[#allocation2 + $0x520] sm:$0xff]
  %v1928 = vld [vmem:[#allocation2 + $0x528] sm:$0xff]
  %v1929 = vld [vmem:[#allocation2 + $0x530] sm:$0xff]
  %v1930 = vld [vmem:[#allocation2 + $0x538] sm:$0xff]
  %v1931 = vld [vmem:[#allocation2 + $0x540] sm:$0xff]
  %v1932 = vld [vmem:[#allocation2 + $0x548] sm:$0xff]
  %v1933 = vld [vmem:[#allocation2 + $0x550] sm:$0xff]
  %v1934 = vld [vmem:[#allocation2 + $0x558] sm:$0xff]
  %v1935 = vld [vmem:[#allocation2 + $0x560] sm:$0xff]
  %v1936 = vld [vmem:[#allocation2 + $0x568] sm:$0xff]
  %v1937 = vld [vmem:[#allocation2 + $0x570] sm:$0xff]
  %v1938 = vld [vmem:[#allocation2 + $0x578] sm:$0xff]
  %1940 = vset.pattern.permute.xlu0 0
  %1941 = vperm.xlu0 %1940, %v1919
  %v1942 = vpop.permute.xlu0 %1941
  %1945 = vset.pattern.permute.xlu0 0
  %1946 = vperm.xlu0 %1945, %v1920
  %v1947 = vpop.permute.xlu0 %1946
  %1950 = vset.pattern.permute.xlu0 0
  %1951 = vperm.xlu0 %1950, %v1921
  %v1952 = vpop.permute.xlu0 %1951
  %1955 = vset.pattern.permute.xlu0 0
  %1956 = vperm.xlu0 %1955, %v1922
  %v1957 = vpop.permute.xlu0 %1956
  %v1959 = vmul.f32 %v1693, %v1942
  %v1960 = vmul.f32 %v1708, %v1942
  %v1961 = vmul.f32 %v1723, %v1942
  %v1962 = vmul.f32 %v1738, %v1942
  %v1963 = vmul.f32 %v1753, %v1947
  %v1964 = vmul.f32 %v1768, %v1947
  %v1965 = vmul.f32 %v1783, %v1947
  %v1966 = vmul.f32 %v1798, %v1947
  %v1967 = vmul.f32 %v1813, %v1952
  %v1968 = vmul.f32 %v1828, %v1952
  %v1969 = vmul.f32 %v1843, %v1952
  %v1970 = vmul.f32 %v1858, %v1952
  %v1971 = vmul.f32 %v1873, %v1957
  %v1972 = vmul.f32 %v1888, %v1957
  %v1973 = vmul.f32 %v1903, %v1957
  %v1974 = vmul.f32 %v1918, %v1957
  %v1975 = vadd.f32 %v1923, %v1959
  %v1976 = vadd.f32 %v1924, %v1960
  %v1977 = vadd.f32 %v1925, %v1961
  %v1978 = vadd.f32 %v1926, %v1962
  %v1979 = vadd.f32 %v1927, %v1963
  %v1980 = vadd.f32 %v1928, %v1964
  %v1981 = vadd.f32 %v1929, %v1965
  %v1982 = vadd.f32 %v1930, %v1966
  %v1983 = vadd.f32 %v1931, %v1967
  %v1984 = vadd.f32 %v1932, %v1968
  %v1985 = vadd.f32 %v1933, %v1969
  %v1986 = vadd.f32 %v1934, %v1970
  %v1987 = vadd.f32 %v1935, %v1971
  %v1988 = vadd.f32 %v1936, %v1972
  %v1989 = vadd.f32 %v1937, %v1973
  %v1990 = vadd.f32 %v1938, %v1974
  %v1991 = vtanh.pop %v1975
  %v1992 = vtanh.pop %v1976
  %v1993 = vtanh.pop %v1977
  %v1994 = vtanh.pop %v1978
  %v1995 = vtanh.pop %v1979
  %v1996 = vtanh.pop %v1980
  %v1997 = vtanh.pop %v1981
  %v1998 = vtanh.pop %v1982
  %v1999 = vtanh.pop %v1983
  %v2000 = vtanh.pop %v1984
  %v2001 = vtanh.pop %v1985
  %v2002 = vtanh.pop %v1986
  %v2003 = vtanh.pop %v1987
  %v2004 = vtanh.pop %v1988
  %v2005 = vtanh.pop %v1989
  %v2006 = vtanh.pop %v1990
  %v2007 = vsub.f32 1.0, %v1373
  %v2008 = vsub.f32 1.0, %v1388
  %v2009 = vsub.f32 1.0, %v1403
  %v2010 = vsub.f32 1.0, %v1418
  %v2011 = vsub.f32 1.0, %v1433
  %v2012 = vsub.f32 1.0, %v1448
  %v2013 = vsub.f32 1.0, %v1463
  %v2014 = vsub.f32 1.0, %v1478
  %v2015 = vsub.f32 1.0, %v1493
  %v2016 = vsub.f32 1.0, %v1508
  %v2017 = vsub.f32 1.0, %v1523
  %v2018 = vsub.f32 1.0, %v1538
  %v2019 = vsub.f32 1.0, %v1553
  %v2020 = vsub.f32 1.0, %v1568
  %v2021 = vsub.f32 1.0, %v1583
  %v2022 = vsub.f32 1.0, %v1598
  %v2023 = vmul.f32 %v2007, %v1991
  %v2024 = vmul.f32 %v2008, %v1992
  %v2025 = vmul.f32 %v2009, %v1993
  %v2026 = vmul.f32 %v2010, %v1994
  %v2027 = vmul.f32 %v2011, %v1995
  %v2028 = vmul.f32 %v2012, %v1996
  %v2029 = vmul.f32 %v2013, %v1997
  %v2030 = vmul.f32 %v2014, %v1998
  %v2031 = vmul.f32 %v2015, %v1999
  %v2032 = vmul.f32 %v2016, %v2000
  %v2033 = vmul.f32 %v2017, %v2001
  %v2034 = vmul.f32 %v2018, %v2002
  %v2035 = vmul.f32 %v2019, %v2003
  %v2036 = vmul.f32 %v2020, %v2004
  %v2037 = vmul.f32 %v2021, %v2005
  %v2038 = vmul.f32 %v2022, %v2006
  %v2039 = vpack.c.bf16 %v2024, %v2023
  %v2040 = vpack.c.bf16 %v2026, %v2025
  %v2041 = vpack.c.bf16 %v2028, %v2027
  %v2042 = vpack.c.bf16 %v2030, %v2029
  %v2043 = vpack.c.bf16 %v2032, %v2031
  %v2044 = vpack.c.bf16 %v2034, %v2033
  %v2045 = vpack.c.bf16 %v2036, %v2035
  %v2046 = vpack.c.bf16 %v2038, %v2037
  %2047 = vst [vmem:[#allocation3] sm:$0xff] %v2039
  %2048 = vst [vmem:[#allocation3 + $0x8] sm:$0xff] %v2040
  %2049 = vst [vmem:[#allocation3 + $0x10] sm:$0xff] %v2041
  %2050 = vst [vmem:[#allocation3 + $0x18] sm:$0xff] %v2042
  %2051 = vst [vmem:[#allocation3 + $0x20] sm:$0xff] %v2043
  %2052 = vst [vmem:[#allocation3 + $0x28] sm:$0xff] %v2044
  %2053 = vst [vmem:[#allocation3 + $0x30] sm:$0xff] %v2045
  %2054 = vst [vmem:[#allocation3 + $0x38] sm:$0xff] %v2046
  %2055 = vst [vmem:[%s7] sm:$0xff] %v2025
  %2056 = vst [vmem:[%s7 + $0x8] sm:$0xff] %v2026
  %2057 = vst [vmem:[%s7 + $0x10] sm:$0xff] %v2029
  %2058 = vst [vmem:[%s7 + $0x18] sm:$0xff] %v2030
  %2059 = vst [vmem:[%s7 + $0x20] sm:$0xff] %v2033
  %2060 = vst [vmem:[%s7 + $0x28] sm:$0xff] %v2034
  %2061 = vst [vmem:[%s7 + $0x30] sm:$0xff] %v2037
  %2062 = vst [vmem:[%s7 + $0x38] sm:$0xff] %v2038
  %v2063 = vld [vmem:[#allocation2 + $0x80] sm:$0xff]
  %v2064 = vld [vmem:[#allocation2 + $0x88] sm:$0xff]
  %v2065 = vld [vmem:[#allocation2 + $0x90] sm:$0xff]
  %v2066 = vld [vmem:[#allocation2 + $0x98] sm:$0xff]
  %v2067 = vld [vmem:[#allocation2 + $0xa0] sm:$0xff]
  %v2068 = vld [vmem:[#allocation2 + $0xa8] sm:$0xff]
  %v2069 = vld [vmem:[#allocation2 + $0xb0] sm:$0xff]
  %v2070 = vld [vmem:[#allocation2 + $0xb8] sm:$0xff]
  %v2071 = vld [vmem:[#allocation2 + $0xc0] sm:$0xff]
  %v2072 = vld [vmem:[#allocation2 + $0xc8] sm:$0xff]
  %v2073 = vld [vmem:[#allocation2 + $0xd0] sm:$0xff]
  %v2074 = vld [vmem:[#allocation2 + $0xd8] sm:$0xff]
  %v2075 = vld [vmem:[#allocation2 + $0xe0] sm:$0xff]
  %v2076 = vld [vmem:[#allocation2 + $0xe8] sm:$0xff]
  %v2077 = vld [vmem:[#allocation2 + $0xf0] sm:$0xff]
  %v2078 = vld [vmem:[#allocation2 + $0xf8] sm:$0xff]
  %v2079 = vxor.u32 %v2063, 2147483648
  %v2080 = vxor.u32 %v2064, 2147483648
  %v2081 = vxor.u32 %v2065, 2147483648
  %v2082 = vxor.u32 %v2066, 2147483648
  %v2083 = vxor.u32 %v2067, 2147483648
  %v2084 = vxor.u32 %v2068, 2147483648
  %v2085 = vxor.u32 %v2069, 2147483648
  %v2086 = vxor.u32 %v2070, 2147483648
  %v2087 = vxor.u32 %v2071, 2147483648
  %v2088 = vxor.u32 %v2072, 2147483648
  %v2089 = vxor.u32 %v2073, 2147483648
  %v2090 = vxor.u32 %v2074, 2147483648
  %v2091 = vxor.u32 %v2075, 2147483648
  %v2092 = vxor.u32 %v2076, 2147483648
  %v2093 = vxor.u32 %v2077, 2147483648
  %v2094 = vxor.u32 %v2078, 2147483648
  %v2095 = vmul.f32 %v2079, 1.442695
  %v2096 = vpow.pop %v2095
  %v2097 = vmul.f32 %v2080, 1.442695
  %v2098 = vpow.pop %v2097
  %v2099 = vmul.f32 %v2081, 1.442695
  %v2100 = vpow.pop %v2099
  %v2101 = vmul.f32 %v2082, 1.442695
  %v2102 = vpow.pop %v2101
  %v2103 = vmul.f32 %v2083, 1.442695
  %v2104 = vpow.pop %v2103
  %v2105 = vmul.f32 %v2084, 1.442695
  %v2106 = vpow.pop %v2105
  %v2107 = vmul.f32 %v2085, 1.442695
  %v2108 = vpow.pop %v2107
  %v2109 = vmul.f32 %v2086, 1.442695
  %v2110 = vpow.pop %v2109
  %v2111 = vmul.f32 %v2087, 1.442695
  %v2112 = vpow.pop %v2111
  %v2113 = vmul.f32 %v2088, 1.442695
  %v2114 = vpow.pop %v2113
  %v2115 = vmul.f32 %v2089, 1.442695
  %v2116 = vpow.pop %v2115
  %v2117 = vmul.f32 %v2090, 1.442695
  %v2118 = vpow.pop %v2117
  %v2119 = vmul.f32 %v2091, 1.442695
  %v2120 = vpow.pop %v2119
  %v2121 = vmul.f32 %v2092, 1.442695
  %v2122 = vpow.pop %v2121
  %v2123 = vmul.f32 %v2093, 1.442695
  %v2124 = vpow.pop %v2123
  %v2125 = vmul.f32 %v2094, 1.442695
  %v2126 = vpow.pop %v2125
  %v2127 = vadd.f32 %v2096, 1.0
  %v2128 = vadd.f32 %v2098, 1.0
  %v2129 = vadd.f32 %v2100, 1.0
  %v2130 = vadd.f32 %v2102, 1.0
  %v2131 = vadd.f32 %v2104, 1.0
  %v2132 = vadd.f32 %v2106, 1.0
  %v2133 = vadd.f32 %v2108, 1.0
  %v2134 = vadd.f32 %v2110, 1.0
  %v2135 = vadd.f32 %v2112, 1.0
  %v2136 = vadd.f32 %v2114, 1.0
  %v2137 = vadd.f32 %v2116, 1.0
  %v2138 = vadd.f32 %v2118, 1.0
  %v2139 = vadd.f32 %v2120, 1.0
  %v2140 = vadd.f32 %v2122, 1.0
  %v2141 = vadd.f32 %v2124, 1.0
  %v2142 = vadd.f32 %v2126, 1.0
  %v2143 = vrcp.pop %v2127
  %v2144 = vmul.f32 %v2127, %v2143
  %v2145 = vsub.f32 1.0, %v2144
  %v2146 = vmul.f32 %v2143, %v2145
  %v2147 = vadd.f32 %v2143, %v2146
  %vm2148 = vweird.f32 %v2127
  %vm2149 = vweird.f32 %v2143
  %vm2150 = vmor %vm2148, %vm2149
  %v2151 = vsel %vm2150, %v2143, %v2147
  %v2152 = vand.u32 2147483647, %v2127
  %vm2153 = vcmp.eq.f32.partialorder %v2152, 8.507059e+37
  %v2154 = vand.u32 %v2127, 2147483648
  %v2155 = vor.u32 1.1754944e-38, %v2154
  %v2156 = vsel %vm2153, %v2155, %v2151
  %v2157 = vmul.f32 1.0, %v2156
  %v2158 = vrcp.pop %v2128
  %v2159 = vmul.f32 %v2128, %v2158
  %v2160 = vsub.f32 1.0, %v2159
  %v2161 = vmul.f32 %v2158, %v2160
  %v2162 = vadd.f32 %v2158, %v2161
  %vm2163 = vweird.f32 %v2128
  %vm2164 = vweird.f32 %v2158
  %vm2165 = vmor %vm2163, %vm2164
  %v2166 = vsel %vm2165, %v2158, %v2162
  %v2167 = vand.u32 2147483647, %v2128
  %vm2168 = vcmp.eq.f32.partialorder %v2167, 8.507059e+37
  %v2169 = vand.u32 %v2128, 2147483648
  %v2170 = vor.u32 1.1754944e-38, %v2169
  %v2171 = vsel %vm2168, %v2170, %v2166
  %v2172 = vmul.f32 1.0, %v2171
  %v2173 = vrcp.pop %v2129
  %v2174 = vmul.f32 %v2129, %v2173
  %v2175 = vsub.f32 1.0, %v2174
  %v2176 = vmul.f32 %v2173, %v2175
  %v2177 = vadd.f32 %v2173, %v2176
  %vm2178 = vweird.f32 %v2129
  %vm2179 = vweird.f32 %v2173
  %vm2180 = vmor %vm2178, %vm2179
  %v2181 = vsel %vm2180, %v2173, %v2177
  %v2182 = vand.u32 2147483647, %v2129
  %vm2183 = vcmp.eq.f32.partialorder %v2182, 8.507059e+37
  %v2184 = vand.u32 %v2129, 2147483648
  %v2185 = vor.u32 1.1754944e-38, %v2184
  %v2186 = vsel %vm2183, %v2185, %v2181
  %v2187 = vmul.f32 1.0, %v2186
  %v2188 = vrcp.pop %v2130
  %v2189 = vmul.f32 %v2130, %v2188
  %v2190 = vsub.f32 1.0, %v2189
  %v2191 = vmul.f32 %v2188, %v2190
  %v2192 = vadd.f32 %v2188, %v2191
  %vm2193 = vweird.f32 %v2130
  %vm2194 = vweird.f32 %v2188
  %vm2195 = vmor %vm2193, %vm2194
  %v2196 = vsel %vm2195, %v2188, %v2192
  %v2197 = vand.u32 2147483647, %v2130
  %vm2198 = vcmp.eq.f32.partialorder %v2197, 8.507059e+37
  %v2199 = vand.u32 %v2130, 2147483648
  %v2200 = vor.u32 1.1754944e-38, %v2199
  %v2201 = vsel %vm2198, %v2200, %v2196
  %v2202 = vmul.f32 1.0, %v2201
  %v2203 = vrcp.pop %v2131
  %v2204 = vmul.f32 %v2131, %v2203
  %v2205 = vsub.f32 1.0, %v2204
  %v2206 = vmul.f32 %v2203, %v2205
  %v2207 = vadd.f32 %v2203, %v2206
  %vm2208 = vweird.f32 %v2131
  %vm2209 = vweird.f32 %v2203
  %vm2210 = vmor %vm2208, %vm2209
  %v2211 = vsel %vm2210, %v2203, %v2207
  %v2212 = vand.u32 2147483647, %v2131
  %vm2213 = vcmp.eq.f32.partialorder %v2212, 8.507059e+37
  %v2214 = vand.u32 %v2131, 2147483648
  %v2215 = vor.u32 1.1754944e-38, %v2214
  %v2216 = vsel %vm2213, %v2215, %v2211
  %v2217 = vmul.f32 1.0, %v2216
  %v2218 = vrcp.pop %v2132
  %v2219 = vmul.f32 %v2132, %v2218
  %v2220 = vsub.f32 1.0, %v2219
  %v2221 = vmul.f32 %v2218, %v2220
  %v2222 = vadd.f32 %v2218, %v2221
  %vm2223 = vweird.f32 %v2132
  %vm2224 = vweird.f32 %v2218
  %vm2225 = vmor %vm2223, %vm2224
  %v2226 = vsel %vm2225, %v2218, %v2222
  %v2227 = vand.u32 2147483647, %v2132
  %vm2228 = vcmp.eq.f32.partialorder %v2227, 8.507059e+37
  %v2229 = vand.u32 %v2132, 2147483648
  %v2230 = vor.u32 1.1754944e-38, %v2229
  %v2231 = vsel %vm2228, %v2230, %v2226
  %v2232 = vmul.f32 1.0, %v2231
  %v2233 = vrcp.pop %v2133
  %v2234 = vmul.f32 %v2133, %v2233
  %v2235 = vsub.f32 1.0, %v2234
  %v2236 = vmul.f32 %v2233, %v2235
  %v2237 = vadd.f32 %v2233, %v2236
  %vm2238 = vweird.f32 %v2133
  %vm2239 = vweird.f32 %v2233
  %vm2240 = vmor %vm2238, %vm2239
  %v2241 = vsel %vm2240, %v2233, %v2237
  %v2242 = vand.u32 2147483647, %v2133
  %vm2243 = vcmp.eq.f32.partialorder %v2242, 8.507059e+37
  %v2244 = vand.u32 %v2133, 2147483648
  %v2245 = vor.u32 1.1754944e-38, %v2244
  %v2246 = vsel %vm2243, %v2245, %v2241
  %v2247 = vmul.f32 1.0, %v2246
  %v2248 = vrcp.pop %v2134
  %v2249 = vmul.f32 %v2134, %v2248
  %v2250 = vsub.f32 1.0, %v2249
  %v2251 = vmul.f32 %v2248, %v2250
  %v2252 = vadd.f32 %v2248, %v2251
  %vm2253 = vweird.f32 %v2134
  %vm2254 = vweird.f32 %v2248
  %vm2255 = vmor %vm2253, %vm2254
  %v2256 = vsel %vm2255, %v2248, %v2252
  %v2257 = vand.u32 2147483647, %v2134
  %vm2258 = vcmp.eq.f32.partialorder %v2257, 8.507059e+37
  %v2259 = vand.u32 %v2134, 2147483648
  %v2260 = vor.u32 1.1754944e-38, %v2259
  %v2261 = vsel %vm2258, %v2260, %v2256
  %v2262 = vmul.f32 1.0, %v2261
  %v2263 = vrcp.pop %v2135
  %v2264 = vmul.f32 %v2135, %v2263
  %v2265 = vsub.f32 1.0, %v2264
  %v2266 = vmul.f32 %v2263, %v2265
  %v2267 = vadd.f32 %v2263, %v2266
  %vm2268 = vweird.f32 %v2135
  %vm2269 = vweird.f32 %v2263
  %vm2270 = vmor %vm2268, %vm2269
  %v2271 = vsel %vm2270, %v2263, %v2267
  %v2272 = vand.u32 2147483647, %v2135
  %vm2273 = vcmp.eq.f32.partialorder %v2272, 8.507059e+37
  %v2274 = vand.u32 %v2135, 2147483648
  %v2275 = vor.u32 1.1754944e-38, %v2274
  %v2276 = vsel %vm2273, %v2275, %v2271
  %v2277 = vmul.f32 1.0, %v2276
  %v2278 = vrcp.pop %v2136
  %v2279 = vmul.f32 %v2136, %v2278
  %v2280 = vsub.f32 1.0, %v2279
  %v2281 = vmul.f32 %v2278, %v2280
  %v2282 = vadd.f32 %v2278, %v2281
  %vm2283 = vweird.f32 %v2136
  %vm2284 = vweird.f32 %v2278
  %vm2285 = vmor %vm2283, %vm2284
  %v2286 = vsel %vm2285, %v2278, %v2282
  %v2287 = vand.u32 2147483647, %v2136
  %vm2288 = vcmp.eq.f32.partialorder %v2287, 8.507059e+37
  %v2289 = vand.u32 %v2136, 2147483648
  %v2290 = vor.u32 1.1754944e-38, %v2289
  %v2291 = vsel %vm2288, %v2290, %v2286
  %v2292 = vmul.f32 1.0, %v2291
  %v2293 = vrcp.pop %v2137
  %v2294 = vmul.f32 %v2137, %v2293
  %v2295 = vsub.f32 1.0, %v2294
  %v2296 = vmul.f32 %v2293, %v2295
  %v2297 = vadd.f32 %v2293, %v2296
  %vm2298 = vweird.f32 %v2137
  %vm2299 = vweird.f32 %v2293
  %vm2300 = vmor %vm2298, %vm2299
  %v2301 = vsel %vm2300, %v2293, %v2297
  %v2302 = vand.u32 2147483647, %v2137
  %vm2303 = vcmp.eq.f32.partialorder %v2302, 8.507059e+37
  %v2304 = vand.u32 %v2137, 2147483648
  %v2305 = vor.u32 1.1754944e-38, %v2304
  %v2306 = vsel %vm2303, %v2305, %v2301
  %v2307 = vmul.f32 1.0, %v2306
  %v2308 = vrcp.pop %v2138
  %v2309 = vmul.f32 %v2138, %v2308
  %v2310 = vsub.f32 1.0, %v2309
  %v2311 = vmul.f32 %v2308, %v2310
  %v2312 = vadd.f32 %v2308, %v2311
  %vm2313 = vweird.f32 %v2138
  %vm2314 = vweird.f32 %v2308
  %vm2315 = vmor %vm2313, %vm2314
  %v2316 = vsel %vm2315, %v2308, %v2312
  %v2317 = vand.u32 2147483647, %v2138
  %vm2318 = vcmp.eq.f32.partialorder %v2317, 8.507059e+37
  %v2319 = vand.u32 %v2138, 2147483648
  %v2320 = vor.u32 1.1754944e-38, %v2319
  %v2321 = vsel %vm2318, %v2320, %v2316
  %v2322 = vmul.f32 1.0, %v2321
  %v2323 = vrcp.pop %v2139
  %v2324 = vmul.f32 %v2139, %v2323
  %v2325 = vsub.f32 1.0, %v2324
  %v2326 = vmul.f32 %v2323, %v2325
  %v2327 = vadd.f32 %v2323, %v2326
  %vm2328 = vweird.f32 %v2139
  %vm2329 = vweird.f32 %v2323
  %vm2330 = vmor %vm2328, %vm2329
  %v2331 = vsel %vm2330, %v2323, %v2327
  %v2332 = vand.u32 2147483647, %v2139
  %vm2333 = vcmp.eq.f32.partialorder %v2332, 8.507059e+37
  %v2334 = vand.u32 %v2139, 2147483648
  %v2335 = vor.u32 1.1754944e-38, %v2334
  %v2336 = vsel %vm2333, %v2335, %v2331
  %v2337 = vmul.f32 1.0, %v2336
  %v2338 = vrcp.pop %v2140
  %v2339 = vmul.f32 %v2140, %v2338
  %v2340 = vsub.f32 1.0, %v2339
  %v2341 = vmul.f32 %v2338, %v2340
  %v2342 = vadd.f32 %v2338, %v2341
  %vm2343 = vweird.f32 %v2140
  %vm2344 = vweird.f32 %v2338
  %vm2345 = vmor %vm2343, %vm2344
  %v2346 = vsel %vm2345, %v2338, %v2342
  %v2347 = vand.u32 2147483647, %v2140
  %vm2348 = vcmp.eq.f32.partialorder %v2347, 8.507059e+37
  %v2349 = vand.u32 %v2140, 2147483648
  %v2350 = vor.u32 1.1754944e-38, %v2349
  %v2351 = vsel %vm2348, %v2350, %v2346
  %v2352 = vmul.f32 1.0, %v2351
  %v2353 = vrcp.pop %v2141
  %v2354 = vmul.f32 %v2141, %v2353
  %v2355 = vsub.f32 1.0, %v2354
  %v2356 = vmul.f32 %v2353, %v2355
  %v2357 = vadd.f32 %v2353, %v2356
  %vm2358 = vweird.f32 %v2141
  %vm2359 = vweird.f32 %v2353
  %vm2360 = vmor %vm2358, %vm2359
  %v2361 = vsel %vm2360, %v2353, %v2357
  %v2362 = vand.u32 2147483647, %v2141
  %vm2363 = vcmp.eq.f32.partialorder %v2362, 8.507059e+37
  %v2364 = vand.u32 %v2141, 2147483648
  %v2365 = vor.u32 1.1754944e-38, %v2364
  %v2366 = vsel %vm2363, %v2365, %v2361
  %v2367 = vmul.f32 1.0, %v2366
  %v2368 = vrcp.pop %v2142
  %v2369 = vmul.f32 %v2142, %v2368
  %v2370 = vsub.f32 1.0, %v2369
  %v2371 = vmul.f32 %v2368, %v2370
  %v2372 = vadd.f32 %v2368, %v2371
  %vm2373 = vweird.f32 %v2142
  %vm2374 = vweird.f32 %v2368
  %vm2375 = vmor %vm2373, %vm2374
  %v2376 = vsel %vm2375, %v2368, %v2372
  %v2377 = vand.u32 2147483647, %v2142
  %vm2378 = vcmp.eq.f32.partialorder %v2377, 8.507059e+37
  %v2379 = vand.u32 %v2142, 2147483648
  %v2380 = vor.u32 1.1754944e-38, %v2379
  %v2381 = vsel %vm2378, %v2380, %v2376
  %v2382 = vmul.f32 1.0, %v2381
  %v2383 = vld [vmem:[#allocation2 + $0x300] sm:$0xff]
  %v2384 = vld [vmem:[#allocation2 + $0x308] sm:$0xff]
  %v2385 = vld [vmem:[#allocation2 + $0x310] sm:$0xff]
  %v2386 = vld [vmem:[#allocation2 + $0x318] sm:$0xff]
  %v2387 = vld [vmem:[#allocation2 + $0x320] sm:$0xff]
  %v2388 = vld [vmem:[#allocation2 + $0x328] sm:$0xff]
  %v2389 = vld [vmem:[#allocation2 + $0x330] sm:$0xff]
  %v2390 = vld [vmem:[#allocation2 + $0x338] sm:$0xff]
  %v2391 = vld [vmem:[#allocation2 + $0x340] sm:$0xff]
  %v2392 = vld [vmem:[#allocation2 + $0x348] sm:$0xff]
  %v2393 = vld [vmem:[#allocation2 + $0x350] sm:$0xff]
  %v2394 = vld [vmem:[#allocation2 + $0x358] sm:$0xff]
  %v2395 = vld [vmem:[#allocation2 + $0x360] sm:$0xff]
  %v2396 = vld [vmem:[#allocation2 + $0x368] sm:$0xff]
  %v2397 = vld [vmem:[#allocation2 + $0x370] sm:$0xff]
  %v2398 = vld [vmem:[#allocation2 + $0x378] sm:$0xff]
  %v2399 = vxor.u32 %v2383, 2147483648
  %v2400 = vxor.u32 %v2384, 2147483648
  %v2401 = vxor.u32 %v2385, 2147483648
  %v2402 = vxor.u32 %v2386, 2147483648
  %v2403 = vxor.u32 %v2387, 2147483648
  %v2404 = vxor.u32 %v2388, 2147483648
  %v2405 = vxor.u32 %v2389, 2147483648
  %v2406 = vxor.u32 %v2390, 2147483648
  %v2407 = vxor.u32 %v2391, 2147483648
  %v2408 = vxor.u32 %v2392, 2147483648
  %v2409 = vxor.u32 %v2393, 2147483648
  %v2410 = vxor.u32 %v2394, 2147483648
  %v2411 = vxor.u32 %v2395, 2147483648
  %v2412 = vxor.u32 %v2396, 2147483648
  %v2413 = vxor.u32 %v2397, 2147483648
  %v2414 = vxor.u32 %v2398, 2147483648
  %v2415 = vmul.f32 %v2399, 1.442695
  %v2416 = vpow.pop %v2415
  %v2417 = vmul.f32 %v2400, 1.442695
  %v2418 = vpow.pop %v2417
  %v2419 = vmul.f32 %v2401, 1.442695
  %v2420 = vpow.pop %v2419
  %v2421 = vmul.f32 %v2402, 1.442695
  %v2422 = vpow.pop %v2421
  %v2423 = vmul.f32 %v2403, 1.442695
  %v2424 = vpow.pop %v2423
  %v2425 = vmul.f32 %v2404, 1.442695
  %v2426 = vpow.pop %v2425
  %v2427 = vmul.f32 %v2405, 1.442695
  %v2428 = vpow.pop %v2427
  %v2429 = vmul.f32 %v2406, 1.442695
  %v2430 = vpow.pop %v2429
  %v2431 = vmul.f32 %v2407, 1.442695
  %v2432 = vpow.pop %v2431
  %v2433 = vmul.f32 %v2408, 1.442695
  %v2434 = vpow.pop %v2433
  %v2435 = vmul.f32 %v2409, 1.442695
  %v2436 = vpow.pop %v2435
  %v2437 = vmul.f32 %v2410, 1.442695
  %v2438 = vpow.pop %v2437
  %v2439 = vmul.f32 %v2411, 1.442695
  %v2440 = vpow.pop %v2439
  %v2441 = vmul.f32 %v2412, 1.442695
  %v2442 = vpow.pop %v2441
  %v2443 = vmul.f32 %v2413, 1.442695
  %v2444 = vpow.pop %v2443
  %v2445 = vmul.f32 %v2414, 1.442695
  %v2446 = vpow.pop %v2445
  %v2447 = vadd.f32 %v2416, 1.0
  %v2448 = vadd.f32 %v2418, 1.0
  %v2449 = vadd.f32 %v2420, 1.0
  %v2450 = vadd.f32 %v2422, 1.0
  %v2451 = vadd.f32 %v2424, 1.0
  %v2452 = vadd.f32 %v2426, 1.0
  %v2453 = vadd.f32 %v2428, 1.0
  %v2454 = vadd.f32 %v2430, 1.0
  %v2455 = vadd.f32 %v2432, 1.0
  %v2456 = vadd.f32 %v2434, 1.0
  %v2457 = vadd.f32 %v2436, 1.0
  %v2458 = vadd.f32 %v2438, 1.0
  %v2459 = vadd.f32 %v2440, 1.0
  %v2460 = vadd.f32 %v2442, 1.0
  %v2461 = vadd.f32 %v2444, 1.0
  %v2462 = vadd.f32 %v2446, 1.0
  %v2463 = vrcp.pop %v2447
  %v2464 = vmul.f32 %v2447, %v2463
  %v2465 = vsub.f32 1.0, %v2464
  %v2466 = vmul.f32 %v2463, %v2465
  %v2467 = vadd.f32 %v2463, %v2466
  %vm2468 = vweird.f32 %v2447
  %vm2469 = vweird.f32 %v2463
  %vm2470 = vmor %vm2468, %vm2469
  %v2471 = vsel %vm2470, %v2463, %v2467
  %v2472 = vand.u32 2147483647, %v2447
  %vm2473 = vcmp.eq.f32.partialorder %v2472, 8.507059e+37
  %v2474 = vand.u32 %v2447, 2147483648
  %v2475 = vor.u32 1.1754944e-38, %v2474
  %v2476 = vsel %vm2473, %v2475, %v2471
  %v2477 = vmul.f32 1.0, %v2476
  %v2478 = vrcp.pop %v2448
  %v2479 = vmul.f32 %v2448, %v2478
  %v2480 = vsub.f32 1.0, %v2479
  %v2481 = vmul.f32 %v2478, %v2480
  %v2482 = vadd.f32 %v2478, %v2481
  %vm2483 = vweird.f32 %v2448
  %vm2484 = vweird.f32 %v2478
  %vm2485 = vmor %vm2483, %vm2484
  %v2486 = vsel %vm2485, %v2478, %v2482
  %v2487 = vand.u32 2147483647, %v2448
  %vm2488 = vcmp.eq.f32.partialorder %v2487, 8.507059e+37
  %v2489 = vand.u32 %v2448, 2147483648
  %v2490 = vor.u32 1.1754944e-38, %v2489
  %v2491 = vsel %vm2488, %v2490, %v2486
  %v2492 = vmul.f32 1.0, %v2491
  %v2493 = vrcp.pop %v2449
  %v2494 = vmul.f32 %v2449, %v2493
  %v2495 = vsub.f32 1.0, %v2494
  %v2496 = vmul.f32 %v2493, %v2495
  %v2497 = vadd.f32 %v2493, %v2496
  %vm2498 = vweird.f32 %v2449
  %vm2499 = vweird.f32 %v2493
  %vm2500 = vmor %vm2498, %vm2499
  %v2501 = vsel %vm2500, %v2493, %v2497
  %v2502 = vand.u32 2147483647, %v2449
  %vm2503 = vcmp.eq.f32.partialorder %v2502, 8.507059e+37
  %v2504 = vand.u32 %v2449, 2147483648
  %v2505 = vor.u32 1.1754944e-38, %v2504
  %v2506 = vsel %vm2503, %v2505, %v2501
  %v2507 = vmul.f32 1.0, %v2506
  %v2508 = vrcp.pop %v2450
  %v2509 = vmul.f32 %v2450, %v2508
  %v2510 = vsub.f32 1.0, %v2509
  %v2511 = vmul.f32 %v2508, %v2510
  %v2512 = vadd.f32 %v2508, %v2511
  %vm2513 = vweird.f32 %v2450
  %vm2514 = vweird.f32 %v2508
  %vm2515 = vmor %vm2513, %vm2514
  %v2516 = vsel %vm2515, %v2508, %v2512
  %v2517 = vand.u32 2147483647, %v2450
  %vm2518 = vcmp.eq.f32.partialorder %v2517, 8.507059e+37
  %v2519 = vand.u32 %v2450, 2147483648
  %v2520 = vor.u32 1.1754944e-38, %v2519
  %v2521 = vsel %vm2518, %v2520, %v2516
  %v2522 = vmul.f32 1.0, %v2521
  %v2523 = vrcp.pop %v2451
  %v2524 = vmul.f32 %v2451, %v2523
  %v2525 = vsub.f32 1.0, %v2524
  %v2526 = vmul.f32 %v2523, %v2525
  %v2527 = vadd.f32 %v2523, %v2526
  %vm2528 = vweird.f32 %v2451
  %vm2529 = vweird.f32 %v2523
  %vm2530 = vmor %vm2528, %vm2529
  %v2531 = vsel %vm2530, %v2523, %v2527
  %v2532 = vand.u32 2147483647, %v2451
  %vm2533 = vcmp.eq.f32.partialorder %v2532, 8.507059e+37
  %v2534 = vand.u32 %v2451, 2147483648
  %v2535 = vor.u32 1.1754944e-38, %v2534
  %v2536 = vsel %vm2533, %v2535, %v2531
  %v2537 = vmul.f32 1.0, %v2536
  %v2538 = vrcp.pop %v2452
  %v2539 = vmul.f32 %v2452, %v2538
  %v2540 = vsub.f32 1.0, %v2539
  %v2541 = vmul.f32 %v2538, %v2540
  %v2542 = vadd.f32 %v2538, %v2541
  %vm2543 = vweird.f32 %v2452
  %vm2544 = vweird.f32 %v2538
  %vm2545 = vmor %vm2543, %vm2544
  %v2546 = vsel %vm2545, %v2538, %v2542
  %v2547 = vand.u32 2147483647, %v2452
  %vm2548 = vcmp.eq.f32.partialorder %v2547, 8.507059e+37
  %v2549 = vand.u32 %v2452, 2147483648
  %v2550 = vor.u32 1.1754944e-38, %v2549
  %v2551 = vsel %vm2548, %v2550, %v2546
  %v2552 = vmul.f32 1.0, %v2551
  %v2553 = vrcp.pop %v2453
  %v2554 = vmul.f32 %v2453, %v2553
  %v2555 = vsub.f32 1.0, %v2554
  %v2556 = vmul.f32 %v2553, %v2555
  %v2557 = vadd.f32 %v2553, %v2556
  %vm2558 = vweird.f32 %v2453
  %vm2559 = vweird.f32 %v2553
  %vm2560 = vmor %vm2558, %vm2559
  %v2561 = vsel %vm2560, %v2553, %v2557
  %v2562 = vand.u32 2147483647, %v2453
  %vm2563 = vcmp.eq.f32.partialorder %v2562, 8.507059e+37
  %v2564 = vand.u32 %v2453, 2147483648
  %v2565 = vor.u32 1.1754944e-38, %v2564
  %v2566 = vsel %vm2563, %v2565, %v2561
  %v2567 = vmul.f32 1.0, %v2566
  %v2568 = vrcp.pop %v2454
  %v2569 = vmul.f32 %v2454, %v2568
  %v2570 = vsub.f32 1.0, %v2569
  %v2571 = vmul.f32 %v2568, %v2570
  %v2572 = vadd.f32 %v2568, %v2571
  %vm2573 = vweird.f32 %v2454
  %vm2574 = vweird.f32 %v2568
  %vm2575 = vmor %vm2573, %vm2574
  %v2576 = vsel %vm2575, %v2568, %v2572
  %v2577 = vand.u32 2147483647, %v2454
  %vm2578 = vcmp.eq.f32.partialorder %v2577, 8.507059e+37
  %v2579 = vand.u32 %v2454, 2147483648
  %v2580 = vor.u32 1.1754944e-38, %v2579
  %v2581 = vsel %vm2578, %v2580, %v2576
  %v2582 = vmul.f32 1.0, %v2581
  %v2583 = vrcp.pop %v2455
  %v2584 = vmul.f32 %v2455, %v2583
  %v2585 = vsub.f32 1.0, %v2584
  %v2586 = vmul.f32 %v2583, %v2585
  %v2587 = vadd.f32 %v2583, %v2586
  %vm2588 = vweird.f32 %v2455
  %vm2589 = vweird.f32 %v2583
  %vm2590 = vmor %vm2588, %vm2589
  %v2591 = vsel %vm2590, %v2583, %v2587
  %v2592 = vand.u32 2147483647, %v2455
  %vm2593 = vcmp.eq.f32.partialorder %v2592, 8.507059e+37
  %v2594 = vand.u32 %v2455, 2147483648
  %v2595 = vor.u32 1.1754944e-38, %v2594
  %v2596 = vsel %vm2593, %v2595, %v2591
  %v2597 = vmul.f32 1.0, %v2596
  %v2598 = vrcp.pop %v2456
  %v2599 = vmul.f32 %v2456, %v2598
  %v2600 = vsub.f32 1.0, %v2599
  %v2601 = vmul.f32 %v2598, %v2600
  %v2602 = vadd.f32 %v2598, %v2601
  %vm2603 = vweird.f32 %v2456
  %vm2604 = vweird.f32 %v2598
  %vm2605 = vmor %vm2603, %vm2604
  %v2606 = vsel %vm2605, %v2598, %v2602
  %v2607 = vand.u32 2147483647, %v2456
  %vm2608 = vcmp.eq.f32.partialorder %v2607, 8.507059e+37
  %v2609 = vand.u32 %v2456, 2147483648
  %v2610 = vor.u32 1.1754944e-38, %v2609
  %v2611 = vsel %vm2608, %v2610, %v2606
  %v2612 = vmul.f32 1.0, %v2611
  %v2613 = vrcp.pop %v2457
  %v2614 = vmul.f32 %v2457, %v2613
  %v2615 = vsub.f32 1.0, %v2614
  %v2616 = vmul.f32 %v2613, %v2615
  %v2617 = vadd.f32 %v2613, %v2616
  %vm2618 = vweird.f32 %v2457
  %vm2619 = vweird.f32 %v2613
  %vm2620 = vmor %vm2618, %vm2619
  %v2621 = vsel %vm2620, %v2613, %v2617
  %v2622 = vand.u32 2147483647, %v2457
  %vm2623 = vcmp.eq.f32.partialorder %v2622, 8.507059e+37
  %v2624 = vand.u32 %v2457, 2147483648
  %v2625 = vor.u32 1.1754944e-38, %v2624
  %v2626 = vsel %vm2623, %v2625, %v2621
  %v2627 = vmul.f32 1.0, %v2626
  %v2628 = vrcp.pop %v2458
  %v2629 = vmul.f32 %v2458, %v2628
  %v2630 = vsub.f32 1.0, %v2629
  %v2631 = vmul.f32 %v2628, %v2630
  %v2632 = vadd.f32 %v2628, %v2631
  %vm2633 = vweird.f32 %v2458
  %vm2634 = vweird.f32 %v2628
  %vm2635 = vmor %vm2633, %vm2634
  %v2636 = vsel %vm2635, %v2628, %v2632
  %v2637 = vand.u32 2147483647, %v2458
  %vm2638 = vcmp.eq.f32.partialorder %v2637, 8.507059e+37
  %v2639 = vand.u32 %v2458, 2147483648
  %v2640 = vor.u32 1.1754944e-38, %v2639
  %v2641 = vsel %vm2638, %v2640, %v2636
  %v2642 = vmul.f32 1.0, %v2641
  %v2643 = vrcp.pop %v2459
  %v2644 = vmul.f32 %v2459, %v2643
  %v2645 = vsub.f32 1.0, %v2644
  %v2646 = vmul.f32 %v2643, %v2645
  %v2647 = vadd.f32 %v2643, %v2646
  %vm2648 = vweird.f32 %v2459
  %vm2649 = vweird.f32 %v2643
  %vm2650 = vmor %vm2648, %vm2649
  %v2651 = vsel %vm2650, %v2643, %v2647
  %v2652 = vand.u32 2147483647, %v2459
  %vm2653 = vcmp.eq.f32.partialorder %v2652, 8.507059e+37
  %v2654 = vand.u32 %v2459, 2147483648
  %v2655 = vor.u32 1.1754944e-38, %v2654
  %v2656 = vsel %vm2653, %v2655, %v2651
  %v2657 = vmul.f32 1.0, %v2656
  %v2658 = vrcp.pop %v2460
  %v2659 = vmul.f32 %v2460, %v2658
  %v2660 = vsub.f32 1.0, %v2659
  %v2661 = vmul.f32 %v2658, %v2660
  %v2662 = vadd.f32 %v2658, %v2661
  %vm2663 = vweird.f32 %v2460
  %vm2664 = vweird.f32 %v2658
  %vm2665 = vmor %vm2663, %vm2664
  %v2666 = vsel %vm2665, %v2658, %v2662
  %v2667 = vand.u32 2147483647, %v2460
  %vm2668 = vcmp.eq.f32.partialorder %v2667, 8.507059e+37
  %v2669 = vand.u32 %v2460, 2147483648
  %v2670 = vor.u32 1.1754944e-38, %v2669
  %v2671 = vsel %vm2668, %v2670, %v2666
  %v2672 = vmul.f32 1.0, %v2671
  %v2673 = vrcp.pop %v2461
  %v2674 = vmul.f32 %v2461, %v2673
  %v2675 = vsub.f32 1.0, %v2674
  %v2676 = vmul.f32 %v2673, %v2675
  %v2677 = vadd.f32 %v2673, %v2676
  %vm2678 = vweird.f32 %v2461
  %vm2679 = vweird.f32 %v2673
  %vm2680 = vmor %vm2678, %vm2679
  %v2681 = vsel %vm2680, %v2673, %v2677
  %v2682 = vand.u32 2147483647, %v2461
  %vm2683 = vcmp.eq.f32.partialorder %v2682, 8.507059e+37
  %v2684 = vand.u32 %v2461, 2147483648
  %v2685 = vor.u32 1.1754944e-38, %v2684
  %v2686 = vsel %vm2683, %v2685, %v2681
  %v2687 = vmul.f32 1.0, %v2686
  %v2688 = vrcp.pop %v2462
  %v2689 = vmul.f32 %v2462, %v2688
  %v2690 = vsub.f32 1.0, %v2689
  %v2691 = vmul.f32 %v2688, %v2690
  %v2692 = vadd.f32 %v2688, %v2691
  %vm2693 = vweird.f32 %v2462
  %vm2694 = vweird.f32 %v2688
  %vm2695 = vmor %vm2693, %vm2694
  %v2696 = vsel %vm2695, %v2688, %v2692
  %v2697 = vand.u32 2147483647, %v2462
  %vm2698 = vcmp.eq.f32.partialorder %v2697, 8.507059e+37
  %v2699 = vand.u32 %v2462, 2147483648
  %v2700 = vor.u32 1.1754944e-38, %v2699
  %v2701 = vsel %vm2698, %v2700, %v2696
  %v2702 = vmul.f32 1.0, %v2701
  %v2703 = vld [vmem:[%s2 + $0x20] sm:$0xff]
  %v2704 = vld [vmem:[%s2 + $0x28] sm:$0xff]
  %v2705 = vld [vmem:[%s2 + $0x30] sm:$0xff]
  %v2706 = vld [vmem:[%s2 + $0x38] sm:$0xff]
  %v2707 = vld [vmem:[#allocation2 + $0x580] sm:$0xff]
  %v2708 = vld [vmem:[#allocation2 + $0x588] sm:$0xff]
  %v2709 = vld [vmem:[#allocation2 + $0x590] sm:$0xff]
  %v2710 = vld [vmem:[#allocation2 + $0x598] sm:$0xff]
  %v2711 = vld [vmem:[#allocation2 + $0x5a0] sm:$0xff]
  %v2712 = vld [vmem:[#allocation2 + $0x5a8] sm:$0xff]
  %v2713 = vld [vmem:[#allocation2 + $0x5b0] sm:$0xff]
  %v2714 = vld [vmem:[#allocation2 + $0x5b8] sm:$0xff]
  %v2715 = vld [vmem:[#allocation2 + $0x5c0] sm:$0xff]
  %v2716 = vld [vmem:[#allocation2 + $0x5c8] sm:$0xff]
  %v2717 = vld [vmem:[#allocation2 + $0x5d0] sm:$0xff]
  %v2718 = vld [vmem:[#allocation2 + $0x5d8] sm:$0xff]
  %v2719 = vld [vmem:[#allocation2 + $0x5e0] sm:$0xff]
  %v2720 = vld [vmem:[#allocation2 + $0x5e8] sm:$0xff]
  %v2721 = vld [vmem:[#allocation2 + $0x5f0] sm:$0xff]
  %v2722 = vld [vmem:[#allocation2 + $0x5f8] sm:$0xff]
  %2724 = vset.pattern.permute.xlu0 0
  %2725 = vperm.xlu0 %2724, %v2703
  %v2726 = vpop.permute.xlu0 %2725
  %2729 = vset.pattern.permute.xlu0 0
  %2730 = vperm.xlu0 %2729, %v2704
  %v2731 = vpop.permute.xlu0 %2730
  %2734 = vset.pattern.permute.xlu0 0
  %2735 = vperm.xlu0 %2734, %v2705
  %v2736 = vpop.permute.xlu0 %2735
  %2739 = vset.pattern.permute.xlu0 0
  %2740 = vperm.xlu0 %2739, %v2706
  %v2741 = vpop.permute.xlu0 %2740
  %v2743 = vmul.f32 %v2477, %v2726
  %v2744 = vmul.f32 %v2492, %v2726
  %v2745 = vmul.f32 %v2507, %v2726
  %v2746 = vmul.f32 %v2522, %v2726
  %v2747 = vmul.f32 %v2537, %v2731
  %v2748 = vmul.f32 %v2552, %v2731
  %v2749 = vmul.f32 %v2567, %v2731
  %v2750 = vmul.f32 %v2582, %v2731
  %v2751 = vmul.f32 %v2597, %v2736
  %v2752 = vmul.f32 %v2612, %v2736
  %v2753 = vmul.f32 %v2627, %v2736
  %v2754 = vmul.f32 %v2642, %v2736
  %v2755 = vmul.f32 %v2657, %v2741
  %v2756 = vmul.f32 %v2672, %v2741
  %v2757 = vmul.f32 %v2687, %v2741
  %v2758 = vmul.f32 %v2702, %v2741
  %v2759 = vadd.f32 %v2707, %v2743
  %v2760 = vadd.f32 %v2708, %v2744
  %v2761 = vadd.f32 %v2709, %v2745
  %v2762 = vadd.f32 %v2710, %v2746
  %v2763 = vadd.f32 %v2711, %v2747
  %v2764 = vadd.f32 %v2712, %v2748
  %v2765 = vadd.f32 %v2713, %v2749
  %v2766 = vadd.f32 %v2714, %v2750
  %v2767 = vadd.f32 %v2715, %v2751
  %v2768 = vadd.f32 %v2716, %v2752
  %v2769 = vadd.f32 %v2717, %v2753
  %v2770 = vadd.f32 %v2718, %v2754
  %v2771 = vadd.f32 %v2719, %v2755
  %v2772 = vadd.f32 %v2720, %v2756
  %v2773 = vadd.f32 %v2721, %v2757
  %v2774 = vadd.f32 %v2722, %v2758
  %v2775 = vtanh.pop %v2759
  %v2776 = vtanh.pop %v2760
  %v2777 = vtanh.pop %v2761
  %v2778 = vtanh.pop %v2762
  %v2779 = vtanh.pop %v2763
  %v2780 = vtanh.pop %v2764
  %v2781 = vtanh.pop %v2765
  %v2782 = vtanh.pop %v2766
  %v2783 = vtanh.pop %v2767
  %v2784 = vtanh.pop %v2768
  %v2785 = vtanh.pop %v2769
  %v2786 = vtanh.pop %v2770
  %v2787 = vtanh.pop %v2771
  %v2788 = vtanh.pop %v2772
  %v2789 = vtanh.pop %v2773
  %v2790 = vtanh.pop %v2774
  %v2791 = vsub.f32 1.0, %v2157
  %v2792 = vsub.f32 1.0, %v2172
  %v2793 = vsub.f32 1.0, %v2187
  %v2794 = vsub.f32 1.0, %v2202
  %v2795 = vsub.f32 1.0, %v2217
  %v2796 = vsub.f32 1.0, %v2232
  %v2797 = vsub.f32 1.0, %v2247
  %v2798 = vsub.f32 1.0, %v2262
  %v2799 = vsub.f32 1.0, %v2277
  %v2800 = vsub.f32 1.0, %v2292
  %v2801 = vsub.f32 1.0, %v2307
  %v2802 = vsub.f32 1.0, %v2322
  %v2803 = vsub.f32 1.0, %v2337
  %v2804 = vsub.f32 1.0, %v2352
  %v2805 = vsub.f32 1.0, %v2367
  %v2806 = vsub.f32 1.0, %v2382
  %v2807 = vmul.f32 %v2791, %v2775
  %v2808 = vmul.f32 %v2792, %v2776
  %v2809 = vmul.f32 %v2793, %v2777
  %v2810 = vmul.f32 %v2794, %v2778
  %v2811 = vmul.f32 %v2795, %v2779
  %v2812 = vmul.f32 %v2796, %v2780
  %v2813 = vmul.f32 %v2797, %v2781
  %v2814 = vmul.f32 %v2798, %v2782
  %v2815 = vmul.f32 %v2799, %v2783
  %v2816 = vmul.f32 %v2800, %v2784
  %v2817 = vmul.f32 %v2801, %v2785
  %v2818 = vmul.f32 %v2802, %v2786
  %v2819 = vmul.f32 %v2803, %v2787
  %v2820 = vmul.f32 %v2804, %v2788
  %v2821 = vmul.f32 %v2805, %v2789
  %v2822 = vmul.f32 %v2806, %v2790
  %v2823 = vpack.c.bf16 %v2808, %v2807
  %v2824 = vpack.c.bf16 %v2810, %v2809
  %v2825 = vpack.c.bf16 %v2812, %v2811
  %v2826 = vpack.c.bf16 %v2814, %v2813
  %v2827 = vpack.c.bf16 %v2816, %v2815
  %v2828 = vpack.c.bf16 %v2818, %v2817
  %v2829 = vpack.c.bf16 %v2820, %v2819
  %v2830 = vpack.c.bf16 %v2822, %v2821
  %2831 = vst [vmem:[#allocation3 + $0x40] sm:$0xff] %v2823
  %2832 = vst [vmem:[#allocation3 + $0x48] sm:$0xff] %v2824
  %2833 = vst [vmem:[#allocation3 + $0x50] sm:$0xff] %v2825
  %2834 = vst [vmem:[#allocation3 + $0x58] sm:$0xff] %v2826
  %2835 = vst [vmem:[#allocation3 + $0x60] sm:$0xff] %v2827
  %2836 = vst [vmem:[#allocation3 + $0x68] sm:$0xff] %v2828
  %2837 = vst [vmem:[#allocation3 + $0x70] sm:$0xff] %v2829
  %2838 = vst [vmem:[#allocation3 + $0x78] sm:$0xff] %v2830
  %2839 = vst [vmem:[%s7 + $0x40] sm:$0xff] %v2809
  %2840 = vst [vmem:[%s7 + $0x48] sm:$0xff] %v2810
  %2841 = vst [vmem:[%s7 + $0x50] sm:$0xff] %v2813
  %2842 = vst [vmem:[%s7 + $0x58] sm:$0xff] %v2814
  %2843 = vst [vmem:[%s7 + $0x60] sm:$0xff] %v2817
  %2844 = vst [vmem:[%s7 + $0x68] sm:$0xff] %v2818
  %2845 = vst [vmem:[%s7 + $0x70] sm:$0xff] %v2821
  %2846 = vst [vmem:[%s7 + $0x78] sm:$0xff] %v2822
  %v2847 = vld [vmem:[#allocation2 + $0x100] sm:$0xff]
  %v2848 = vld [vmem:[#allocation2 + $0x108] sm:$0xff]
  %v2849 = vld [vmem:[#allocation2 + $0x110] sm:$0xff]
  %v2850 = vld [vmem:[#allocation2 + $0x118] sm:$0xff]
  %v2851 = vld [vmem:[#allocation2 + $0x120] sm:$0xff]
  %v2852 = vld [vmem:[#allocation2 + $0x128] sm:$0xff]
  %v2853 = vld [vmem:[#allocation2 + $0x130] sm:$0xff]
  %v2854 = vld [vmem:[#allocation2 + $0x138] sm:$0xff]
  %v2855 = vld [vmem:[#allocation2 + $0x140] sm:$0xff]
  %v2856 = vld [vmem:[#allocation2 + $0x148] sm:$0xff]
  %v2857 = vld [vmem:[#allocation2 + $0x150] sm:$0xff]
  %v2858 = vld [vmem:[#allocation2 + $0x158] sm:$0xff]
  %v2859 = vld [vmem:[#allocation2 + $0x160] sm:$0xff]
  %v2860 = vld [vmem:[#allocation2 + $0x168] sm:$0xff]
  %v2861 = vld [vmem:[#allocation2 + $0x170] sm:$0xff]
  %v2862 = vld [vmem:[#allocation2 + $0x178] sm:$0xff]
  %v2863 = vxor.u32 %v2847, 2147483648
  %v2864 = vxor.u32 %v2848, 2147483648
  %v2865 = vxor.u32 %v2849, 2147483648
  %v2866 = vxor.u32 %v2850, 2147483648
  %v2867 = vxor.u32 %v2851, 2147483648
  %v2868 = vxor.u32 %v2852, 2147483648
  %v2869 = vxor.u32 %v2853, 2147483648
  %v2870 = vxor.u32 %v2854, 2147483648
  %v2871 = vxor.u32 %v2855, 2147483648
  %v2872 = vxor.u32 %v2856, 2147483648
  %v2873 = vxor.u32 %v2857, 2147483648
  %v2874 = vxor.u32 %v2858, 2147483648
  %v2875 = vxor.u32 %v2859, 2147483648
  %v2876 = vxor.u32 %v2860, 2147483648
  %v2877 = vxor.u32 %v2861, 2147483648
  %v2878 = vxor.u32 %v2862, 2147483648
  %v2879 = vmul.f32 %v2863, 1.442695
  %v2880 = vpow.pop %v2879
  %v2881 = vmul.f32 %v2864, 1.442695
  %v2882 = vpow.pop %v2881
  %v2883 = vmul.f32 %v2865, 1.442695
  %v2884 = vpow.pop %v2883
  %v2885 = vmul.f32 %v2866, 1.442695
  %v2886 = vpow.pop %v2885
  %v2887 = vmul.f32 %v2867, 1.442695
  %v2888 = vpow.pop %v2887
  %v2889 = vmul.f32 %v2868, 1.442695
  %v2890 = vpow.pop %v2889
  %v2891 = vmul.f32 %v2869, 1.442695
  %v2892 = vpow.pop %v2891
  %v2893 = vmul.f32 %v2870, 1.442695
  %v2894 = vpow.pop %v2893
  %v2895 = vmul.f32 %v2871, 1.442695
  %v2896 = vpow.pop %v2895
  %v2897 = vmul.f32 %v2872, 1.442695
  %v2898 = vpow.pop %v2897
  %v2899 = vmul.f32 %v2873, 1.442695
  %v2900 = vpow.pop %v2899
  %v2901 = vmul.f32 %v2874, 1.442695
  %v2902 = vpow.pop %v2901
  %v2903 = vmul.f32 %v2875, 1.442695
  %v2904 = vpow.pop %v2903
  %v2905 = vmul.f32 %v2876, 1.442695
  %v2906 = vpow.pop %v2905
  %v2907 = vmul.f32 %v2877, 1.442695
  %v2908 = vpow.pop %v2907
  %v2909 = vmul.f32 %v2878, 1.442695
  %v2910 = vpow.pop %v2909
  %v2911 = vadd.f32 %v2880, 1.0
  %v2912 = vadd.f32 %v2882, 1.0
  %v2913 = vadd.f32 %v2884, 1.0
  %v2914 = vadd.f32 %v2886, 1.0
  %v2915 = vadd.f32 %v2888, 1.0
  %v2916 = vadd.f32 %v2890, 1.0
  %v2917 = vadd.f32 %v2892, 1.0
  %v2918 = vadd.f32 %v2894, 1.0
  %v2919 = vadd.f32 %v2896, 1.0
  %v2920 = vadd.f32 %v2898, 1.0
  %v2921 = vadd.f32 %v2900, 1.0
  %v2922 = vadd.f32 %v2902, 1.0
  %v2923 = vadd.f32 %v2904, 1.0
  %v2924 = vadd.f32 %v2906, 1.0
  %v2925 = vadd.f32 %v2908, 1.0
  %v2926 = vadd.f32 %v2910, 1.0
  %v2927 = vrcp.pop %v2911
  %v2928 = vmul.f32 %v2911, %v2927
  %v2929 = vsub.f32 1.0, %v2928
  %v2930 = vmul.f32 %v2927, %v2929
  %v2931 = vadd.f32 %v2927, %v2930
  %vm2932 = vweird.f32 %v2911
  %vm2933 = vweird.f32 %v2927
  %vm2934 = vmor %vm2932, %vm2933
  %v2935 = vsel %vm2934, %v2927, %v2931
  %v2936 = vand.u32 2147483647, %v2911
  %vm2937 = vcmp.eq.f32.partialorder %v2936, 8.507059e+37
  %v2938 = vand.u32 %v2911, 2147483648
  %v2939 = vor.u32 1.1754944e-38, %v2938
  %v2940 = vsel %vm2937, %v2939, %v2935
  %v2941 = vmul.f32 1.0, %v2940
  %v2942 = vrcp.pop %v2912
  %v2943 = vmul.f32 %v2912, %v2942
  %v2944 = vsub.f32 1.0, %v2943
  %v2945 = vmul.f32 %v2942, %v2944
  %v2946 = vadd.f32 %v2942, %v2945
  %vm2947 = vweird.f32 %v2912
  %vm2948 = vweird.f32 %v2942
  %vm2949 = vmor %vm2947, %vm2948
  %v2950 = vsel %vm2949, %v2942, %v2946
  %v2951 = vand.u32 2147483647, %v2912
  %vm2952 = vcmp.eq.f32.partialorder %v2951, 8.507059e+37
  %v2953 = vand.u32 %v2912, 2147483648
  %v2954 = vor.u32 1.1754944e-38, %v2953
  %v2955 = vsel %vm2952, %v2954, %v2950
  %v2956 = vmul.f32 1.0, %v2955
  %v2957 = vrcp.pop %v2913
  %v2958 = vmul.f32 %v2913, %v2957
  %v2959 = vsub.f32 1.0, %v2958
  %v2960 = vmul.f32 %v2957, %v2959
  %v2961 = vadd.f32 %v2957, %v2960
  %vm2962 = vweird.f32 %v2913
  %vm2963 = vweird.f32 %v2957
  %vm2964 = vmor %vm2962, %vm2963
  %v2965 = vsel %vm2964, %v2957, %v2961
  %v2966 = vand.u32 2147483647, %v2913
  %vm2967 = vcmp.eq.f32.partialorder %v2966, 8.507059e+37
  %v2968 = vand.u32 %v2913, 2147483648
  %v2969 = vor.u32 1.1754944e-38, %v2968
  %v2970 = vsel %vm2967, %v2969, %v2965
  %v2971 = vmul.f32 1.0, %v2970
  %v2972 = vrcp.pop %v2914
  %v2973 = vmul.f32 %v2914, %v2972
  %v2974 = vsub.f32 1.0, %v2973
  %v2975 = vmul.f32 %v2972, %v2974
  %v2976 = vadd.f32 %v2972, %v2975
  %vm2977 = vweird.f32 %v2914
  %vm2978 = vweird.f32 %v2972
  %vm2979 = vmor %vm2977, %vm2978
  %v2980 = vsel %vm2979, %v2972, %v2976
  %v2981 = vand.u32 2147483647, %v2914
  %vm2982 = vcmp.eq.f32.partialorder %v2981, 8.507059e+37
  %v2983 = vand.u32 %v2914, 2147483648
  %v2984 = vor.u32 1.1754944e-38, %v2983
  %v2985 = vsel %vm2982, %v2984, %v2980
  %v2986 = vmul.f32 1.0, %v2985
  %v2987 = vrcp.pop %v2915
  %v2988 = vmul.f32 %v2915, %v2987
  %v2989 = vsub.f32 1.0, %v2988
  %v2990 = vmul.f32 %v2987, %v2989
  %v2991 = vadd.f32 %v2987, %v2990
  %vm2992 = vweird.f32 %v2915
  %vm2993 = vweird.f32 %v2987
  %vm2994 = vmor %vm2992, %vm2993
  %v2995 = vsel %vm2994, %v2987, %v2991
  %v2996 = vand.u32 2147483647, %v2915
  %vm2997 = vcmp.eq.f32.partialorder %v2996, 8.507059e+37
  %v2998 = vand.u32 %v2915, 2147483648
  %v2999 = vor.u32 1.1754944e-38, %v2998
  %v3000 = vsel %vm2997, %v2999, %v2995
  %v3001 = vmul.f32 1.0, %v3000
  %v3002 = vrcp.pop %v2916
  %v3003 = vmul.f32 %v2916, %v3002
  %v3004 = vsub.f32 1.0, %v3003
  %v3005 = vmul.f32 %v3002, %v3004
  %v3006 = vadd.f32 %v3002, %v3005
  %vm3007 = vweird.f32 %v2916
  %vm3008 = vweird.f32 %v3002
  %vm3009 = vmor %vm3007, %vm3008
  %v3010 = vsel %vm3009, %v3002, %v3006
  %v3011 = vand.u32 2147483647, %v2916
  %vm3012 = vcmp.eq.f32.partialorder %v3011, 8.507059e+37
  %v3013 = vand.u32 %v2916, 2147483648
  %v3014 = vor.u32 1.1754944e-38, %v3013
  %v3015 = vsel %vm3012, %v3014, %v3010
  %v3016 = vmul.f32 1.0, %v3015
  %v3017 = vrcp.pop %v2917
  %v3018 = vmul.f32 %v2917, %v3017
  %v3019 = vsub.f32 1.0, %v3018
  %v3020 = vmul.f32 %v3017, %v3019
  %v3021 = vadd.f32 %v3017, %v3020
  %vm3022 = vweird.f32 %v2917
  %vm3023 = vweird.f32 %v3017
  %vm3024 = vmor %vm3022, %vm3023
  %v3025 = vsel %vm3024, %v3017, %v3021
  %v3026 = vand.u32 2147483647, %v2917
  %vm3027 = vcmp.eq.f32.partialorder %v3026, 8.507059e+37
  %v3028 = vand.u32 %v2917, 2147483648
  %v3029 = vor.u32 1.1754944e-38, %v3028
  %v3030 = vsel %vm3027, %v3029, %v3025
  %v3031 = vmul.f32 1.0, %v3030
  %v3032 = vrcp.pop %v2918
  %v3033 = vmul.f32 %v2918, %v3032
  %v3034 = vsub.f32 1.0, %v3033
  %v3035 = vmul.f32 %v3032, %v3034
  %v3036 = vadd.f32 %v3032, %v3035
  %vm3037 = vweird.f32 %v2918
  %vm3038 = vweird.f32 %v3032
  %vm3039 = vmor %vm3037, %vm3038
  %v3040 = vsel %vm3039, %v3032, %v3036
  %v3041 = vand.u32 2147483647, %v2918
  %vm3042 = vcmp.eq.f32.partialorder %v3041, 8.507059e+37
  %v3043 = vand.u32 %v2918, 2147483648
  %v3044 = vor.u32 1.1754944e-38, %v3043
  %v3045 = vsel %vm3042, %v3044, %v3040
  %v3046 = vmul.f32 1.0, %v3045
  %v3047 = vrcp.pop %v2919
  %v3048 = vmul.f32 %v2919, %v3047
  %v3049 = vsub.f32 1.0, %v3048
  %v3050 = vmul.f32 %v3047, %v3049
  %v3051 = vadd.f32 %v3047, %v3050
  %vm3052 = vweird.f32 %v2919
  %vm3053 = vweird.f32 %v3047
  %vm3054 = vmor %vm3052, %vm3053
  %v3055 = vsel %vm3054, %v3047, %v3051
  %v3056 = vand.u32 2147483647, %v2919
  %vm3057 = vcmp.eq.f32.partialorder %v3056, 8.507059e+37
  %v3058 = vand.u32 %v2919, 2147483648
  %v3059 = vor.u32 1.1754944e-38, %v3058
  %v3060 = vsel %vm3057, %v3059, %v3055
  %v3061 = vmul.f32 1.0, %v3060
  %v3062 = vrcp.pop %v2920
  %v3063 = vmul.f32 %v2920, %v3062
  %v3064 = vsub.f32 1.0, %v3063
  %v3065 = vmul.f32 %v3062, %v3064
  %v3066 = vadd.f32 %v3062, %v3065
  %vm3067 = vweird.f32 %v2920
  %vm3068 = vweird.f32 %v3062
  %vm3069 = vmor %vm3067, %vm3068
  %v3070 = vsel %vm3069, %v3062, %v3066
  %v3071 = vand.u32 2147483647, %v2920
  %vm3072 = vcmp.eq.f32.partialorder %v3071, 8.507059e+37
  %v3073 = vand.u32 %v2920, 2147483648
  %v3074 = vor.u32 1.1754944e-38, %v3073
  %v3075 = vsel %vm3072, %v3074, %v3070
  %v3076 = vmul.f32 1.0, %v3075
  %v3077 = vrcp.pop %v2921
  %v3078 = vmul.f32 %v2921, %v3077
  %v3079 = vsub.f32 1.0, %v3078
  %v3080 = vmul.f32 %v3077, %v3079
  %v3081 = vadd.f32 %v3077, %v3080
  %vm3082 = vweird.f32 %v2921
  %vm3083 = vweird.f32 %v3077
  %vm3084 = vmor %vm3082, %vm3083
  %v3085 = vsel %vm3084, %v3077, %v3081
  %v3086 = vand.u32 2147483647, %v2921
  %vm3087 = vcmp.eq.f32.partialorder %v3086, 8.507059e+37
  %v3088 = vand.u32 %v2921, 2147483648
  %v3089 = vor.u32 1.1754944e-38, %v3088
  %v3090 = vsel %vm3087, %v3089, %v3085
  %v3091 = vmul.f32 1.0, %v3090
  %v3092 = vrcp.pop %v2922
  %v3093 = vmul.f32 %v2922, %v3092
  %v3094 = vsub.f32 1.0, %v3093
  %v3095 = vmul.f32 %v3092, %v3094
  %v3096 = vadd.f32 %v3092, %v3095
  %vm3097 = vweird.f32 %v2922
  %vm3098 = vweird.f32 %v3092
  %vm3099 = vmor %vm3097, %vm3098
  %v3100 = vsel %vm3099, %v3092, %v3096
  %v3101 = vand.u32 2147483647, %v2922
  %vm3102 = vcmp.eq.f32.partialorder %v3101, 8.507059e+37
  %v3103 = vand.u32 %v2922, 2147483648
  %v3104 = vor.u32 1.1754944e-38, %v3103
  %v3105 = vsel %vm3102, %v3104, %v3100
  %v3106 = vmul.f32 1.0, %v3105
  %v3107 = vrcp.pop %v2923
  %v3108 = vmul.f32 %v2923, %v3107
  %v3109 = vsub.f32 1.0, %v3108
  %v3110 = vmul.f32 %v3107, %v3109
  %v3111 = vadd.f32 %v3107, %v3110
  %vm3112 = vweird.f32 %v2923
  %vm3113 = vweird.f32 %v3107
  %vm3114 = vmor %vm3112, %vm3113
  %v3115 = vsel %vm3114, %v3107, %v3111
  %v3116 = vand.u32 2147483647, %v2923
  %vm3117 = vcmp.eq.f32.partialorder %v3116, 8.507059e+37
  %v3118 = vand.u32 %v2923, 2147483648
  %v3119 = vor.u32 1.1754944e-38, %v3118
  %v3120 = vsel %vm3117, %v3119, %v3115
  %v3121 = vmul.f32 1.0, %v3120
  %v3122 = vrcp.pop %v2924
  %v3123 = vmul.f32 %v2924, %v3122
  %v3124 = vsub.f32 1.0, %v3123
  %v3125 = vmul.f32 %v3122, %v3124
  %v3126 = vadd.f32 %v3122, %v3125
  %vm3127 = vweird.f32 %v2924
  %vm3128 = vweird.f32 %v3122
  %vm3129 = vmor %vm3127, %vm3128
  %v3130 = vsel %vm3129, %v3122, %v3126
  %v3131 = vand.u32 2147483647, %v2924
  %vm3132 = vcmp.eq.f32.partialorder %v3131, 8.507059e+37
  %v3133 = vand.u32 %v2924, 2147483648
  %v3134 = vor.u32 1.1754944e-38, %v3133
  %v3135 = vsel %vm3132, %v3134, %v3130
  %v3136 = vmul.f32 1.0, %v3135
  %v3137 = vrcp.pop %v2925
  %v3138 = vmul.f32 %v2925, %v3137
  %v3139 = vsub.f32 1.0, %v3138
  %v3140 = vmul.f32 %v3137, %v3139
  %v3141 = vadd.f32 %v3137, %v3140
  %vm3142 = vweird.f32 %v2925
  %vm3143 = vweird.f32 %v3137
  %vm3144 = vmor %vm3142, %vm3143
  %v3145 = vsel %vm3144, %v3137, %v3141
  %v3146 = vand.u32 2147483647, %v2925
  %vm3147 = vcmp.eq.f32.partialorder %v3146, 8.507059e+37
  %v3148 = vand.u32 %v2925, 2147483648
  %v3149 = vor.u32 1.1754944e-38, %v3148
  %v3150 = vsel %vm3147, %v3149, %v3145
  %v3151 = vmul.f32 1.0, %v3150
  %v3152 = vrcp.pop %v2926
  %v3153 = vmul.f32 %v2926, %v3152
  %v3154 = vsub.f32 1.0, %v3153
  %v3155 = vmul.f32 %v3152, %v3154
  %v3156 = vadd.f32 %v3152, %v3155
  %vm3157 = vweird.f32 %v2926
  %vm3158 = vweird.f32 %v3152
  %vm3159 = vmor %vm3157, %vm3158
  %v3160 = vsel %vm3159, %v3152, %v3156
  %v3161 = vand.u32 2147483647, %v2926
  %vm3162 = vcmp.eq.f32.partialorder %v3161, 8.507059e+37
  %v3163 = vand.u32 %v2926, 2147483648
  %v3164 = vor.u32 1.1754944e-38, %v3163
  %v3165 = vsel %vm3162, %v3164, %v3160
  %v3166 = vmul.f32 1.0, %v3165
  %v3167 = vld [vmem:[#allocation2 + $0x380] sm:$0xff]
  %v3168 = vld [vmem:[#allocation2 + $0x388] sm:$0xff]
  %v3169 = vld [vmem:[#allocation2 + $0x390] sm:$0xff]
  %v3170 = vld [vmem:[#allocation2 + $0x398] sm:$0xff]
  %v3171 = vld [vmem:[#allocation2 + $0x3a0] sm:$0xff]
  %v3172 = vld [vmem:[#allocation2 + $0x3a8] sm:$0xff]
  %v3173 = vld [vmem:[#allocation2 + $0x3b0] sm:$0xff]
  %v3174 = vld [vmem:[#allocation2 + $0x3b8] sm:$0xff]
  %v3175 = vld [vmem:[#allocation2 + $0x3c0] sm:$0xff]
  %v3176 = vld [vmem:[#allocation2 + $0x3c8] sm:$0xff]
  %v3177 = vld [vmem:[#allocation2 + $0x3d0] sm:$0xff]
  %v3178 = vld [vmem:[#allocation2 + $0x3d8] sm:$0xff]
  %v3179 = vld [vmem:[#allocation2 + $0x3e0] sm:$0xff]
  %v3180 = vld [vmem:[#allocation2 + $0x3e8] sm:$0xff]
  %v3181 = vld [vmem:[#allocation2 + $0x3f0] sm:$0xff]
  %v3182 = vld [vmem:[#allocation2 + $0x3f8] sm:$0xff]
  %v3183 = vxor.u32 %v3167, 2147483648
  %v3184 = vxor.u32 %v3168, 2147483648
  %v3185 = vxor.u32 %v3169, 2147483648
  %v3186 = vxor.u32 %v3170, 2147483648
  %v3187 = vxor.u32 %v3171, 2147483648
  %v3188 = vxor.u32 %v3172, 2147483648
  %v3189 = vxor.u32 %v3173, 2147483648
  %v3190 = vxor.u32 %v3174, 2147483648
  %v3191 = vxor.u32 %v3175, 2147483648
  %v3192 = vxor.u32 %v3176, 2147483648
  %v3193 = vxor.u32 %v3177, 2147483648
  %v3194 = vxor.u32 %v3178, 2147483648
  %v3195 = vxor.u32 %v3179, 2147483648
  %v3196 = vxor.u32 %v3180, 2147483648
  %v3197 = vxor.u32 %v3181, 2147483648
  %v3198 = vxor.u32 %v3182, 2147483648
  %v3199 = vmul.f32 %v3183, 1.442695
  %v3200 = vpow.pop %v3199
  %v3201 = vmul.f32 %v3184, 1.442695
  %v3202 = vpow.pop %v3201
  %v3203 = vmul.f32 %v3185, 1.442695
  %v3204 = vpow.pop %v3203
  %v3205 = vmul.f32 %v3186, 1.442695
  %v3206 = vpow.pop %v3205
  %v3207 = vmul.f32 %v3187, 1.442695
  %v3208 = vpow.pop %v3207
  %v3209 = vmul.f32 %v3188, 1.442695
  %v3210 = vpow.pop %v3209
  %v3211 = vmul.f32 %v3189, 1.442695
  %v3212 = vpow.pop %v3211
  %v3213 = vmul.f32 %v3190, 1.442695
  %v3214 = vpow.pop %v3213
  %v3215 = vmul.f32 %v3191, 1.442695
  %v3216 = vpow.pop %v3215
  %v3217 = vmul.f32 %v3192, 1.442695
  %v3218 = vpow.pop %v3217
  %v3219 = vmul.f32 %v3193, 1.442695
  %v3220 = vpow.pop %v3219
  %v3221 = vmul.f32 %v3194, 1.442695
  %v3222 = vpow.pop %v3221
  %v3223 = vmul.f32 %v3195, 1.442695
  %v3224 = vpow.pop %v3223
  %v3225 = vmul.f32 %v3196, 1.442695
  %v3226 = vpow.pop %v3225
  %v3227 = vmul.f32 %v3197, 1.442695
  %v3228 = vpow.pop %v3227
  %v3229 = vmul.f32 %v3198, 1.442695
  %v3230 = vpow.pop %v3229
  %v3231 = vadd.f32 %v3200, 1.0
  %v3232 = vadd.f32 %v3202, 1.0
  %v3233 = vadd.f32 %v3204, 1.0
  %v3234 = vadd.f32 %v3206, 1.0
  %v3235 = vadd.f32 %v3208, 1.0
  %v3236 = vadd.f32 %v3210, 1.0
  %v3237 = vadd.f32 %v3212, 1.0
  %v3238 = vadd.f32 %v3214, 1.0
  %v3239 = vadd.f32 %v3216, 1.0
  %v3240 = vadd.f32 %v3218, 1.0
  %v3241 = vadd.f32 %v3220, 1.0
  %v3242 = vadd.f32 %v3222, 1.0
  %v3243 = vadd.f32 %v3224, 1.0
  %v3244 = vadd.f32 %v3226, 1.0
  %v3245 = vadd.f32 %v3228, 1.0
  %v3246 = vadd.f32 %v3230, 1.0
  %v3247 = vrcp.pop %v3231
  %v3248 = vmul.f32 %v3231, %v3247
  %v3249 = vsub.f32 1.0, %v3248
  %v3250 = vmul.f32 %v3247, %v3249
  %v3251 = vadd.f32 %v3247, %v3250
  %vm3252 = vweird.f32 %v3231
  %vm3253 = vweird.f32 %v3247
  %vm3254 = vmor %vm3252, %vm3253
  %v3255 = vsel %vm3254, %v3247, %v3251
  %v3256 = vand.u32 2147483647, %v3231
  %vm3257 = vcmp.eq.f32.partialorder %v3256, 8.507059e+37
  %v3258 = vand.u32 %v3231, 2147483648
  %v3259 = vor.u32 1.1754944e-38, %v3258
  %v3260 = vsel %vm3257, %v3259, %v3255
  %v3261 = vmul.f32 1.0, %v3260
  %v3262 = vrcp.pop %v3232
  %v3263 = vmul.f32 %v3232, %v3262
  %v3264 = vsub.f32 1.0, %v3263
  %v3265 = vmul.f32 %v3262, %v3264
  %v3266 = vadd.f32 %v3262, %v3265
  %vm3267 = vweird.f32 %v3232
  %vm3268 = vweird.f32 %v3262
  %vm3269 = vmor %vm3267, %vm3268
  %v3270 = vsel %vm3269, %v3262, %v3266
  %v3271 = vand.u32 2147483647, %v3232
  %vm3272 = vcmp.eq.f32.partialorder %v3271, 8.507059e+37
  %v3273 = vand.u32 %v3232, 2147483648
  %v3274 = vor.u32 1.1754944e-38, %v3273
  %v3275 = vsel %vm3272, %v3274, %v3270
  %v3276 = vmul.f32 1.0, %v3275
  %v3277 = vrcp.pop %v3233
  %v3278 = vmul.f32 %v3233, %v3277
  %v3279 = vsub.f32 1.0, %v3278
  %v3280 = vmul.f32 %v3277, %v3279
  %v3281 = vadd.f32 %v3277, %v3280
  %vm3282 = vweird.f32 %v3233
  %vm3283 = vweird.f32 %v3277
  %vm3284 = vmor %vm3282, %vm3283
  %v3285 = vsel %vm3284, %v3277, %v3281
  %v3286 = vand.u32 2147483647, %v3233
  %vm3287 = vcmp.eq.f32.partialorder %v3286, 8.507059e+37
  %v3288 = vand.u32 %v3233, 2147483648
  %v3289 = vor.u32 1.1754944e-38, %v3288
  %v3290 = vsel %vm3287, %v3289, %v3285
  %v3291 = vmul.f32 1.0, %v3290
  %v3292 = vrcp.pop %v3234
  %v3293 = vmul.f32 %v3234, %v3292
  %v3294 = vsub.f32 1.0, %v3293
  %v3295 = vmul.f32 %v3292, %v3294
  %v3296 = vadd.f32 %v3292, %v3295
  %vm3297 = vweird.f32 %v3234
  %vm3298 = vweird.f32 %v3292
  %vm3299 = vmor %vm3297, %vm3298
  %v3300 = vsel %vm3299, %v3292, %v3296
  %v3301 = vand.u32 2147483647, %v3234
  %vm3302 = vcmp.eq.f32.partialorder %v3301, 8.507059e+37
  %v3303 = vand.u32 %v3234, 2147483648
  %v3304 = vor.u32 1.1754944e-38, %v3303
  %v3305 = vsel %vm3302, %v3304, %v3300
  %v3306 = vmul.f32 1.0, %v3305
  %v3307 = vrcp.pop %v3235
  %v3308 = vmul.f32 %v3235, %v3307
  %v3309 = vsub.f32 1.0, %v3308
  %v3310 = vmul.f32 %v3307, %v3309
  %v3311 = vadd.f32 %v3307, %v3310
  %vm3312 = vweird.f32 %v3235
  %vm3313 = vweird.f32 %v3307
  %vm3314 = vmor %vm3312, %vm3313
  %v3315 = vsel %vm3314, %v3307, %v3311
  %v3316 = vand.u32 2147483647, %v3235
  %vm3317 = vcmp.eq.f32.partialorder %v3316, 8.507059e+37
  %v3318 = vand.u32 %v3235, 2147483648
  %v3319 = vor.u32 1.1754944e-38, %v3318
  %v3320 = vsel %vm3317, %v3319, %v3315
  %v3321 = vmul.f32 1.0, %v3320
  %v3322 = vrcp.pop %v3236
  %v3323 = vmul.f32 %v3236, %v3322
  %v3324 = vsub.f32 1.0, %v3323
  %v3325 = vmul.f32 %v3322, %v3324
  %v3326 = vadd.f32 %v3322, %v3325
  %vm3327 = vweird.f32 %v3236
  %vm3328 = vweird.f32 %v3322
  %vm3329 = vmor %vm3327, %vm3328
  %v3330 = vsel %vm3329, %v3322, %v3326
  %v3331 = vand.u32 2147483647, %v3236
  %vm3332 = vcmp.eq.f32.partialorder %v3331, 8.507059e+37
  %v3333 = vand.u32 %v3236, 2147483648
  %v3334 = vor.u32 1.1754944e-38, %v3333
  %v3335 = vsel %vm3332, %v3334, %v3330
  %v3336 = vmul.f32 1.0, %v3335
  %v3337 = vrcp.pop %v3237
  %v3338 = vmul.f32 %v3237, %v3337
  %v3339 = vsub.f32 1.0, %v3338
  %v3340 = vmul.f32 %v3337, %v3339
  %v3341 = vadd.f32 %v3337, %v3340
  %vm3342 = vweird.f32 %v3237
  %vm3343 = vweird.f32 %v3337
  %vm3344 = vmor %vm3342, %vm3343
  %v3345 = vsel %vm3344, %v3337, %v3341
  %v3346 = vand.u32 2147483647, %v3237
  %vm3347 = vcmp.eq.f32.partialorder %v3346, 8.507059e+37
  %v3348 = vand.u32 %v3237, 2147483648
  %v3349 = vor.u32 1.1754944e-38, %v3348
  %v3350 = vsel %vm3347, %v3349, %v3345
  %v3351 = vmul.f32 1.0, %v3350
  %v3352 = vrcp.pop %v3238
  %v3353 = vmul.f32 %v3238, %v3352
  %v3354 = vsub.f32 1.0, %v3353
  %v3355 = vmul.f32 %v3352, %v3354
  %v3356 = vadd.f32 %v3352, %v3355
  %vm3357 = vweird.f32 %v3238
  %vm3358 = vweird.f32 %v3352
  %vm3359 = vmor %vm3357, %vm3358
  %v3360 = vsel %vm3359, %v3352, %v3356
  %v3361 = vand.u32 2147483647, %v3238
  %vm3362 = vcmp.eq.f32.partialorder %v3361, 8.507059e+37
  %v3363 = vand.u32 %v3238, 2147483648
  %v3364 = vor.u32 1.1754944e-38, %v3363
  %v3365 = vsel %vm3362, %v3364, %v3360
  %v3366 = vmul.f32 1.0, %v3365
  %v3367 = vrcp.pop %v3239
  %v3368 = vmul.f32 %v3239, %v3367
  %v3369 = vsub.f32 1.0, %v3368
  %v3370 = vmul.f32 %v3367, %v3369
  %v3371 = vadd.f32 %v3367, %v3370
  %vm3372 = vweird.f32 %v3239
  %vm3373 = vweird.f32 %v3367
  %vm3374 = vmor %vm3372, %vm3373
  %v3375 = vsel %vm3374, %v3367, %v3371
  %v3376 = vand.u32 2147483647, %v3239
  %vm3377 = vcmp.eq.f32.partialorder %v3376, 8.507059e+37
  %v3378 = vand.u32 %v3239, 2147483648
  %v3379 = vor.u32 1.1754944e-38, %v3378
  %v3380 = vsel %vm3377, %v3379, %v3375
  %v3381 = vmul.f32 1.0, %v3380
  %v3382 = vrcp.pop %v3240
  %v3383 = vmul.f32 %v3240, %v3382
  %v3384 = vsub.f32 1.0, %v3383
  %v3385 = vmul.f32 %v3382, %v3384
  %v3386 = vadd.f32 %v3382, %v3385
  %vm3387 = vweird.f32 %v3240
  %vm3388 = vweird.f32 %v3382
  %vm3389 = vmor %vm3387, %vm3388
  %v3390 = vsel %vm3389, %v3382, %v3386
  %v3391 = vand.u32 2147483647, %v3240
  %vm3392 = vcmp.eq.f32.partialorder %v3391, 8.507059e+37
  %v3393 = vand.u32 %v3240, 2147483648
  %v3394 = vor.u32 1.1754944e-38, %v3393
  %v3395 = vsel %vm3392, %v3394, %v3390
  %v3396 = vmul.f32 1.0, %v3395
  %v3397 = vrcp.pop %v3241
  %v3398 = vmul.f32 %v3241, %v3397
  %v3399 = vsub.f32 1.0, %v3398
  %v3400 = vmul.f32 %v3397, %v3399
  %v3401 = vadd.f32 %v3397, %v3400
  %vm3402 = vweird.f32 %v3241
  %vm3403 = vweird.f32 %v3397
  %vm3404 = vmor %vm3402, %vm3403
  %v3405 = vsel %vm3404, %v3397, %v3401
  %v3406 = vand.u32 2147483647, %v3241
  %vm3407 = vcmp.eq.f32.partialorder %v3406, 8.507059e+37
  %v3408 = vand.u32 %v3241, 2147483648
  %v3409 = vor.u32 1.1754944e-38, %v3408
  %v3410 = vsel %vm3407, %v3409, %v3405
  %v3411 = vmul.f32 1.0, %v3410
  %v3412 = vrcp.pop %v3242
  %v3413 = vmul.f32 %v3242, %v3412
  %v3414 = vsub.f32 1.0, %v3413
  %v3415 = vmul.f32 %v3412, %v3414
  %v3416 = vadd.f32 %v3412, %v3415
  %vm3417 = vweird.f32 %v3242
  %vm3418 = vweird.f32 %v3412
  %vm3419 = vmor %vm3417, %vm3418
  %v3420 = vsel %vm3419, %v3412, %v3416
  %v3421 = vand.u32 2147483647, %v3242
  %vm3422 = vcmp.eq.f32.partialorder %v3421, 8.507059e+37
  %v3423 = vand.u32 %v3242, 2147483648
  %v3424 = vor.u32 1.1754944e-38, %v3423
  %v3425 = vsel %vm3422, %v3424, %v3420
  %v3426 = vmul.f32 1.0, %v3425
  %v3427 = vrcp.pop %v3243
  %v3428 = vmul.f32 %v3243, %v3427
  %v3429 = vsub.f32 1.0, %v3428
  %v3430 = vmul.f32 %v3427, %v3429
  %v3431 = vadd.f32 %v3427, %v3430
  %vm3432 = vweird.f32 %v3243
  %vm3433 = vweird.f32 %v3427
  %vm3434 = vmor %vm3432, %vm3433
  %v3435 = vsel %vm3434, %v3427, %v3431
  %v3436 = vand.u32 2147483647, %v3243
  %vm3437 = vcmp.eq.f32.partialorder %v3436, 8.507059e+37
  %v3438 = vand.u32 %v3243, 2147483648
  %v3439 = vor.u32 1.1754944e-38, %v3438
  %v3440 = vsel %vm3437, %v3439, %v3435
  %v3441 = vmul.f32 1.0, %v3440
  %v3442 = vrcp.pop %v3244
  %v3443 = vmul.f32 %v3244, %v3442
  %v3444 = vsub.f32 1.0, %v3443
  %v3445 = vmul.f32 %v3442, %v3444
  %v3446 = vadd.f32 %v3442, %v3445
  %vm3447 = vweird.f32 %v3244
  %vm3448 = vweird.f32 %v3442
  %vm3449 = vmor %vm3447, %vm3448
  %v3450 = vsel %vm3449, %v3442, %v3446
  %v3451 = vand.u32 2147483647, %v3244
  %vm3452 = vcmp.eq.f32.partialorder %v3451, 8.507059e+37
  %v3453 = vand.u32 %v3244, 2147483648
  %v3454 = vor.u32 1.1754944e-38, %v3453
  %v3455 = vsel %vm3452, %v3454, %v3450
  %v3456 = vmul.f32 1.0, %v3455
  %v3457 = vrcp.pop %v3245
  %v3458 = vmul.f32 %v3245, %v3457
  %v3459 = vsub.f32 1.0, %v3458
  %v3460 = vmul.f32 %v3457, %v3459
  %v3461 = vadd.f32 %v3457, %v3460
  %vm3462 = vweird.f32 %v3245
  %vm3463 = vweird.f32 %v3457
  %vm3464 = vmor %vm3462, %vm3463
  %v3465 = vsel %vm3464, %v3457, %v3461
  %v3466 = vand.u32 2147483647, %v3245
  %vm3467 = vcmp.eq.f32.partialorder %v3466, 8.507059e+37
  %v3468 = vand.u32 %v3245, 2147483648
  %v3469 = vor.u32 1.1754944e-38, %v3468
  %v3470 = vsel %vm3467, %v3469, %v3465
  %v3471 = vmul.f32 1.0, %v3470
  %v3472 = vrcp.pop %v3246
  %v3473 = vmul.f32 %v3246, %v3472
  %v3474 = vsub.f32 1.0, %v3473
  %v3475 = vmul.f32 %v3472, %v3474
  %v3476 = vadd.f32 %v3472, %v3475
  %vm3477 = vweird.f32 %v3246
  %vm3478 = vweird.f32 %v3472
  %vm3479 = vmor %vm3477, %vm3478
  %v3480 = vsel %vm3479, %v3472, %v3476
  %v3481 = vand.u32 2147483647, %v3246
  %vm3482 = vcmp.eq.f32.partialorder %v3481, 8.507059e+37
  %v3483 = vand.u32 %v3246, 2147483648
  %v3484 = vor.u32 1.1754944e-38, %v3483
  %v3485 = vsel %vm3482, %v3484, %v3480
  %v3486 = vmul.f32 1.0, %v3485
  %v3487 = vld [vmem:[%s2 + $0x40] sm:$0xff]
  %v3488 = vld [vmem:[%s2 + $0x48] sm:$0xff]
  %v3489 = vld [vmem:[%s2 + $0x50] sm:$0xff]
  %v3490 = vld [vmem:[%s2 + $0x58] sm:$0xff]
  %v3491 = vld [vmem:[#allocation2 + $0x600] sm:$0xff]
  %v3492 = vld [vmem:[#allocation2 + $0x608] sm:$0xff]
  %v3493 = vld [vmem:[#allocation2 + $0x610] sm:$0xff]
  %v3494 = vld [vmem:[#allocation2 + $0x618] sm:$0xff]
  %v3495 = vld [vmem:[#allocation2 + $0x620] sm:$0xff]
  %v3496 = vld [vmem:[#allocation2 + $0x628] sm:$0xff]
  %v3497 = vld [vmem:[#allocation2 + $0x630] sm:$0xff]
  %v3498 = vld [vmem:[#allocation2 + $0x638] sm:$0xff]
  %v3499 = vld [vmem:[#allocation2 + $0x640] sm:$0xff]
  %v3500 = vld [vmem:[#allocation2 + $0x648] sm:$0xff]
  %v3501 = vld [vmem:[#allocation2 + $0x650] sm:$0xff]
  %v3502 = vld [vmem:[#allocation2 + $0x658] sm:$0xff]
  %v3503 = vld [vmem:[#allocation2 + $0x660] sm:$0xff]
  %v3504 = vld [vmem:[#allocation2 + $0x668] sm:$0xff]
  %v3505 = vld [vmem:[#allocation2 + $0x670] sm:$0xff]
  %v3506 = vld [vmem:[#allocation2 + $0x678] sm:$0xff]
  %3508 = vset.pattern.permute.xlu0 0
  %3509 = vperm.xlu0 %3508, %v3487
  %v3510 = vpop.permute.xlu0 %3509
  %3513 = vset.pattern.permute.xlu0 0
  %3514 = vperm.xlu0 %3513, %v3488
  %v3515 = vpop.permute.xlu0 %3514
  %3518 = vset.pattern.permute.xlu0 0
  %3519 = vperm.xlu0 %3518, %v3489
  %v3520 = vpop.permute.xlu0 %3519
  %3523 = vset.pattern.permute.xlu0 0
  %3524 = vperm.xlu0 %3523, %v3490
  %v3525 = vpop.permute.xlu0 %3524
  %v3527 = vmul.f32 %v3261, %v3510
  %v3528 = vmul.f32 %v3276, %v3510
  %v3529 = vmul.f32 %v3291, %v3510
  %v3530 = vmul.f32 %v3306, %v3510
  %v3531 = vmul.f32 %v3321, %v3515
  %v3532 = vmul.f32 %v3336, %v3515
  %v3533 = vmul.f32 %v3351, %v3515
  %v3534 = vmul.f32 %v3366, %v3515
  %v3535 = vmul.f32 %v3381, %v3520
  %v3536 = vmul.f32 %v3396, %v3520
  %v3537 = vmul.f32 %v3411, %v3520
  %v3538 = vmul.f32 %v3426, %v3520
  %v3539 = vmul.f32 %v3441, %v3525
  %v3540 = vmul.f32 %v3456, %v3525
  %v3541 = vmul.f32 %v3471, %v3525
  %v3542 = vmul.f32 %v3486, %v3525
  %v3543 = vadd.f32 %v3491, %v3527
  %v3544 = vadd.f32 %v3492, %v3528
  %v3545 = vadd.f32 %v3493, %v3529
  %v3546 = vadd.f32 %v3494, %v3530
  %v3547 = vadd.f32 %v3495, %v3531
  %v3548 = vadd.f32 %v3496, %v3532
  %v3549 = vadd.f32 %v3497, %v3533
  %v3550 = vadd.f32 %v3498, %v3534
  %v3551 = vadd.f32 %v3499, %v3535
  %v3552 = vadd.f32 %v3500, %v3536
  %v3553 = vadd.f32 %v3501, %v3537
  %v3554 = vadd.f32 %v3502, %v3538
  %v3555 = vadd.f32 %v3503, %v3539
  %v3556 = vadd.f32 %v3504, %v3540
  %v3557 = vadd.f32 %v3505, %v3541
  %v3558 = vadd.f32 %v3506, %v3542
  %v3559 = vtanh.pop %v3543
  %v3560 = vtanh.pop %v3544
  %v3561 = vtanh.pop %v3545
  %v3562 = vtanh.pop %v3546
  %v3563 = vtanh.pop %v3547
  %v3564 = vtanh.pop %v3548
  %v3565 = vtanh.pop %v3549
  %v3566 = vtanh.pop %v3550
  %v3567 = vtanh.pop %v3551
  %v3568 = vtanh.pop %v3552
  %v3569 = vtanh.pop %v3553
  %v3570 = vtanh.pop %v3554
  %v3571 = vtanh.pop %v3555
  %v3572 = vtanh.pop %v3556
  %v3573 = vtanh.pop %v3557
  %v3574 = vtanh.pop %v3558
  %v3575 = vsub.f32 1.0, %v2941
  %v3576 = vsub.f32 1.0, %v2956
  %v3577 = vsub.f32 1.0, %v2971
  %v3578 = vsub.f32 1.0, %v2986
  %v3579 = vsub.f32 1.0, %v3001
  %v3580 = vsub.f32 1.0, %v3016
  %v3581 = vsub.f32 1.0, %v3031
  %v3582 = vsub.f32 1.0, %v3046
  %v3583 = vsub.f32 1.0, %v3061
  %v3584 = vsub.f32 1.0, %v3076
  %v3585 = vsub.f32 1.0, %v3091
  %v3586 = vsub.f32 1.0, %v3106
  %v3587 = vsub.f32 1.0, %v3121
  %v3588 = vsub.f32 1.0, %v3136
  %v3589 = vsub.f32 1.0, %v3151
  %v3590 = vsub.f32 1.0, %v3166
  %v3591 = vmul.f32 %v3575, %v3559
  %v3592 = vmul.f32 %v3576, %v3560
  %v3593 = vmul.f32 %v3577, %v3561
  %v3594 = vmul.f32 %v3578, %v3562
  %v3595 = vmul.f32 %v3579, %v3563
  %v3596 = vmul.f32 %v3580, %v3564
  %v3597 = vmul.f32 %v3581, %v3565
  %v3598 = vmul.f32 %v3582, %v3566
  %v3599 = vmul.f32 %v3583, %v3567
  %v3600 = vmul.f32 %v3584, %v3568
  %v3601 = vmul.f32 %v3585, %v3569
  %v3602 = vmul.f32 %v3586, %v3570
  %v3603 = vmul.f32 %v3587, %v3571
  %v3604 = vmul.f32 %v3588, %v3572
  %v3605 = vmul.f32 %v3589, %v3573
  %v3606 = vmul.f32 %v3590, %v3574
  %v3607 = vpack.c.bf16 %v3592, %v3591
  %v3608 = vpack.c.bf16 %v3594, %v3593
  %v3609 = vpack.c.bf16 %v3596, %v3595
  %v3610 = vpack.c.bf16 %v3598, %v3597
  %v3611 = vpack.c.bf16 %v3600, %v3599
  %v3612 = vpack.c.bf16 %v3602, %v3601
  %v3613 = vpack.c.bf16 %v3604, %v3603
  %v3614 = vpack.c.bf16 %v3606, %v3605
  %3615 = vst [vmem:[#allocation3 + $0x80] sm:$0xff] %v3607
  %3616 = vst [vmem:[#allocation3 + $0x88] sm:$0xff] %v3608
  %3617 = vst [vmem:[#allocation3 + $0x90] sm:$0xff] %v3609
  %3618 = vst [vmem:[#allocation3 + $0x98] sm:$0xff] %v3610
  %3619 = vst [vmem:[#allocation3 + $0xa0] sm:$0xff] %v3611
  %3620 = vst [vmem:[#allocation3 + $0xa8] sm:$0xff] %v3612
  %3621 = vst [vmem:[#allocation3 + $0xb0] sm:$0xff] %v3613
  %3622 = vst [vmem:[#allocation3 + $0xb8] sm:$0xff] %v3614
  %3623 = vst [vmem:[%s7 + $0x80] sm:$0xff] %v3593
  %3624 = vst [vmem:[%s7 + $0x88] sm:$0xff] %v3594
  %3625 = vst [vmem:[%s7 + $0x90] sm:$0xff] %v3597
  %3626 = vst [vmem:[%s7 + $0x98] sm:$0xff] %v3598
  %3627 = vst [vmem:[%s7 + $0xa0] sm:$0xff] %v3601
  %3628 = vst [vmem:[%s7 + $0xa8] sm:$0xff] %v3602
  %3629 = vst [vmem:[%s7 + $0xb0] sm:$0xff] %v3605
  %3630 = vst [vmem:[%s7 + $0xb8] sm:$0xff] %v3606
  %v3631 = vld [vmem:[#allocation2 + $0x180] sm:$0xff]
  %v3632 = vld [vmem:[#allocation2 + $0x188] sm:$0xff]
  %v3633 = vld [vmem:[#allocation2 + $0x190] sm:$0xff]
  %v3634 = vld [vmem:[#allocation2 + $0x198] sm:$0xff]
  %v3635 = vld [vmem:[#allocation2 + $0x1a0] sm:$0xff]
  %v3636 = vld [vmem:[#allocation2 + $0x1a8] sm:$0xff]
  %v3637 = vld [vmem:[#allocation2 + $0x1b0] sm:$0xff]
  %v3638 = vld [vmem:[#allocation2 + $0x1b8] sm:$0xff]
  %v3639 = vld [vmem:[#allocation2 + $0x1c0] sm:$0xff]
  %v3640 = vld [vmem:[#allocation2 + $0x1c8] sm:$0xff]
  %v3641 = vld [vmem:[#allocation2 + $0x1d0] sm:$0xff]
  %v3642 = vld [vmem:[#allocation2 + $0x1d8] sm:$0xff]
  %v3643 = vld [vmem:[#allocation2 + $0x1e0] sm:$0xff]
  %v3644 = vld [vmem:[#allocation2 + $0x1e8] sm:$0xff]
  %v3645 = vld [vmem:[#allocation2 + $0x1f0] sm:$0xff]
  %v3646 = vld [vmem:[#allocation2 + $0x1f8] sm:$0xff]
  %v3647 = vxor.u32 %v3631, 2147483648
  %v3648 = vxor.u32 %v3632, 2147483648
  %v3649 = vxor.u32 %v3633, 2147483648
  %v3650 = vxor.u32 %v3634, 2147483648
  %v3651 = vxor.u32 %v3635, 2147483648
  %v3652 = vxor.u32 %v3636, 2147483648
  %v3653 = vxor.u32 %v3637, 2147483648
  %v3654 = vxor.u32 %v3638, 2147483648
  %v3655 = vxor.u32 %v3639, 2147483648
  %v3656 = vxor.u32 %v3640, 2147483648
  %v3657 = vxor.u32 %v3641, 2147483648
  %v3658 = vxor.u32 %v3642, 2147483648
  %v3659 = vxor.u32 %v3643, 2147483648
  %v3660 = vxor.u32 %v3644, 2147483648
  %v3661 = vxor.u32 %v3645, 2147483648
  %v3662 = vxor.u32 %v3646, 2147483648
  %v3663 = vmul.f32 %v3647, 1.442695
  %v3664 = vpow.pop %v3663
  %v3665 = vmul.f32 %v3648, 1.442695
  %v3666 = vpow.pop %v3665
  %v3667 = vmul.f32 %v3649, 1.442695
  %v3668 = vpow.pop %v3667
  %v3669 = vmul.f32 %v3650, 1.442695
  %v3670 = vpow.pop %v3669
  %v3671 = vmul.f32 %v3651, 1.442695
  %v3672 = vpow.pop %v3671
  %v3673 = vmul.f32 %v3652, 1.442695
  %v3674 = vpow.pop %v3673
  %v3675 = vmul.f32 %v3653, 1.442695
  %v3676 = vpow.pop %v3675
  %v3677 = vmul.f32 %v3654, 1.442695
  %v3678 = vpow.pop %v3677
  %v3679 = vmul.f32 %v3655, 1.442695
  %v3680 = vpow.pop %v3679
  %v3681 = vmul.f32 %v3656, 1.442695
  %v3682 = vpow.pop %v3681
  %v3683 = vmul.f32 %v3657, 1.442695
  %v3684 = vpow.pop %v3683
  %v3685 = vmul.f32 %v3658, 1.442695
  %v3686 = vpow.pop %v3685
  %v3687 = vmul.f32 %v3659, 1.442695
  %v3688 = vpow.pop %v3687
  %v3689 = vmul.f32 %v3660, 1.442695
  %v3690 = vpow.pop %v3689
  %v3691 = vmul.f32 %v3661, 1.442695
  %v3692 = vpow.pop %v3691
  %v3693 = vmul.f32 %v3662, 1.442695
  %v3694 = vpow.pop %v3693
  %v3695 = vadd.f32 %v3664, 1.0
  %v3696 = vadd.f32 %v3666, 1.0
  %v3697 = vadd.f32 %v3668, 1.0
  %v3698 = vadd.f32 %v3670, 1.0
  %v3699 = vadd.f32 %v3672, 1.0
  %v3700 = vadd.f32 %v3674, 1.0
  %v3701 = vadd.f32 %v3676, 1.0
  %v3702 = vadd.f32 %v3678, 1.0
  %v3703 = vadd.f32 %v3680, 1.0
  %v3704 = vadd.f32 %v3682, 1.0
  %v3705 = vadd.f32 %v3684, 1.0
  %v3706 = vadd.f32 %v3686, 1.0
  %v3707 = vadd.f32 %v3688, 1.0
  %v3708 = vadd.f32 %v3690, 1.0
  %v3709 = vadd.f32 %v3692, 1.0
  %v3710 = vadd.f32 %v3694, 1.0
  %v3711 = vrcp.pop %v3695
  %v3712 = vmul.f32 %v3695, %v3711
  %v3713 = vsub.f32 1.0, %v3712
  %v3714 = vmul.f32 %v3711, %v3713
  %v3715 = vadd.f32 %v3711, %v3714
  %vm3716 = vweird.f32 %v3695
  %vm3717 = vweird.f32 %v3711
  %vm3718 = vmor %vm3716, %vm3717
  %v3719 = vsel %vm3718, %v3711, %v3715
  %v3720 = vand.u32 2147483647, %v3695
  %vm3721 = vcmp.eq.f32.partialorder %v3720, 8.507059e+37
  %v3722 = vand.u32 %v3695, 2147483648
  %v3723 = vor.u32 1.1754944e-38, %v3722
  %v3724 = vsel %vm3721, %v3723, %v3719
  %v3725 = vmul.f32 1.0, %v3724
  %v3726 = vrcp.pop %v3696
  %v3727 = vmul.f32 %v3696, %v3726
  %v3728 = vsub.f32 1.0, %v3727
  %v3729 = vmul.f32 %v3726, %v3728
  %v3730 = vadd.f32 %v3726, %v3729
  %vm3731 = vweird.f32 %v3696
  %vm3732 = vweird.f32 %v3726
  %vm3733 = vmor %vm3731, %vm3732
  %v3734 = vsel %vm3733, %v3726, %v3730
  %v3735 = vand.u32 2147483647, %v3696
  %vm3736 = vcmp.eq.f32.partialorder %v3735, 8.507059e+37
  %v3737 = vand.u32 %v3696, 2147483648
  %v3738 = vor.u32 1.1754944e-38, %v3737
  %v3739 = vsel %vm3736, %v3738, %v3734
  %v3740 = vmul.f32 1.0, %v3739
  %v3741 = vrcp.pop %v3697
  %v3742 = vmul.f32 %v3697, %v3741
  %v3743 = vsub.f32 1.0, %v3742
  %v3744 = vmul.f32 %v3741, %v3743
  %v3745 = vadd.f32 %v3741, %v3744
  %vm3746 = vweird.f32 %v3697
  %vm3747 = vweird.f32 %v3741
  %vm3748 = vmor %vm3746, %vm3747
  %v3749 = vsel %vm3748, %v3741, %v3745
  %v3750 = vand.u32 2147483647, %v3697
  %vm3751 = vcmp.eq.f32.partialorder %v3750, 8.507059e+37
  %v3752 = vand.u32 %v3697, 2147483648
  %v3753 = vor.u32 1.1754944e-38, %v3752
  %v3754 = vsel %vm3751, %v3753, %v3749
  %v3755 = vmul.f32 1.0, %v3754
  %v3756 = vrcp.pop %v3698
  %v3757 = vmul.f32 %v3698, %v3756
  %v3758 = vsub.f32 1.0, %v3757
  %v3759 = vmul.f32 %v3756, %v3758
  %v3760 = vadd.f32 %v3756, %v3759
  %vm3761 = vweird.f32 %v3698
  %vm3762 = vweird.f32 %v3756
  %vm3763 = vmor %vm3761, %vm3762
  %v3764 = vsel %vm3763, %v3756, %v3760
  %v3765 = vand.u32 2147483647, %v3698
  %vm3766 = vcmp.eq.f32.partialorder %v3765, 8.507059e+37
  %v3767 = vand.u32 %v3698, 2147483648
  %v3768 = vor.u32 1.1754944e-38, %v3767
  %v3769 = vsel %vm3766, %v3768, %v3764
  %v3770 = vmul.f32 1.0, %v3769
  %v3771 = vrcp.pop %v3699
  %v3772 = vmul.f32 %v3699, %v3771
  %v3773 = vsub.f32 1.0, %v3772
  %v3774 = vmul.f32 %v3771, %v3773
  %v3775 = vadd.f32 %v3771, %v3774
  %vm3776 = vweird.f32 %v3699
  %vm3777 = vweird.f32 %v3771
  %vm3778 = vmor %vm3776, %vm3777
  %v3779 = vsel %vm3778, %v3771, %v3775
  %v3780 = vand.u32 2147483647, %v3699
  %vm3781 = vcmp.eq.f32.partialorder %v3780, 8.507059e+37
  %v3782 = vand.u32 %v3699, 2147483648
  %v3783 = vor.u32 1.1754944e-38, %v3782
  %v3784 = vsel %vm3781, %v3783, %v3779
  %v3785 = vmul.f32 1.0, %v3784
  %v3786 = vrcp.pop %v3700
  %v3787 = vmul.f32 %v3700, %v3786
  %v3788 = vsub.f32 1.0, %v3787
  %v3789 = vmul.f32 %v3786, %v3788
  %v3790 = vadd.f32 %v3786, %v3789
  %vm3791 = vweird.f32 %v3700
  %vm3792 = vweird.f32 %v3786
  %vm3793 = vmor %vm3791, %vm3792
  %v3794 = vsel %vm3793, %v3786, %v3790
  %v3795 = vand.u32 2147483647, %v3700
  %vm3796 = vcmp.eq.f32.partialorder %v3795, 8.507059e+37
  %v3797 = vand.u32 %v3700, 2147483648
  %v3798 = vor.u32 1.1754944e-38, %v3797
  %v3799 = vsel %vm3796, %v3798, %v3794
  %v3800 = vmul.f32 1.0, %v3799
  %v3801 = vrcp.pop %v3701
  %v3802 = vmul.f32 %v3701, %v3801
  %v3803 = vsub.f32 1.0, %v3802
  %v3804 = vmul.f32 %v3801, %v3803
  %v3805 = vadd.f32 %v3801, %v3804
  %vm3806 = vweird.f32 %v3701
  %vm3807 = vweird.f32 %v3801
  %vm3808 = vmor %vm3806, %vm3807
  %v3809 = vsel %vm3808, %v3801, %v3805
  %v3810 = vand.u32 2147483647, %v3701
  %vm3811 = vcmp.eq.f32.partialorder %v3810, 8.507059e+37
  %v3812 = vand.u32 %v3701, 2147483648
  %v3813 = vor.u32 1.1754944e-38, %v3812
  %v3814 = vsel %vm3811, %v3813, %v3809
  %v3815 = vmul.f32 1.0, %v3814
  %v3816 = vrcp.pop %v3702
  %v3817 = vmul.f32 %v3702, %v3816
  %v3818 = vsub.f32 1.0, %v3817
  %v3819 = vmul.f32 %v3816, %v3818
  %v3820 = vadd.f32 %v3816, %v3819
  %vm3821 = vweird.f32 %v3702
  %vm3822 = vweird.f32 %v3816
  %vm3823 = vmor %vm3821, %vm3822
  %v3824 = vsel %vm3823, %v3816, %v3820
  %v3825 = vand.u32 2147483647, %v3702
  %vm3826 = vcmp.eq.f32.partialorder %v3825, 8.507059e+37
  %v3827 = vand.u32 %v3702, 2147483648
  %v3828 = vor.u32 1.1754944e-38, %v3827
  %v3829 = vsel %vm3826, %v3828, %v3824
  %v3830 = vmul.f32 1.0, %v3829
  %v3831 = vrcp.pop %v3703
  %v3832 = vmul.f32 %v3703, %v3831
  %v3833 = vsub.f32 1.0, %v3832
  %v3834 = vmul.f32 %v3831, %v3833
  %v3835 = vadd.f32 %v3831, %v3834
  %vm3836 = vweird.f32 %v3703
  %vm3837 = vweird.f32 %v3831
  %vm3838 = vmor %vm3836, %vm3837
  %v3839 = vsel %vm3838, %v3831, %v3835
  %v3840 = vand.u32 2147483647, %v3703
  %vm3841 = vcmp.eq.f32.partialorder %v3840, 8.507059e+37
  %v3842 = vand.u32 %v3703, 2147483648
  %v3843 = vor.u32 1.1754944e-38, %v3842
  %v3844 = vsel %vm3841, %v3843, %v3839
  %v3845 = vmul.f32 1.0, %v3844
  %v3846 = vrcp.pop %v3704
  %v3847 = vmul.f32 %v3704, %v3846
  %v3848 = vsub.f32 1.0, %v3847
  %v3849 = vmul.f32 %v3846, %v3848
  %v3850 = vadd.f32 %v3846, %v3849
  %vm3851 = vweird.f32 %v3704
  %vm3852 = vweird.f32 %v3846
  %vm3853 = vmor %vm3851, %vm3852
  %v3854 = vsel %vm3853, %v3846, %v3850
  %v3855 = vand.u32 2147483647, %v3704
  %vm3856 = vcmp.eq.f32.partialorder %v3855, 8.507059e+37
  %v3857 = vand.u32 %v3704, 2147483648
  %v3858 = vor.u32 1.1754944e-38, %v3857
  %v3859 = vsel %vm3856, %v3858, %v3854
  %v3860 = vmul.f32 1.0, %v3859
  %v3861 = vrcp.pop %v3705
  %v3862 = vmul.f32 %v3705, %v3861
  %v3863 = vsub.f32 1.0, %v3862
  %v3864 = vmul.f32 %v3861, %v3863
  %v3865 = vadd.f32 %v3861, %v3864
  %vm3866 = vweird.f32 %v3705
  %vm3867 = vweird.f32 %v3861
  %vm3868 = vmor %vm3866, %vm3867
  %v3869 = vsel %vm3868, %v3861, %v3865
  %v3870 = vand.u32 2147483647, %v3705
  %vm3871 = vcmp.eq.f32.partialorder %v3870, 8.507059e+37
  %v3872 = vand.u32 %v3705, 2147483648
  %v3873 = vor.u32 1.1754944e-38, %v3872
  %v3874 = vsel %vm3871, %v3873, %v3869
  %v3875 = vmul.f32 1.0, %v3874
  %v3876 = vrcp.pop %v3706
  %v3877 = vmul.f32 %v3706, %v3876
  %v3878 = vsub.f32 1.0, %v3877
  %v3879 = vmul.f32 %v3876, %v3878
  %v3880 = vadd.f32 %v3876, %v3879
  %vm3881 = vweird.f32 %v3706
  %vm3882 = vweird.f32 %v3876
  %vm3883 = vmor %vm3881, %vm3882
  %v3884 = vsel %vm3883, %v3876, %v3880
  %v3885 = vand.u32 2147483647, %v3706
  %vm3886 = vcmp.eq.f32.partialorder %v3885, 8.507059e+37
  %v3887 = vand.u32 %v3706, 2147483648
  %v3888 = vor.u32 1.1754944e-38, %v3887
  %v3889 = vsel %vm3886, %v3888, %v3884
  %v3890 = vmul.f32 1.0, %v3889
  %v3891 = vrcp.pop %v3707
  %v3892 = vmul.f32 %v3707, %v3891
  %v3893 = vsub.f32 1.0, %v3892
  %v3894 = vmul.f32 %v3891, %v3893
  %v3895 = vadd.f32 %v3891, %v3894
  %vm3896 = vweird.f32 %v3707
  %vm3897 = vweird.f32 %v3891
  %vm3898 = vmor %vm3896, %vm3897
  %v3899 = vsel %vm3898, %v3891, %v3895
  %v3900 = vand.u32 2147483647, %v3707
  %vm3901 = vcmp.eq.f32.partialorder %v3900, 8.507059e+37
  %v3902 = vand.u32 %v3707, 2147483648
  %v3903 = vor.u32 1.1754944e-38, %v3902
  %v3904 = vsel %vm3901, %v3903, %v3899
  %v3905 = vmul.f32 1.0, %v3904
  %v3906 = vrcp.pop %v3708
  %v3907 = vmul.f32 %v3708, %v3906
  %v3908 = vsub.f32 1.0, %v3907
  %v3909 = vmul.f32 %v3906, %v3908
  %v3910 = vadd.f32 %v3906, %v3909
  %vm3911 = vweird.f32 %v3708
  %vm3912 = vweird.f32 %v3906
  %vm3913 = vmor %vm3911, %vm3912
  %v3914 = vsel %vm3913, %v3906, %v3910
  %v3915 = vand.u32 2147483647, %v3708
  %vm3916 = vcmp.eq.f32.partialorder %v3915, 8.507059e+37
  %v3917 = vand.u32 %v3708, 2147483648
  %v3918 = vor.u32 1.1754944e-38, %v3917
  %v3919 = vsel %vm3916, %v3918, %v3914
  %v3920 = vmul.f32 1.0, %v3919
  %v3921 = vrcp.pop %v3709
  %v3922 = vmul.f32 %v3709, %v3921
  %v3923 = vsub.f32 1.0, %v3922
  %v3924 = vmul.f32 %v3921, %v3923
  %v3925 = vadd.f32 %v3921, %v3924
  %vm3926 = vweird.f32 %v3709
  %vm3927 = vweird.f32 %v3921
  %vm3928 = vmor %vm3926, %vm3927
  %v3929 = vsel %vm3928, %v3921, %v3925
  %v3930 = vand.u32 2147483647, %v3709
  %vm3931 = vcmp.eq.f32.partialorder %v3930, 8.507059e+37
  %v3932 = vand.u32 %v3709, 2147483648
  %v3933 = vor.u32 1.1754944e-38, %v3932
  %v3934 = vsel %vm3931, %v3933, %v3929
  %v3935 = vmul.f32 1.0, %v3934
  %v3936 = vrcp.pop %v3710
  %v3937 = vmul.f32 %v3710, %v3936
  %v3938 = vsub.f32 1.0, %v3937
  %v3939 = vmul.f32 %v3936, %v3938
  %v3940 = vadd.f32 %v3936, %v3939
  %vm3941 = vweird.f32 %v3710
  %vm3942 = vweird.f32 %v3936
  %vm3943 = vmor %vm3941, %vm3942
  %v3944 = vsel %vm3943, %v3936, %v3940
  %v3945 = vand.u32 2147483647, %v3710
  %vm3946 = vcmp.eq.f32.partialorder %v3945, 8.507059e+37
  %v3947 = vand.u32 %v3710, 2147483648
  %v3948 = vor.u32 1.1754944e-38, %v3947
  %v3949 = vsel %vm3946, %v3948, %v3944
  %v3950 = vmul.f32 1.0, %v3949
  %v3951 = vld [vmem:[#allocation2 + $0x400] sm:$0xff]
  %v3952 = vld [vmem:[#allocation2 + $0x408] sm:$0xff]
  %v3953 = vld [vmem:[#allocation2 + $0x410] sm:$0xff]
  %v3954 = vld [vmem:[#allocation2 + $0x418] sm:$0xff]
  %v3955 = vld [vmem:[#allocation2 + $0x420] sm:$0xff]
  %v3956 = vld [vmem:[#allocation2 + $0x428] sm:$0xff]
  %v3957 = vld [vmem:[#allocation2 + $0x430] sm:$0xff]
  %v3958 = vld [vmem:[#allocation2 + $0x438] sm:$0xff]
  %v3959 = vld [vmem:[#allocation2 + $0x440] sm:$0xff]
  %v3960 = vld [vmem:[#allocation2 + $0x448] sm:$0xff]
  %v3961 = vld [vmem:[#allocation2 + $0x450] sm:$0xff]
  %v3962 = vld [vmem:[#allocation2 + $0x458] sm:$0xff]
  %v3963 = vld [vmem:[#allocation2 + $0x460] sm:$0xff]
  %v3964 = vld [vmem:[#allocation2 + $0x468] sm:$0xff]
  %v3965 = vld [vmem:[#allocation2 + $0x470] sm:$0xff]
  %v3966 = vld [vmem:[#allocation2 + $0x478] sm:$0xff]
  %v3967 = vxor.u32 %v3951, 2147483648
  %v3968 = vxor.u32 %v3952, 2147483648
  %v3969 = vxor.u32 %v3953, 2147483648
  %v3970 = vxor.u32 %v3954, 2147483648
  %v3971 = vxor.u32 %v3955, 2147483648
  %v3972 = vxor.u32 %v3956, 2147483648
  %v3973 = vxor.u32 %v3957, 2147483648
  %v3974 = vxor.u32 %v3958, 2147483648
  %v3975 = vxor.u32 %v3959, 2147483648
  %v3976 = vxor.u32 %v3960, 2147483648
  %v3977 = vxor.u32 %v3961, 2147483648
  %v3978 = vxor.u32 %v3962, 2147483648
  %v3979 = vxor.u32 %v3963, 2147483648
  %v3980 = vxor.u32 %v3964, 2147483648
  %v3981 = vxor.u32 %v3965, 2147483648
  %v3982 = vxor.u32 %v3966, 2147483648
  %v3983 = vmul.f32 %v3967, 1.442695
  %v3984 = vpow.pop %v3983
  %v3985 = vmul.f32 %v3968, 1.442695
  %v3986 = vpow.pop %v3985
  %v3987 = vmul.f32 %v3969, 1.442695
  %v3988 = vpow.pop %v3987
  %v3989 = vmul.f32 %v3970, 1.442695
  %v3990 = vpow.pop %v3989
  %v3991 = vmul.f32 %v3971, 1.442695
  %v3992 = vpow.pop %v3991
  %v3993 = vmul.f32 %v3972, 1.442695
  %v3994 = vpow.pop %v3993
  %v3995 = vmul.f32 %v3973, 1.442695
  %v3996 = vpow.pop %v3995
  %v3997 = vmul.f32 %v3974, 1.442695
  %v3998 = vpow.pop %v3997
  %v3999 = vmul.f32 %v3975, 1.442695
  %v4000 = vpow.pop %v3999
  %v4001 = vmul.f32 %v3976, 1.442695
  %v4002 = vpow.pop %v4001
  %v4003 = vmul.f32 %v3977, 1.442695
  %v4004 = vpow.pop %v4003
  %v4005 = vmul.f32 %v3978, 1.442695
  %v4006 = vpow.pop %v4005
  %v4007 = vmul.f32 %v3979, 1.442695
  %v4008 = vpow.pop %v4007
  %v4009 = vmul.f32 %v3980, 1.442695
  %v4010 = vpow.pop %v4009
  %v4011 = vmul.f32 %v3981, 1.442695
  %v4012 = vpow.pop %v4011
  %v4013 = vmul.f32 %v3982, 1.442695
  %v4014 = vpow.pop %v4013
  %v4015 = vadd.f32 %v3984, 1.0
  %v4016 = vadd.f32 %v3986, 1.0
  %v4017 = vadd.f32 %v3988, 1.0
  %v4018 = vadd.f32 %v3990, 1.0
  %v4019 = vadd.f32 %v3992, 1.0
  %v4020 = vadd.f32 %v3994, 1.0
  %v4021 = vadd.f32 %v3996, 1.0
  %v4022 = vadd.f32 %v3998, 1.0
  %v4023 = vadd.f32 %v4000, 1.0
  %v4024 = vadd.f32 %v4002, 1.0
  %v4025 = vadd.f32 %v4004, 1.0
  %v4026 = vadd.f32 %v4006, 1.0
  %v4027 = vadd.f32 %v4008, 1.0
  %v4028 = vadd.f32 %v4010, 1.0
  %v4029 = vadd.f32 %v4012, 1.0
  %v4030 = vadd.f32 %v4014, 1.0
  %v4031 = vrcp.pop %v4015
  %v4032 = vmul.f32 %v4015, %v4031
  %v4033 = vsub.f32 1.0, %v4032
  %v4034 = vmul.f32 %v4031, %v4033
  %v4035 = vadd.f32 %v4031, %v4034
  %vm4036 = vweird.f32 %v4015
  %vm4037 = vweird.f32 %v4031
  %vm4038 = vmor %vm4036, %vm4037
  %v4039 = vsel %vm4038, %v4031, %v4035
  %v4040 = vand.u32 2147483647, %v4015
  %vm4041 = vcmp.eq.f32.partialorder %v4040, 8.507059e+37
  %v4042 = vand.u32 %v4015, 2147483648
  %v4043 = vor.u32 1.1754944e-38, %v4042
  %v4044 = vsel %vm4041, %v4043, %v4039
  %v4045 = vmul.f32 1.0, %v4044
  %v4046 = vrcp.pop %v4016
  %v4047 = vmul.f32 %v4016, %v4046
  %v4048 = vsub.f32 1.0, %v4047
  %v4049 = vmul.f32 %v4046, %v4048
  %v4050 = vadd.f32 %v4046, %v4049
  %vm4051 = vweird.f32 %v4016
  %vm4052 = vweird.f32 %v4046
  %vm4053 = vmor %vm4051, %vm4052
  %v4054 = vsel %vm4053, %v4046, %v4050
  %v4055 = vand.u32 2147483647, %v4016
  %vm4056 = vcmp.eq.f32.partialorder %v4055, 8.507059e+37
  %v4057 = vand.u32 %v4016, 2147483648
  %v4058 = vor.u32 1.1754944e-38, %v4057
  %v4059 = vsel %vm4056, %v4058, %v4054
  %v4060 = vmul.f32 1.0, %v4059
  %v4061 = vrcp.pop %v4017
  %v4062 = vmul.f32 %v4017, %v4061
  %v4063 = vsub.f32 1.0, %v4062
  %v4064 = vmul.f32 %v4061, %v4063
  %v4065 = vadd.f32 %v4061, %v4064
  %vm4066 = vweird.f32 %v4017
  %vm4067 = vweird.f32 %v4061
  %vm4068 = vmor %vm4066, %vm4067
  %v4069 = vsel %vm4068, %v4061, %v4065
  %v4070 = vand.u32 2147483647, %v4017
  %vm4071 = vcmp.eq.f32.partialorder %v4070, 8.507059e+37
  %v4072 = vand.u32 %v4017, 2147483648
  %v4073 = vor.u32 1.1754944e-38, %v4072
  %v4074 = vsel %vm4071, %v4073, %v4069
  %v4075 = vmul.f32 1.0, %v4074
  %v4076 = vrcp.pop %v4018
  %v4077 = vmul.f32 %v4018, %v4076
  %v4078 = vsub.f32 1.0, %v4077
  %v4079 = vmul.f32 %v4076, %v4078
  %v4080 = vadd.f32 %v4076, %v4079
  %vm4081 = vweird.f32 %v4018
  %vm4082 = vweird.f32 %v4076
  %vm4083 = vmor %vm4081, %vm4082
  %v4084 = vsel %vm4083, %v4076, %v4080
  %v4085 = vand.u32 2147483647, %v4018
  %vm4086 = vcmp.eq.f32.partialorder %v4085, 8.507059e+37
  %v4087 = vand.u32 %v4018, 2147483648
  %v4088 = vor.u32 1.1754944e-38, %v4087
  %v4089 = vsel %vm4086, %v4088, %v4084
  %v4090 = vmul.f32 1.0, %v4089
  %v4091 = vrcp.pop %v4019
  %v4092 = vmul.f32 %v4019, %v4091
  %v4093 = vsub.f32 1.0, %v4092
  %v4094 = vmul.f32 %v4091, %v4093
  %v4095 = vadd.f32 %v4091, %v4094
  %vm4096 = vweird.f32 %v4019
  %vm4097 = vweird.f32 %v4091
  %vm4098 = vmor %vm4096, %vm4097
  %v4099 = vsel %vm4098, %v4091, %v4095
  %v4100 = vand.u32 2147483647, %v4019
  %vm4101 = vcmp.eq.f32.partialorder %v4100, 8.507059e+37
  %v4102 = vand.u32 %v4019, 2147483648
  %v4103 = vor.u32 1.1754944e-38, %v4102
  %v4104 = vsel %vm4101, %v4103, %v4099
  %v4105 = vmul.f32 1.0, %v4104
  %v4106 = vrcp.pop %v4020
  %v4107 = vmul.f32 %v4020, %v4106
  %v4108 = vsub.f32 1.0, %v4107
  %v4109 = vmul.f32 %v4106, %v4108
  %v4110 = vadd.f32 %v4106, %v4109
  %vm4111 = vweird.f32 %v4020
  %vm4112 = vweird.f32 %v4106
  %vm4113 = vmor %vm4111, %vm4112
  %v4114 = vsel %vm4113, %v4106, %v4110
  %v4115 = vand.u32 2147483647, %v4020
  %vm4116 = vcmp.eq.f32.partialorder %v4115, 8.507059e+37
  %v4117 = vand.u32 %v4020, 2147483648
  %v4118 = vor.u32 1.1754944e-38, %v4117
  %v4119 = vsel %vm4116, %v4118, %v4114
  %v4120 = vmul.f32 1.0, %v4119
  %v4121 = vrcp.pop %v4021
  %v4122 = vmul.f32 %v4021, %v4121
  %v4123 = vsub.f32 1.0, %v4122
  %v4124 = vmul.f32 %v4121, %v4123
  %v4125 = vadd.f32 %v4121, %v4124
  %vm4126 = vweird.f32 %v4021
  %vm4127 = vweird.f32 %v4121
  %vm4128 = vmor %vm4126, %vm4127
  %v4129 = vsel %vm4128, %v4121, %v4125
  %v4130 = vand.u32 2147483647, %v4021
  %vm4131 = vcmp.eq.f32.partialorder %v4130, 8.507059e+37
  %v4132 = vand.u32 %v4021, 2147483648
  %v4133 = vor.u32 1.1754944e-38, %v4132
  %v4134 = vsel %vm4131, %v4133, %v4129
  %v4135 = vmul.f32 1.0, %v4134
  %v4136 = vrcp.pop %v4022
  %v4137 = vmul.f32 %v4022, %v4136
  %v4138 = vsub.f32 1.0, %v4137
  %v4139 = vmul.f32 %v4136, %v4138
  %v4140 = vadd.f32 %v4136, %v4139
  %vm4141 = vweird.f32 %v4022
  %vm4142 = vweird.f32 %v4136
  %vm4143 = vmor %vm4141, %vm4142
  %v4144 = vsel %vm4143, %v4136, %v4140
  %v4145 = vand.u32 2147483647, %v4022
  %vm4146 = vcmp.eq.f32.partialorder %v4145, 8.507059e+37
  %v4147 = vand.u32 %v4022, 2147483648
  %v4148 = vor.u32 1.1754944e-38, %v4147
  %v4149 = vsel %vm4146, %v4148, %v4144
  %v4150 = vmul.f32 1.0, %v4149
  %v4151 = vrcp.pop %v4023
  %v4152 = vmul.f32 %v4023, %v4151
  %v4153 = vsub.f32 1.0, %v4152
  %v4154 = vmul.f32 %v4151, %v4153
  %v4155 = vadd.f32 %v4151, %v4154
  %vm4156 = vweird.f32 %v4023
  %vm4157 = vweird.f32 %v4151
  %vm4158 = vmor %vm4156, %vm4157
  %v4159 = vsel %vm4158, %v4151, %v4155
  %v4160 = vand.u32 2147483647, %v4023
  %vm4161 = vcmp.eq.f32.partialorder %v4160, 8.507059e+37
  %v4162 = vand.u32 %v4023, 2147483648
  %v4163 = vor.u32 1.1754944e-38, %v4162
  %v4164 = vsel %vm4161, %v4163, %v4159
  %v4165 = vmul.f32 1.0, %v4164
  %v4166 = vrcp.pop %v4024
  %v4167 = vmul.f32 %v4024, %v4166
  %v4168 = vsub.f32 1.0, %v4167
  %v4169 = vmul.f32 %v4166, %v4168
  %v4170 = vadd.f32 %v4166, %v4169
  %vm4171 = vweird.f32 %v4024
  %vm4172 = vweird.f32 %v4166
  %vm4173 = vmor %vm4171, %vm4172
  %v4174 = vsel %vm4173, %v4166, %v4170
  %v4175 = vand.u32 2147483647, %v4024
  %vm4176 = vcmp.eq.f32.partialorder %v4175, 8.507059e+37
  %v4177 = vand.u32 %v4024, 2147483648
  %v4178 = vor.u32 1.1754944e-38, %v4177
  %v4179 = vsel %vm4176, %v4178, %v4174
  %v4180 = vmul.f32 1.0, %v4179
  %v4181 = vrcp.pop %v4025
  %v4182 = vmul.f32 %v4025, %v4181
  %v4183 = vsub.f32 1.0, %v4182
  %v4184 = vmul.f32 %v4181, %v4183
  %v4185 = vadd.f32 %v4181, %v4184
  %vm4186 = vweird.f32 %v4025
  %vm4187 = vweird.f32 %v4181
  %vm4188 = vmor %vm4186, %vm4187
  %v4189 = vsel %vm4188, %v4181, %v4185
  %v4190 = vand.u32 2147483647, %v4025
  %vm4191 = vcmp.eq.f32.partialorder %v4190, 8.507059e+37
  %v4192 = vand.u32 %v4025, 2147483648
  %v4193 = vor.u32 1.1754944e-38, %v4192
  %v4194 = vsel %vm4191, %v4193, %v4189
  %v4195 = vmul.f32 1.0, %v4194
  %v4196 = vrcp.pop %v4026
  %v4197 = vmul.f32 %v4026, %v4196
  %v4198 = vsub.f32 1.0, %v4197
  %v4199 = vmul.f32 %v4196, %v4198
  %v4200 = vadd.f32 %v4196, %v4199
  %vm4201 = vweird.f32 %v4026
  %vm4202 = vweird.f32 %v4196
  %vm4203 = vmor %vm4201, %vm4202
  %v4204 = vsel %vm4203, %v4196, %v4200
  %v4205 = vand.u32 2147483647, %v4026
  %vm4206 = vcmp.eq.f32.partialorder %v4205, 8.507059e+37
  %v4207 = vand.u32 %v4026, 2147483648
  %v4208 = vor.u32 1.1754944e-38, %v4207
  %v4209 = vsel %vm4206, %v4208, %v4204
  %v4210 = vmul.f32 1.0, %v4209
  %v4211 = vrcp.pop %v4027
  %v4212 = vmul.f32 %v4027, %v4211
  %v4213 = vsub.f32 1.0, %v4212
  %v4214 = vmul.f32 %v4211, %v4213
  %v4215 = vadd.f32 %v4211, %v4214
  %vm4216 = vweird.f32 %v4027
  %vm4217 = vweird.f32 %v4211
  %vm4218 = vmor %vm4216, %vm4217
  %v4219 = vsel %vm4218, %v4211, %v4215
  %v4220 = vand.u32 2147483647, %v4027
  %vm4221 = vcmp.eq.f32.partialorder %v4220, 8.507059e+37
  %v4222 = vand.u32 %v4027, 2147483648
  %v4223 = vor.u32 1.1754944e-38, %v4222
  %v4224 = vsel %vm4221, %v4223, %v4219
  %v4225 = vmul.f32 1.0, %v4224
  %v4226 = vrcp.pop %v4028
  %v4227 = vmul.f32 %v4028, %v4226
  %v4228 = vsub.f32 1.0, %v4227
  %v4229 = vmul.f32 %v4226, %v4228
  %v4230 = vadd.f32 %v4226, %v4229
  %vm4231 = vweird.f32 %v4028
  %vm4232 = vweird.f32 %v4226
  %vm4233 = vmor %vm4231, %vm4232
  %v4234 = vsel %vm4233, %v4226, %v4230
  %v4235 = vand.u32 2147483647, %v4028
  %vm4236 = vcmp.eq.f32.partialorder %v4235, 8.507059e+37
  %v4237 = vand.u32 %v4028, 2147483648
  %v4238 = vor.u32 1.1754944e-38, %v4237
  %v4239 = vsel %vm4236, %v4238, %v4234
  %v4240 = vmul.f32 1.0, %v4239
  %v4241 = vrcp.pop %v4029
  %v4242 = vmul.f32 %v4029, %v4241
  %v4243 = vsub.f32 1.0, %v4242
  %v4244 = vmul.f32 %v4241, %v4243
  %v4245 = vadd.f32 %v4241, %v4244
  %vm4246 = vweird.f32 %v4029
  %vm4247 = vweird.f32 %v4241
  %vm4248 = vmor %vm4246, %vm4247
  %v4249 = vsel %vm4248, %v4241, %v4245
  %v4250 = vand.u32 2147483647, %v4029
  %vm4251 = vcmp.eq.f32.partialorder %v4250, 8.507059e+37
  %v4252 = vand.u32 %v4029, 2147483648
  %v4253 = vor.u32 1.1754944e-38, %v4252
  %v4254 = vsel %vm4251, %v4253, %v4249
  %v4255 = vmul.f32 1.0, %v4254
  %v4256 = vrcp.pop %v4030
  %v4257 = vmul.f32 %v4030, %v4256
  %v4258 = vsub.f32 1.0, %v4257
  %v4259 = vmul.f32 %v4256, %v4258
  %v4260 = vadd.f32 %v4256, %v4259
  %vm4261 = vweird.f32 %v4030
  %vm4262 = vweird.f32 %v4256
  %vm4263 = vmor %vm4261, %vm4262
  %v4264 = vsel %vm4263, %v4256, %v4260
  %v4265 = vand.u32 2147483647, %v4030
  %vm4266 = vcmp.eq.f32.partialorder %v4265, 8.507059e+37
  %v4267 = vand.u32 %v4030, 2147483648
  %v4268 = vor.u32 1.1754944e-38, %v4267
  %v4269 = vsel %vm4266, %v4268, %v4264
  %v4270 = vmul.f32 1.0, %v4269
  %v4271 = vld [vmem:[%s2 + $0x60] sm:$0xff]
  %v4272 = vld [vmem:[%s2 + $0x68] sm:$0xff]
  %v4273 = vld [vmem:[%s2 + $0x70] sm:$0xff]
  %v4274 = vld [vmem:[%s2 + $0x78] sm:$0xff]
  %v4275 = vld [vmem:[#allocation2 + $0x680] sm:$0xff]
  %v4276 = vld [vmem:[#allocation2 + $0x688] sm:$0xff]
  %v4277 = vld [vmem:[#allocation2 + $0x690] sm:$0xff]
  %v4278 = vld [vmem:[#allocation2 + $0x698] sm:$0xff]
  %v4279 = vld [vmem:[#allocation2 + $0x6a0] sm:$0xff]
  %v4280 = vld [vmem:[#allocation2 + $0x6a8] sm:$0xff]
  %v4281 = vld [vmem:[#allocation2 + $0x6b0] sm:$0xff]
  %v4282 = vld [vmem:[#allocation2 + $0x6b8] sm:$0xff]
  %v4283 = vld [vmem:[#allocation2 + $0x6c0] sm:$0xff]
  %v4284 = vld [vmem:[#allocation2 + $0x6c8] sm:$0xff]
  %v4285 = vld [vmem:[#allocation2 + $0x6d0] sm:$0xff]
  %v4286 = vld [vmem:[#allocation2 + $0x6d8] sm:$0xff]
  %v4287 = vld [vmem:[#allocation2 + $0x6e0] sm:$0xff]
  %v4288 = vld [vmem:[#allocation2 + $0x6e8] sm:$0xff]
  %v4289 = vld [vmem:[#allocation2 + $0x6f0] sm:$0xff]
  %v4290 = vld [vmem:[#allocation2 + $0x6f8] sm:$0xff]
  %4292 = vset.pattern.permute.xlu0 0
  %4293 = vperm.xlu0 %4292, %v4271
  %v4294 = vpop.permute.xlu0 %4293
  %4297 = vset.pattern.permute.xlu0 0
  %4298 = vperm.xlu0 %4297, %v4272
  %v4299 = vpop.permute.xlu0 %4298
  %4302 = vset.pattern.permute.xlu0 0
  %4303 = vperm.xlu0 %4302, %v4273
  %v4304 = vpop.permute.xlu0 %4303
  %4307 = vset.pattern.permute.xlu0 0
  %4308 = vperm.xlu0 %4307, %v4274
  %v4309 = vpop.permute.xlu0 %4308
  %v4311 = vmul.f32 %v4045, %v4294
  %v4312 = vmul.f32 %v4060, %v4294
  %v4313 = vmul.f32 %v4075, %v4294
  %v4314 = vmul.f32 %v4090, %v4294
  %v4315 = vmul.f32 %v4105, %v4299
  %v4316 = vmul.f32 %v4120, %v4299
  %v4317 = vmul.f32 %v4135, %v4299
  %v4318 = vmul.f32 %v4150, %v4299
  %v4319 = vmul.f32 %v4165, %v4304
  %v4320 = vmul.f32 %v4180, %v4304
  %v4321 = vmul.f32 %v4195, %v4304
  %v4322 = vmul.f32 %v4210, %v4304
  %v4323 = vmul.f32 %v4225, %v4309
  %v4324 = vmul.f32 %v4240, %v4309
  %v4325 = vmul.f32 %v4255, %v4309
  %v4326 = vmul.f32 %v4270, %v4309
  %v4327 = vadd.f32 %v4275, %v4311
  %v4328 = vadd.f32 %v4276, %v4312
  %v4329 = vadd.f32 %v4277, %v4313
  %v4330 = vadd.f32 %v4278, %v4314
  %v4331 = vadd.f32 %v4279, %v4315
  %v4332 = vadd.f32 %v4280, %v4316
  %v4333 = vadd.f32 %v4281, %v4317
  %v4334 = vadd.f32 %v4282, %v4318
  %v4335 = vadd.f32 %v4283, %v4319
  %v4336 = vadd.f32 %v4284, %v4320
  %v4337 = vadd.f32 %v4285, %v4321
  %v4338 = vadd.f32 %v4286, %v4322
  %v4339 = vadd.f32 %v4287, %v4323
  %v4340 = vadd.f32 %v4288, %v4324
  %v4341 = vadd.f32 %v4289, %v4325
  %v4342 = vadd.f32 %v4290, %v4326
  %v4343 = vtanh.pop %v4327
  %v4344 = vtanh.pop %v4328
  %v4345 = vtanh.pop %v4329
  %v4346 = vtanh.pop %v4330
  %v4347 = vtanh.pop %v4331
  %v4348 = vtanh.pop %v4332
  %v4349 = vtanh.pop %v4333
  %v4350 = vtanh.pop %v4334
  %v4351 = vtanh.pop %v4335
  %v4352 = vtanh.pop %v4336
  %v4353 = vtanh.pop %v4337
  %v4354 = vtanh.pop %v4338
  %v4355 = vtanh.pop %v4339
  %v4356 = vtanh.pop %v4340
  %v4357 = vtanh.pop %v4341
  %v4358 = vtanh.pop %v4342
  %v4359 = vsub.f32 1.0, %v3725
  %v4360 = vsub.f32 1.0, %v3740
  %v4361 = vsub.f32 1.0, %v3755
  %v4362 = vsub.f32 1.0, %v3770
  %v4363 = vsub.f32 1.0, %v3785
  %v4364 = vsub.f32 1.0, %v3800
  %v4365 = vsub.f32 1.0, %v3815
  %v4366 = vsub.f32 1.0, %v3830
  %v4367 = vsub.f32 1.0, %v3845
  %v4368 = vsub.f32 1.0, %v3860
  %v4369 = vsub.f32 1.0, %v3875
  %v4370 = vsub.f32 1.0, %v3890
  %v4371 = vsub.f32 1.0, %v3905
  %v4372 = vsub.f32 1.0, %v3920
  %v4373 = vsub.f32 1.0, %v3935
  %v4374 = vsub.f32 1.0, %v3950
  %v4375 = vmul.f32 %v4359, %v4343
  %v4376 = vmul.f32 %v4360, %v4344
  %v4377 = vmul.f32 %v4361, %v4345
  %v4378 = vmul.f32 %v4362, %v4346
  %v4379 = vmul.f32 %v4363, %v4347
  %v4380 = vmul.f32 %v4364, %v4348
  %v4381 = vmul.f32 %v4365, %v4349
  %v4382 = vmul.f32 %v4366, %v4350
  %v4383 = vmul.f32 %v4367, %v4351
  %v4384 = vmul.f32 %v4368, %v4352
  %v4385 = vmul.f32 %v4369, %v4353
  %v4386 = vmul.f32 %v4370, %v4354
  %v4387 = vmul.f32 %v4371, %v4355
  %v4388 = vmul.f32 %v4372, %v4356
  %v4389 = vmul.f32 %v4373, %v4357
  %v4390 = vmul.f32 %v4374, %v4358
  %v4391 = vpack.c.bf16 %v4376, %v4375
  %v4392 = vpack.c.bf16 %v4378, %v4377
  %v4393 = vpack.c.bf16 %v4380, %v4379
  %v4394 = vpack.c.bf16 %v4382, %v4381
  %v4395 = vpack.c.bf16 %v4384, %v4383
  %v4396 = vpack.c.bf16 %v4386, %v4385
  %v4397 = vpack.c.bf16 %v4388, %v4387
  %v4398 = vpack.c.bf16 %v4390, %v4389
  %4399 = vst [vmem:[#allocation3 + $0xc0] sm:$0xff] %v4391
  %4400 = vst [vmem:[#allocation3 + $0xc8] sm:$0xff] %v4392
  %4401 = vst [vmem:[#allocation3 + $0xd0] sm:$0xff] %v4393
  %4402 = vst [vmem:[#allocation3 + $0xd8] sm:$0xff] %v4394
  %4403 = vst [vmem:[#allocation3 + $0xe0] sm:$0xff] %v4395
  %4404 = vst [vmem:[#allocation3 + $0xe8] sm:$0xff] %v4396
  %4405 = vst [vmem:[#allocation3 + $0xf0] sm:$0xff] %v4397
  %4406 = vst [vmem:[#allocation3 + $0xf8] sm:$0xff] %v4398
  %4407 = vst [vmem:[%s7 + $0xc0] sm:$0xff] %v4377
  %4408 = vst [vmem:[%s7 + $0xc8] sm:$0xff] %v4378
  %4409 = vst [vmem:[%s7 + $0xd0] sm:$0xff] %v4381
  %4410 = vst [vmem:[%s7 + $0xd8] sm:$0xff] %v4382
  %4411 = vst [vmem:[%s7 + $0xe0] sm:$0xff] %v4385
  %4412 = vst [vmem:[%s7 + $0xe8] sm:$0xff] %v4386
  %4413 = vst [vmem:[%s7 + $0xf0] sm:$0xff] %v4389
  %4414 = vst [vmem:[%s7 + $0xf8] sm:$0xff] %v4390
  %v4415 = vld [vmem:[#allocation2 + $0x200] sm:$0xff]
  %v4416 = vld [vmem:[#allocation2 + $0x208] sm:$0xff]
  %v4417 = vld [vmem:[#allocation2 + $0x210] sm:$0xff]
  %v4418 = vld [vmem:[#allocation2 + $0x218] sm:$0xff]
  %v4419 = vld [vmem:[#allocation2 + $0x220] sm:$0xff]
  %v4420 = vld [vmem:[#allocation2 + $0x228] sm:$0xff]
  %v4421 = vld [vmem:[#allocation2 + $0x230] sm:$0xff]
  %v4422 = vld [vmem:[#allocation2 + $0x238] sm:$0xff]
  %v4423 = vld [vmem:[#allocation2 + $0x240] sm:$0xff]
  %v4424 = vld [vmem:[#allocation2 + $0x248] sm:$0xff]
  %v4425 = vld [vmem:[#allocation2 + $0x250] sm:$0xff]
  %v4426 = vld [vmem:[#allocation2 + $0x258] sm:$0xff]
  %v4427 = vld [vmem:[#allocation2 + $0x260] sm:$0xff]
  %v4428 = vld [vmem:[#allocation2 + $0x268] sm:$0xff]
  %v4429 = vld [vmem:[#allocation2 + $0x270] sm:$0xff]
  %v4430 = vld [vmem:[#allocation2 + $0x278] sm:$0xff]
  %v4431 = vxor.u32 %v4415, 2147483648
  %v4432 = vxor.u32 %v4416, 2147483648
  %v4433 = vxor.u32 %v4417, 2147483648
  %v4434 = vxor.u32 %v4418, 2147483648
  %v4435 = vxor.u32 %v4419, 2147483648
  %v4436 = vxor.u32 %v4420, 2147483648
  %v4437 = vxor.u32 %v4421, 2147483648
  %v4438 = vxor.u32 %v4422, 2147483648
  %v4439 = vxor.u32 %v4423, 2147483648
  %v4440 = vxor.u32 %v4424, 2147483648
  %v4441 = vxor.u32 %v4425, 2147483648
  %v4442 = vxor.u32 %v4426, 2147483648
  %v4443 = vxor.u32 %v4427, 2147483648
  %v4444 = vxor.u32 %v4428, 2147483648
  %v4445 = vxor.u32 %v4429, 2147483648
  %v4446 = vxor.u32 %v4430, 2147483648
  %v4447 = vmul.f32 %v4431, 1.442695
  %v4448 = vpow.pop %v4447
  %v4449 = vmul.f32 %v4432, 1.442695
  %v4450 = vpow.pop %v4449
  %v4451 = vmul.f32 %v4433, 1.442695
  %v4452 = vpow.pop %v4451
  %v4453 = vmul.f32 %v4434, 1.442695
  %v4454 = vpow.pop %v4453
  %v4455 = vmul.f32 %v4435, 1.442695
  %v4456 = vpow.pop %v4455
  %v4457 = vmul.f32 %v4436, 1.442695
  %v4458 = vpow.pop %v4457
  %v4459 = vmul.f32 %v4437, 1.442695
  %v4460 = vpow.pop %v4459
  %v4461 = vmul.f32 %v4438, 1.442695
  %v4462 = vpow.pop %v4461
  %v4463 = vmul.f32 %v4439, 1.442695
  %v4464 = vpow.pop %v4463
  %v4465 = vmul.f32 %v4440, 1.442695
  %v4466 = vpow.pop %v4465
  %v4467 = vmul.f32 %v4441, 1.442695
  %v4468 = vpow.pop %v4467
  %v4469 = vmul.f32 %v4442, 1.442695
  %v4470 = vpow.pop %v4469
  %v4471 = vmul.f32 %v4443, 1.442695
  %v4472 = vpow.pop %v4471
  %v4473 = vmul.f32 %v4444, 1.442695
  %v4474 = vpow.pop %v4473
  %v4475 = vmul.f32 %v4445, 1.442695
  %v4476 = vpow.pop %v4475
  %v4477 = vmul.f32 %v4446, 1.442695
  %v4478 = vpow.pop %v4477
  %v4479 = vadd.f32 %v4448, 1.0
  %v4480 = vadd.f32 %v4450, 1.0
  %v4481 = vadd.f32 %v4452, 1.0
  %v4482 = vadd.f32 %v4454, 1.0
  %v4483 = vadd.f32 %v4456, 1.0
  %v4484 = vadd.f32 %v4458, 1.0
  %v4485 = vadd.f32 %v4460, 1.0
  %v4486 = vadd.f32 %v4462, 1.0
  %v4487 = vadd.f32 %v4464, 1.0
  %v4488 = vadd.f32 %v4466, 1.0
  %v4489 = vadd.f32 %v4468, 1.0
  %v4490 = vadd.f32 %v4470, 1.0
  %v4491 = vadd.f32 %v4472, 1.0
  %v4492 = vadd.f32 %v4474, 1.0
  %v4493 = vadd.f32 %v4476, 1.0
  %v4494 = vadd.f32 %v4478, 1.0
  %v4495 = vrcp.pop %v4479
  %v4496 = vmul.f32 %v4479, %v4495
  %v4497 = vsub.f32 1.0, %v4496
  %v4498 = vmul.f32 %v4495, %v4497
  %v4499 = vadd.f32 %v4495, %v4498
  %vm4500 = vweird.f32 %v4479
  %vm4501 = vweird.f32 %v4495
  %vm4502 = vmor %vm4500, %vm4501
  %v4503 = vsel %vm4502, %v4495, %v4499
  %v4504 = vand.u32 2147483647, %v4479
  %vm4505 = vcmp.eq.f32.partialorder %v4504, 8.507059e+37
  %v4506 = vand.u32 %v4479, 2147483648
  %v4507 = vor.u32 1.1754944e-38, %v4506
  %v4508 = vsel %vm4505, %v4507, %v4503
  %v4509 = vmul.f32 1.0, %v4508
  %v4510 = vrcp.pop %v4480
  %v4511 = vmul.f32 %v4480, %v4510
  %v4512 = vsub.f32 1.0, %v4511
  %v4513 = vmul.f32 %v4510, %v4512
  %v4514 = vadd.f32 %v4510, %v4513
  %vm4515 = vweird.f32 %v4480
  %vm4516 = vweird.f32 %v4510
  %vm4517 = vmor %vm4515, %vm4516
  %v4518 = vsel %vm4517, %v4510, %v4514
  %v4519 = vand.u32 2147483647, %v4480
  %vm4520 = vcmp.eq.f32.partialorder %v4519, 8.507059e+37
  %v4521 = vand.u32 %v4480, 2147483648
  %v4522 = vor.u32 1.1754944e-38, %v4521
  %v4523 = vsel %vm4520, %v4522, %v4518
  %v4524 = vmul.f32 1.0, %v4523
  %v4525 = vrcp.pop %v4481
  %v4526 = vmul.f32 %v4481, %v4525
  %v4527 = vsub.f32 1.0, %v4526
  %v4528 = vmul.f32 %v4525, %v4527
  %v4529 = vadd.f32 %v4525, %v4528
  %vm4530 = vweird.f32 %v4481
  %vm4531 = vweird.f32 %v4525
  %vm4532 = vmor %vm4530, %vm4531
  %v4533 = vsel %vm4532, %v4525, %v4529
  %v4534 = vand.u32 2147483647, %v4481
  %vm4535 = vcmp.eq.f32.partialorder %v4534, 8.507059e+37
  %v4536 = vand.u32 %v4481, 2147483648
  %v4537 = vor.u32 1.1754944e-38, %v4536
  %v4538 = vsel %vm4535, %v4537, %v4533
  %v4539 = vmul.f32 1.0, %v4538
  %v4540 = vrcp.pop %v4482
  %v4541 = vmul.f32 %v4482, %v4540
  %v4542 = vsub.f32 1.0, %v4541
  %v4543 = vmul.f32 %v4540, %v4542
  %v4544 = vadd.f32 %v4540, %v4543
  %vm4545 = vweird.f32 %v4482
  %vm4546 = vweird.f32 %v4540
  %vm4547 = vmor %vm4545, %vm4546
  %v4548 = vsel %vm4547, %v4540, %v4544
  %v4549 = vand.u32 2147483647, %v4482
  %vm4550 = vcmp.eq.f32.partialorder %v4549, 8.507059e+37
  %v4551 = vand.u32 %v4482, 2147483648
  %v4552 = vor.u32 1.1754944e-38, %v4551
  %v4553 = vsel %vm4550, %v4552, %v4548
  %v4554 = vmul.f32 1.0, %v4553
  %v4555 = vrcp.pop %v4483
  %v4556 = vmul.f32 %v4483, %v4555
  %v4557 = vsub.f32 1.0, %v4556
  %v4558 = vmul.f32 %v4555, %v4557
  %v4559 = vadd.f32 %v4555, %v4558
  %vm4560 = vweird.f32 %v4483
  %vm4561 = vweird.f32 %v4555
  %vm4562 = vmor %vm4560, %vm4561
  %v4563 = vsel %vm4562, %v4555, %v4559
  %v4564 = vand.u32 2147483647, %v4483
  %vm4565 = vcmp.eq.f32.partialorder %v4564, 8.507059e+37
  %v4566 = vand.u32 %v4483, 2147483648
  %v4567 = vor.u32 1.1754944e-38, %v4566
  %v4568 = vsel %vm4565, %v4567, %v4563
  %v4569 = vmul.f32 1.0, %v4568
  %v4570 = vrcp.pop %v4484
  %v4571 = vmul.f32 %v4484, %v4570
  %v4572 = vsub.f32 1.0, %v4571
  %v4573 = vmul.f32 %v4570, %v4572
  %v4574 = vadd.f32 %v4570, %v4573
  %vm4575 = vweird.f32 %v4484
  %vm4576 = vweird.f32 %v4570
  %vm4577 = vmor %vm4575, %vm4576
  %v4578 = vsel %vm4577, %v4570, %v4574
  %v4579 = vand.u32 2147483647, %v4484
  %vm4580 = vcmp.eq.f32.partialorder %v4579, 8.507059e+37
  %v4581 = vand.u32 %v4484, 2147483648
  %v4582 = vor.u32 1.1754944e-38, %v4581
  %v4583 = vsel %vm4580, %v4582, %v4578
  %v4584 = vmul.f32 1.0, %v4583
  %v4585 = vrcp.pop %v4485
  %v4586 = vmul.f32 %v4485, %v4585
  %v4587 = vsub.f32 1.0, %v4586
  %v4588 = vmul.f32 %v4585, %v4587
  %v4589 = vadd.f32 %v4585, %v4588
  %vm4590 = vweird.f32 %v4485
  %vm4591 = vweird.f32 %v4585
  %vm4592 = vmor %vm4590, %vm4591
  %v4593 = vsel %vm4592, %v4585, %v4589
  %v4594 = vand.u32 2147483647, %v4485
  %vm4595 = vcmp.eq.f32.partialorder %v4594, 8.507059e+37
  %v4596 = vand.u32 %v4485, 2147483648
  %v4597 = vor.u32 1.1754944e-38, %v4596
  %v4598 = vsel %vm4595, %v4597, %v4593
  %v4599 = vmul.f32 1.0, %v4598
  %v4600 = vrcp.pop %v4486
  %v4601 = vmul.f32 %v4486, %v4600
  %v4602 = vsub.f32 1.0, %v4601
  %v4603 = vmul.f32 %v4600, %v4602
  %v4604 = vadd.f32 %v4600, %v4603
  %vm4605 = vweird.f32 %v4486
  %vm4606 = vweird.f32 %v4600
  %vm4607 = vmor %vm4605, %vm4606
  %v4608 = vsel %vm4607, %v4600, %v4604
  %v4609 = vand.u32 2147483647, %v4486
  %vm4610 = vcmp.eq.f32.partialorder %v4609, 8.507059e+37
  %v4611 = vand.u32 %v4486, 2147483648
  %v4612 = vor.u32 1.1754944e-38, %v4611
  %v4613 = vsel %vm4610, %v4612, %v4608
  %v4614 = vmul.f32 1.0, %v4613
  %v4615 = vrcp.pop %v4487
  %v4616 = vmul.f32 %v4487, %v4615
  %v4617 = vsub.f32 1.0, %v4616
  %v4618 = vmul.f32 %v4615, %v4617
  %v4619 = vadd.f32 %v4615, %v4618
  %vm4620 = vweird.f32 %v4487
  %vm4621 = vweird.f32 %v4615
  %vm4622 = vmor %vm4620, %vm4621
  %v4623 = vsel %vm4622, %v4615, %v4619
  %v4624 = vand.u32 2147483647, %v4487
  %vm4625 = vcmp.eq.f32.partialorder %v4624, 8.507059e+37
  %v4626 = vand.u32 %v4487, 2147483648
  %v4627 = vor.u32 1.1754944e-38, %v4626
  %v4628 = vsel %vm4625, %v4627, %v4623
  %v4629 = vmul.f32 1.0, %v4628
  %v4630 = vrcp.pop %v4488
  %v4631 = vmul.f32 %v4488, %v4630
  %v4632 = vsub.f32 1.0, %v4631
  %v4633 = vmul.f32 %v4630, %v4632
  %v4634 = vadd.f32 %v4630, %v4633
  %vm4635 = vweird.f32 %v4488
  %vm4636 = vweird.f32 %v4630
  %vm4637 = vmor %vm4635, %vm4636
  %v4638 = vsel %vm4637, %v4630, %v4634
  %v4639 = vand.u32 2147483647, %v4488
  %vm4640 = vcmp.eq.f32.partialorder %v4639, 8.507059e+37
  %v4641 = vand.u32 %v4488, 2147483648
  %v4642 = vor.u32 1.1754944e-38, %v4641
  %v4643 = vsel %vm4640, %v4642, %v4638
  %v4644 = vmul.f32 1.0, %v4643
  %v4645 = vrcp.pop %v4489
  %v4646 = vmul.f32 %v4489, %v4645
  %v4647 = vsub.f32 1.0, %v4646
  %v4648 = vmul.f32 %v4645, %v4647
  %v4649 = vadd.f32 %v4645, %v4648
  %vm4650 = vweird.f32 %v4489
  %vm4651 = vweird.f32 %v4645
  %vm4652 = vmor %vm4650, %vm4651
  %v4653 = vsel %vm4652, %v4645, %v4649
  %v4654 = vand.u32 2147483647, %v4489
  %vm4655 = vcmp.eq.f32.partialorder %v4654, 8.507059e+37
  %v4656 = vand.u32 %v4489, 2147483648
  %v4657 = vor.u32 1.1754944e-38, %v4656
  %v4658 = vsel %vm4655, %v4657, %v4653
  %v4659 = vmul.f32 1.0, %v4658
  %v4660 = vrcp.pop %v4490
  %v4661 = vmul.f32 %v4490, %v4660
  %v4662 = vsub.f32 1.0, %v4661
  %v4663 = vmul.f32 %v4660, %v4662
  %v4664 = vadd.f32 %v4660, %v4663
  %vm4665 = vweird.f32 %v4490
  %vm4666 = vweird.f32 %v4660
  %vm4667 = vmor %vm4665, %vm4666
  %v4668 = vsel %vm4667, %v4660, %v4664
  %v4669 = vand.u32 2147483647, %v4490
  %vm4670 = vcmp.eq.f32.partialorder %v4669, 8.507059e+37
  %v4671 = vand.u32 %v4490, 2147483648
  %v4672 = vor.u32 1.1754944e-38, %v4671
  %v4673 = vsel %vm4670, %v4672, %v4668
  %v4674 = vmul.f32 1.0, %v4673
  %v4675 = vrcp.pop %v4491
  %v4676 = vmul.f32 %v4491, %v4675
  %v4677 = vsub.f32 1.0, %v4676
  %v4678 = vmul.f32 %v4675, %v4677
  %v4679 = vadd.f32 %v4675, %v4678
  %vm4680 = vweird.f32 %v4491
  %vm4681 = vweird.f32 %v4675
  %vm4682 = vmor %vm4680, %vm4681
  %v4683 = vsel %vm4682, %v4675, %v4679
  %v4684 = vand.u32 2147483647, %v4491
  %vm4685 = vcmp.eq.f32.partialorder %v4684, 8.507059e+37
  %v4686 = vand.u32 %v4491, 2147483648
  %v4687 = vor.u32 1.1754944e-38, %v4686
  %v4688 = vsel %vm4685, %v4687, %v4683
  %v4689 = vmul.f32 1.0, %v4688
  %v4690 = vrcp.pop %v4492
  %v4691 = vmul.f32 %v4492, %v4690
  %v4692 = vsub.f32 1.0, %v4691
  %v4693 = vmul.f32 %v4690, %v4692
  %v4694 = vadd.f32 %v4690, %v4693
  %vm4695 = vweird.f32 %v4492
  %vm4696 = vweird.f32 %v4690
  %vm4697 = vmor %vm4695, %vm4696
  %v4698 = vsel %vm4697, %v4690, %v4694
  %v4699 = vand.u32 2147483647, %v4492
  %vm4700 = vcmp.eq.f32.partialorder %v4699, 8.507059e+37
  %v4701 = vand.u32 %v4492, 2147483648
  %v4702 = vor.u32 1.1754944e-38, %v4701
  %v4703 = vsel %vm4700, %v4702, %v4698
  %v4704 = vmul.f32 1.0, %v4703
  %v4705 = vrcp.pop %v4493
  %v4706 = vmul.f32 %v4493, %v4705
  %v4707 = vsub.f32 1.0, %v4706
  %v4708 = vmul.f32 %v4705, %v4707
  %v4709 = vadd.f32 %v4705, %v4708
  %vm4710 = vweird.f32 %v4493
  %vm4711 = vweird.f32 %v4705
  %vm4712 = vmor %vm4710, %vm4711
  %v4713 = vsel %vm4712, %v4705, %v4709
  %v4714 = vand.u32 2147483647, %v4493
  %vm4715 = vcmp.eq.f32.partialorder %v4714, 8.507059e+37
  %v4716 = vand.u32 %v4493, 2147483648
  %v4717 = vor.u32 1.1754944e-38, %v4716
  %v4718 = vsel %vm4715, %v4717, %v4713
  %v4719 = vmul.f32 1.0, %v4718
  %v4720 = vrcp.pop %v4494
  %v4721 = vmul.f32 %v4494, %v4720
  %v4722 = vsub.f32 1.0, %v4721
  %v4723 = vmul.f32 %v4720, %v4722
  %v4724 = vadd.f32 %v4720, %v4723
  %vm4725 = vweird.f32 %v4494
  %vm4726 = vweird.f32 %v4720
  %vm4727 = vmor %vm4725, %vm4726
  %v4728 = vsel %vm4727, %v4720, %v4724
  %v4729 = vand.u32 2147483647, %v4494
  %vm4730 = vcmp.eq.f32.partialorder %v4729, 8.507059e+37
  %v4731 = vand.u32 %v4494, 2147483648
  %v4732 = vor.u32 1.1754944e-38, %v4731
  %v4733 = vsel %vm4730, %v4732, %v4728
  %v4734 = vmul.f32 1.0, %v4733
  %v4735 = vld [vmem:[#allocation2 + $0x480] sm:$0xff]
  %v4736 = vld [vmem:[#allocation2 + $0x488] sm:$0xff]
  %v4737 = vld [vmem:[#allocation2 + $0x490] sm:$0xff]
  %v4738 = vld [vmem:[#allocation2 + $0x498] sm:$0xff]
  %v4739 = vld [vmem:[#allocation2 + $0x4a0] sm:$0xff]
  %v4740 = vld [vmem:[#allocation2 + $0x4a8] sm:$0xff]
  %v4741 = vld [vmem:[#allocation2 + $0x4b0] sm:$0xff]
  %v4742 = vld [vmem:[#allocation2 + $0x4b8] sm:$0xff]
  %v4743 = vld [vmem:[#allocation2 + $0x4c0] sm:$0xff]
  %v4744 = vld [vmem:[#allocation2 + $0x4c8] sm:$0xff]
  %v4745 = vld [vmem:[#allocation2 + $0x4d0] sm:$0xff]
  %v4746 = vld [vmem:[#allocation2 + $0x4d8] sm:$0xff]
  %v4747 = vld [vmem:[#allocation2 + $0x4e0] sm:$0xff]
  %v4748 = vld [vmem:[#allocation2 + $0x4e8] sm:$0xff]
  %v4749 = vld [vmem:[#allocation2 + $0x4f0] sm:$0xff]
  %v4750 = vld [vmem:[#allocation2 + $0x4f8] sm:$0xff]
  %v4751 = vxor.u32 %v4735, 2147483648
  %v4752 = vxor.u32 %v4736, 2147483648
  %v4753 = vxor.u32 %v4737, 2147483648
  %v4754 = vxor.u32 %v4738, 2147483648
  %v4755 = vxor.u32 %v4739, 2147483648
  %v4756 = vxor.u32 %v4740, 2147483648
  %v4757 = vxor.u32 %v4741, 2147483648
  %v4758 = vxor.u32 %v4742, 2147483648
  %v4759 = vxor.u32 %v4743, 2147483648
  %v4760 = vxor.u32 %v4744, 2147483648
  %v4761 = vxor.u32 %v4745, 2147483648
  %v4762 = vxor.u32 %v4746, 2147483648
  %v4763 = vxor.u32 %v4747, 2147483648
  %v4764 = vxor.u32 %v4748, 2147483648
  %v4765 = vxor.u32 %v4749, 2147483648
  %v4766 = vxor.u32 %v4750, 2147483648
  %v4767 = vmul.f32 %v4751, 1.442695
  %v4768 = vpow.pop %v4767
  %v4769 = vmul.f32 %v4752, 1.442695
  %v4770 = vpow.pop %v4769
  %v4771 = vmul.f32 %v4753, 1.442695
  %v4772 = vpow.pop %v4771
  %v4773 = vmul.f32 %v4754, 1.442695
  %v4774 = vpow.pop %v4773
  %v4775 = vmul.f32 %v4755, 1.442695
  %v4776 = vpow.pop %v4775
  %v4777 = vmul.f32 %v4756, 1.442695
  %v4778 = vpow.pop %v4777
  %v4779 = vmul.f32 %v4757, 1.442695
  %v4780 = vpow.pop %v4779
  %v4781 = vmul.f32 %v4758, 1.442695
  %v4782 = vpow.pop %v4781
  %v4783 = vmul.f32 %v4759, 1.442695
  %v4784 = vpow.pop %v4783
  %v4785 = vmul.f32 %v4760, 1.442695
  %v4786 = vpow.pop %v4785
  %v4787 = vmul.f32 %v4761, 1.442695
  %v4788 = vpow.pop %v4787
  %v4789 = vmul.f32 %v4762, 1.442695
  %v4790 = vpow.pop %v4789
  %v4791 = vmul.f32 %v4763, 1.442695
  %v4792 = vpow.pop %v4791
  %v4793 = vmul.f32 %v4764, 1.442695
  %v4794 = vpow.pop %v4793
  %v4795 = vmul.f32 %v4765, 1.442695
  %v4796 = vpow.pop %v4795
  %v4797 = vmul.f32 %v4766, 1.442695
  %v4798 = vpow.pop %v4797
  %v4799 = vadd.f32 %v4768, 1.0
  %v4800 = vadd.f32 %v4770, 1.0
  %v4801 = vadd.f32 %v4772, 1.0
  %v4802 = vadd.f32 %v4774, 1.0
  %v4803 = vadd.f32 %v4776, 1.0
  %v4804 = vadd.f32 %v4778, 1.0
  %v4805 = vadd.f32 %v4780, 1.0
  %v4806 = vadd.f32 %v4782, 1.0
  %v4807 = vadd.f32 %v4784, 1.0
  %v4808 = vadd.f32 %v4786, 1.0
  %v4809 = vadd.f32 %v4788, 1.0
  %v4810 = vadd.f32 %v4790, 1.0
  %v4811 = vadd.f32 %v4792, 1.0
  %v4812 = vadd.f32 %v4794, 1.0
  %v4813 = vadd.f32 %v4796, 1.0
  %v4814 = vadd.f32 %v4798, 1.0
  %v4815 = vrcp.pop %v4799
  %v4816 = vmul.f32 %v4799, %v4815
  %v4817 = vsub.f32 1.0, %v4816
  %v4818 = vmul.f32 %v4815, %v4817
  %v4819 = vadd.f32 %v4815, %v4818
  %vm4820 = vweird.f32 %v4799
  %vm4821 = vweird.f32 %v4815
  %vm4822 = vmor %vm4820, %vm4821
  %v4823 = vsel %vm4822, %v4815, %v4819
  %v4824 = vand.u32 2147483647, %v4799
  %vm4825 = vcmp.eq.f32.partialorder %v4824, 8.507059e+37
  %v4826 = vand.u32 %v4799, 2147483648
  %v4827 = vor.u32 1.1754944e-38, %v4826
  %v4828 = vsel %vm4825, %v4827, %v4823
  %v4829 = vmul.f32 1.0, %v4828
  %v4830 = vrcp.pop %v4800
  %v4831 = vmul.f32 %v4800, %v4830
  %v4832 = vsub.f32 1.0, %v4831
  %v4833 = vmul.f32 %v4830, %v4832
  %v4834 = vadd.f32 %v4830, %v4833
  %vm4835 = vweird.f32 %v4800
  %vm4836 = vweird.f32 %v4830
  %vm4837 = vmor %vm4835, %vm4836
  %v4838 = vsel %vm4837, %v4830, %v4834
  %v4839 = vand.u32 2147483647, %v4800
  %vm4840 = vcmp.eq.f32.partialorder %v4839, 8.507059e+37
  %v4841 = vand.u32 %v4800, 2147483648
  %v4842 = vor.u32 1.1754944e-38, %v4841
  %v4843 = vsel %vm4840, %v4842, %v4838
  %v4844 = vmul.f32 1.0, %v4843
  %v4845 = vrcp.pop %v4801
  %v4846 = vmul.f32 %v4801, %v4845
  %v4847 = vsub.f32 1.0, %v4846
  %v4848 = vmul.f32 %v4845, %v4847
  %v4849 = vadd.f32 %v4845, %v4848
  %vm4850 = vweird.f32 %v4801
  %vm4851 = vweird.f32 %v4845
  %vm4852 = vmor %vm4850, %vm4851
  %v4853 = vsel %vm4852, %v4845, %v4849
  %v4854 = vand.u32 2147483647, %v4801
  %vm4855 = vcmp.eq.f32.partialorder %v4854, 8.507059e+37
  %v4856 = vand.u32 %v4801, 2147483648
  %v4857 = vor.u32 1.1754944e-38, %v4856
  %v4858 = vsel %vm4855, %v4857, %v4853
  %v4859 = vmul.f32 1.0, %v4858
  %v4860 = vrcp.pop %v4802
  %v4861 = vmul.f32 %v4802, %v4860
  %v4862 = vsub.f32 1.0, %v4861
  %v4863 = vmul.f32 %v4860, %v4862
  %v4864 = vadd.f32 %v4860, %v4863
  %vm4865 = vweird.f32 %v4802
  %vm4866 = vweird.f32 %v4860
  %vm4867 = vmor %vm4865, %vm4866
  %v4868 = vsel %vm4867, %v4860, %v4864
  %v4869 = vand.u32 2147483647, %v4802
  %vm4870 = vcmp.eq.f32.partialorder %v4869, 8.507059e+37
  %v4871 = vand.u32 %v4802, 2147483648
  %v4872 = vor.u32 1.1754944e-38, %v4871
  %v4873 = vsel %vm4870, %v4872, %v4868
  %v4874 = vmul.f32 1.0, %v4873
  %v4875 = vrcp.pop %v4803
  %v4876 = vmul.f32 %v4803, %v4875
  %v4877 = vsub.f32 1.0, %v4876
  %v4878 = vmul.f32 %v4875, %v4877
  %v4879 = vadd.f32 %v4875, %v4878
  %vm4880 = vweird.f32 %v4803
  %vm4881 = vweird.f32 %v4875
  %vm4882 = vmor %vm4880, %vm4881
  %v4883 = vsel %vm4882, %v4875, %v4879
  %v4884 = vand.u32 2147483647, %v4803
  %vm4885 = vcmp.eq.f32.partialorder %v4884, 8.507059e+37
  %v4886 = vand.u32 %v4803, 2147483648
  %v4887 = vor.u32 1.1754944e-38, %v4886
  %v4888 = vsel %vm4885, %v4887, %v4883
  %v4889 = vmul.f32 1.0, %v4888
  %v4890 = vrcp.pop %v4804
  %v4891 = vmul.f32 %v4804, %v4890
  %v4892 = vsub.f32 1.0, %v4891
  %v4893 = vmul.f32 %v4890, %v4892
  %v4894 = vadd.f32 %v4890, %v4893
  %vm4895 = vweird.f32 %v4804
  %vm4896 = vweird.f32 %v4890
  %vm4897 = vmor %vm4895, %vm4896
  %v4898 = vsel %vm4897, %v4890, %v4894
  %v4899 = vand.u32 2147483647, %v4804
  %vm4900 = vcmp.eq.f32.partialorder %v4899, 8.507059e+37
  %v4901 = vand.u32 %v4804, 2147483648
  %v4902 = vor.u32 1.1754944e-38, %v4901
  %v4903 = vsel %vm4900, %v4902, %v4898
  %v4904 = vmul.f32 1.0, %v4903
  %v4905 = vrcp.pop %v4805
  %v4906 = vmul.f32 %v4805, %v4905
  %v4907 = vsub.f32 1.0, %v4906
  %v4908 = vmul.f32 %v4905, %v4907
  %v4909 = vadd.f32 %v4905, %v4908
  %vm4910 = vweird.f32 %v4805
  %vm4911 = vweird.f32 %v4905
  %vm4912 = vmor %vm4910, %vm4911
  %v4913 = vsel %vm4912, %v4905, %v4909
  %v4914 = vand.u32 2147483647, %v4805
  %vm4915 = vcmp.eq.f32.partialorder %v4914, 8.507059e+37
  %v4916 = vand.u32 %v4805, 2147483648
  %v4917 = vor.u32 1.1754944e-38, %v4916
  %v4918 = vsel %vm4915, %v4917, %v4913
  %v4919 = vmul.f32 1.0, %v4918
  %v4920 = vrcp.pop %v4806
  %v4921 = vmul.f32 %v4806, %v4920
  %v4922 = vsub.f32 1.0, %v4921
  %v4923 = vmul.f32 %v4920, %v4922
  %v4924 = vadd.f32 %v4920, %v4923
  %vm4925 = vweird.f32 %v4806
  %vm4926 = vweird.f32 %v4920
  %vm4927 = vmor %vm4925, %vm4926
  %v4928 = vsel %vm4927, %v4920, %v4924
  %v4929 = vand.u32 2147483647, %v4806
  %vm4930 = vcmp.eq.f32.partialorder %v4929, 8.507059e+37
  %v4931 = vand.u32 %v4806, 2147483648
  %v4932 = vor.u32 1.1754944e-38, %v4931
  %v4933 = vsel %vm4930, %v4932, %v4928
  %v4934 = vmul.f32 1.0, %v4933
  %v4935 = vrcp.pop %v4807
  %v4936 = vmul.f32 %v4807, %v4935
  %v4937 = vsub.f32 1.0, %v4936
  %v4938 = vmul.f32 %v4935, %v4937
  %v4939 = vadd.f32 %v4935, %v4938
  %vm4940 = vweird.f32 %v4807
  %vm4941 = vweird.f32 %v4935
  %vm4942 = vmor %vm4940, %vm4941
  %v4943 = vsel %vm4942, %v4935, %v4939
  %v4944 = vand.u32 2147483647, %v4807
  %vm4945 = vcmp.eq.f32.partialorder %v4944, 8.507059e+37
  %v4946 = vand.u32 %v4807, 2147483648
  %v4947 = vor.u32 1.1754944e-38, %v4946
  %v4948 = vsel %vm4945, %v4947, %v4943
  %v4949 = vmul.f32 1.0, %v4948
  %v4950 = vrcp.pop %v4808
  %v4951 = vmul.f32 %v4808, %v4950
  %v4952 = vsub.f32 1.0, %v4951
  %v4953 = vmul.f32 %v4950, %v4952
  %v4954 = vadd.f32 %v4950, %v4953
  %vm4955 = vweird.f32 %v4808
  %vm4956 = vweird.f32 %v4950
  %vm4957 = vmor %vm4955, %vm4956
  %v4958 = vsel %vm4957, %v4950, %v4954
  %v4959 = vand.u32 2147483647, %v4808
  %vm4960 = vcmp.eq.f32.partialorder %v4959, 8.507059e+37
  %v4961 = vand.u32 %v4808, 2147483648
  %v4962 = vor.u32 1.1754944e-38, %v4961
  %v4963 = vsel %vm4960, %v4962, %v4958
  %v4964 = vmul.f32 1.0, %v4963
  %v4965 = vrcp.pop %v4809
  %v4966 = vmul.f32 %v4809, %v4965
  %v4967 = vsub.f32 1.0, %v4966
  %v4968 = vmul.f32 %v4965, %v4967
  %v4969 = vadd.f32 %v4965, %v4968
  %vm4970 = vweird.f32 %v4809
  %vm4971 = vweird.f32 %v4965
  %vm4972 = vmor %vm4970, %vm4971
  %v4973 = vsel %vm4972, %v4965, %v4969
  %v4974 = vand.u32 2147483647, %v4809
  %vm4975 = vcmp.eq.f32.partialorder %v4974, 8.507059e+37
  %v4976 = vand.u32 %v4809, 2147483648
  %v4977 = vor.u32 1.1754944e-38, %v4976
  %v4978 = vsel %vm4975, %v4977, %v4973
  %v4979 = vmul.f32 1.0, %v4978
  %v4980 = vrcp.pop %v4810
  %v4981 = vmul.f32 %v4810, %v4980
  %v4982 = vsub.f32 1.0, %v4981
  %v4983 = vmul.f32 %v4980, %v4982
  %v4984 = vadd.f32 %v4980, %v4983
  %vm4985 = vweird.f32 %v4810
  %vm4986 = vweird.f32 %v4980
  %vm4987 = vmor %vm4985, %vm4986
  %v4988 = vsel %vm4987, %v4980, %v4984
  %v4989 = vand.u32 2147483647, %v4810
  %vm4990 = vcmp.eq.f32.partialorder %v4989, 8.507059e+37
  %v4991 = vand.u32 %v4810, 2147483648
  %v4992 = vor.u32 1.1754944e-38, %v4991
  %v4993 = vsel %vm4990, %v4992, %v4988
  %v4994 = vmul.f32 1.0, %v4993
  %v4995 = vrcp.pop %v4811
  %v4996 = vmul.f32 %v4811, %v4995
  %v4997 = vsub.f32 1.0, %v4996
  %v4998 = vmul.f32 %v4995, %v4997
  %v4999 = vadd.f32 %v4995, %v4998
  %vm5000 = vweird.f32 %v4811
  %vm5001 = vweird.f32 %v4995
  %vm5002 = vmor %vm5000, %vm5001
  %v5003 = vsel %vm5002, %v4995, %v4999
  %v5004 = vand.u32 2147483647, %v4811
  %vm5005 = vcmp.eq.f32.partialorder %v5004, 8.507059e+37
  %v5006 = vand.u32 %v4811, 2147483648
  %v5007 = vor.u32 1.1754944e-38, %v5006
  %v5008 = vsel %vm5005, %v5007, %v5003
  %v5009 = vmul.f32 1.0, %v5008
  %v5010 = vrcp.pop %v4812
  %v5011 = vmul.f32 %v4812, %v5010
  %v5012 = vsub.f32 1.0, %v5011
  %v5013 = vmul.f32 %v5010, %v5012
  %v5014 = vadd.f32 %v5010, %v5013
  %vm5015 = vweird.f32 %v4812
  %vm5016 = vweird.f32 %v5010
  %vm5017 = vmor %vm5015, %vm5016
  %v5018 = vsel %vm5017, %v5010, %v5014
  %v5019 = vand.u32 2147483647, %v4812
  %vm5020 = vcmp.eq.f32.partialorder %v5019, 8.507059e+37
  %v5021 = vand.u32 %v4812, 2147483648
  %v5022 = vor.u32 1.1754944e-38, %v5021
  %v5023 = vsel %vm5020, %v5022, %v5018
  %v5024 = vmul.f32 1.0, %v5023
  %v5025 = vrcp.pop %v4813
  %v5026 = vmul.f32 %v4813, %v5025
  %v5027 = vsub.f32 1.0, %v5026
  %v5028 = vmul.f32 %v5025, %v5027
  %v5029 = vadd.f32 %v5025, %v5028
  %vm5030 = vweird.f32 %v4813
  %vm5031 = vweird.f32 %v5025
  %vm5032 = vmor %vm5030, %vm5031
  %v5033 = vsel %vm5032, %v5025, %v5029
  %v5034 = vand.u32 2147483647, %v4813
  %vm5035 = vcmp.eq.f32.partialorder %v5034, 8.507059e+37
  %v5036 = vand.u32 %v4813, 2147483648
  %v5037 = vor.u32 1.1754944e-38, %v5036
  %v5038 = vsel %vm5035, %v5037, %v5033
  %v5039 = vmul.f32 1.0, %v5038
  %v5040 = vrcp.pop %v4814
  %v5041 = vmul.f32 %v4814, %v5040
  %v5042 = vsub.f32 1.0, %v5041
  %v5043 = vmul.f32 %v5040, %v5042
  %v5044 = vadd.f32 %v5040, %v5043
  %vm5045 = vweird.f32 %v4814
  %vm5046 = vweird.f32 %v5040
  %vm5047 = vmor %vm5045, %vm5046
  %v5048 = vsel %vm5047, %v5040, %v5044
  %v5049 = vand.u32 2147483647, %v4814
  %vm5050 = vcmp.eq.f32.partialorder %v5049, 8.507059e+37
  %v5051 = vand.u32 %v4814, 2147483648
  %v5052 = vor.u32 1.1754944e-38, %v5051
  %v5053 = vsel %vm5050, %v5052, %v5048
  %v5054 = vmul.f32 1.0, %v5053
  %v5055 = vld [vmem:[%s2 + $0x80] sm:$0xff]
  %v5056 = vld [vmem:[%s2 + $0x88] sm:$0xff]
  %v5057 = vld [vmem:[%s2 + $0x90] sm:$0xff]
  %v5058 = vld [vmem:[%s2 + $0x98] sm:$0xff]
  %v5059 = vld [vmem:[#allocation2 + $0x700] sm:$0xff]
  %v5060 = vld [vmem:[#allocation2 + $0x708] sm:$0xff]
  %v5061 = vld [vmem:[#allocation2 + $0x710] sm:$0xff]
  %v5062 = vld [vmem:[#allocation2 + $0x718] sm:$0xff]
  %v5063 = vld [vmem:[#allocation2 + $0x720] sm:$0xff]
  %v5064 = vld [vmem:[#allocation2 + $0x728] sm:$0xff]
  %v5065 = vld [vmem:[#allocation2 + $0x730] sm:$0xff]
  %v5066 = vld [vmem:[#allocation2 + $0x738] sm:$0xff]
  %v5067 = vld [vmem:[#allocation2 + $0x740] sm:$0xff]
  %v5068 = vld [vmem:[#allocation2 + $0x748] sm:$0xff]
  %v5069 = vld [vmem:[#allocation2 + $0x750] sm:$0xff]
  %v5070 = vld [vmem:[#allocation2 + $0x758] sm:$0xff]
  %v5071 = vld [vmem:[#allocation2 + $0x760] sm:$0xff]
  %v5072 = vld [vmem:[#allocation2 + $0x768] sm:$0xff]
  %v5073 = vld [vmem:[#allocation2 + $0x770] sm:$0xff]
  %v5074 = vld [vmem:[#allocation2 + $0x778] sm:$0xff]
  %5076 = vset.pattern.permute.xlu0 0
  %5077 = vperm.xlu0 %5076, %v5055
  %v5078 = vpop.permute.xlu0 %5077
  %5081 = vset.pattern.permute.xlu0 0
  %5082 = vperm.xlu0 %5081, %v5056
  %v5083 = vpop.permute.xlu0 %5082
  %5086 = vset.pattern.permute.xlu0 0
  %5087 = vperm.xlu0 %5086, %v5057
  %v5088 = vpop.permute.xlu0 %5087
  %5091 = vset.pattern.permute.xlu0 0
  %5092 = vperm.xlu0 %5091, %v5058
  %v5093 = vpop.permute.xlu0 %5092
  %v5095 = vmul.f32 %v4829, %v5078
  %v5096 = vmul.f32 %v4844, %v5078
  %v5097 = vmul.f32 %v4859, %v5078
  %v5098 = vmul.f32 %v4874, %v5078
  %v5099 = vmul.f32 %v4889, %v5083
  %v5100 = vmul.f32 %v4904, %v5083
  %v5101 = vmul.f32 %v4919, %v5083
  %v5102 = vmul.f32 %v4934, %v5083
  %v5103 = vmul.f32 %v4949, %v5088
  %v5104 = vmul.f32 %v4964, %v5088
  %v5105 = vmul.f32 %v4979, %v5088
  %v5106 = vmul.f32 %v4994, %v5088
  %v5107 = vmul.f32 %v5009, %v5093
  %v5108 = vmul.f32 %v5024, %v5093
  %v5109 = vmul.f32 %v5039, %v5093
  %v5110 = vmul.f32 %v5054, %v5093
  %v5111 = vadd.f32 %v5059, %v5095
  %v5112 = vadd.f32 %v5060, %v5096
  %v5113 = vadd.f32 %v5061, %v5097
  %v5114 = vadd.f32 %v5062, %v5098
  %v5115 = vadd.f32 %v5063, %v5099
  %v5116 = vadd.f32 %v5064, %v5100
  %v5117 = vadd.f32 %v5065, %v5101
  %v5118 = vadd.f32 %v5066, %v5102
  %v5119 = vadd.f32 %v5067, %v5103
  %v5120 = vadd.f32 %v5068, %v5104
  %v5121 = vadd.f32 %v5069, %v5105
  %v5122 = vadd.f32 %v5070, %v5106
  %v5123 = vadd.f32 %v5071, %v5107
  %v5124 = vadd.f32 %v5072, %v5108
  %v5125 = vadd.f32 %v5073, %v5109
  %v5126 = vadd.f32 %v5074, %v5110
  %v5127 = vtanh.pop %v5111
  %v5128 = vtanh.pop %v5112
  %v5129 = vtanh.pop %v5113
  %v5130 = vtanh.pop %v5114
  %v5131 = vtanh.pop %v5115
  %v5132 = vtanh.pop %v5116
  %v5133 = vtanh.pop %v5117
  %v5134 = vtanh.pop %v5118
  %v5135 = vtanh.pop %v5119
  %v5136 = vtanh.pop %v5120
  %v5137 = vtanh.pop %v5121
  %v5138 = vtanh.pop %v5122
  %v5139 = vtanh.pop %v5123
  %v5140 = vtanh.pop %v5124
  %v5141 = vtanh.pop %v5125
  %v5142 = vtanh.pop %v5126
  %v5143 = vsub.f32 1.0, %v4509
  %v5144 = vsub.f32 1.0, %v4524
  %v5145 = vsub.f32 1.0, %v4539
  %v5146 = vsub.f32 1.0, %v4554
  %v5147 = vsub.f32 1.0, %v4569
  %v5148 = vsub.f32 1.0, %v4584
  %v5149 = vsub.f32 1.0, %v4599
  %v5150 = vsub.f32 1.0, %v4614
  %v5151 = vsub.f32 1.0, %v4629
  %v5152 = vsub.f32 1.0, %v4644
  %v5153 = vsub.f32 1.0, %v4659
  %v5154 = vsub.f32 1.0, %v4674
  %v5155 = vsub.f32 1.0, %v4689
  %v5156 = vsub.f32 1.0, %v4704
  %v5157 = vsub.f32 1.0, %v4719
  %v5158 = vsub.f32 1.0, %v4734
  %v5159 = vmul.f32 %v5143, %v5127
  %v5160 = vmul.f32 %v5144, %v5128
  %v5161 = vmul.f32 %v5145, %v5129
  %v5162 = vmul.f32 %v5146, %v5130
  %v5163 = vmul.f32 %v5147, %v5131
  %v5164 = vmul.f32 %v5148, %v5132
  %v5165 = vmul.f32 %v5149, %v5133
  %v5166 = vmul.f32 %v5150, %v5134
  %v5167 = vmul.f32 %v5151, %v5135
  %v5168 = vmul.f32 %v5152, %v5136
  %v5169 = vmul.f32 %v5153, %v5137
  %v5170 = vmul.f32 %v5154, %v5138
  %v5171 = vmul.f32 %v5155, %v5139
  %v5172 = vmul.f32 %v5156, %v5140
  %v5173 = vmul.f32 %v5157, %v5141
  %v5174 = vmul.f32 %v5158, %v5142
  %v5175 = vpack.c.bf16 %v5160, %v5159
  %v5176 = vpack.c.bf16 %v5162, %v5161
  %v5177 = vpack.c.bf16 %v5164, %v5163
  %v5178 = vpack.c.bf16 %v5166, %v5165
  %v5179 = vpack.c.bf16 %v5168, %v5167
  %v5180 = vpack.c.bf16 %v5170, %v5169
  %v5181 = vpack.c.bf16 %v5172, %v5171
  %v5182 = vpack.c.bf16 %v5174, %v5173
  %5183 = vst [vmem:[#allocation3 + $0x100] sm:$0xff] %v5175
  %5184 = vst [vmem:[#allocation3 + $0x108] sm:$0xff] %v5176
  %5185 = vst [vmem:[#allocation3 + $0x110] sm:$0xff] %v5177
  %5186 = vst [vmem:[#allocation3 + $0x118] sm:$0xff] %v5178
  %5187 = vst [vmem:[#allocation3 + $0x120] sm:$0xff] %v5179
  %5188 = vst [vmem:[#allocation3 + $0x128] sm:$0xff] %v5180
  %5189 = vst [vmem:[#allocation3 + $0x130] sm:$0xff] %v5181
  %5190 = vst [vmem:[#allocation3 + $0x138] sm:$0xff] %v5182
  %5191 = vst [vmem:[%s7 + $0x100] sm:$0xff] %v5161
  %5192 = vst [vmem:[%s7 + $0x108] sm:$0xff] %v5162
  %5193 = vst [vmem:[%s7 + $0x110] sm:$0xff] %v5165
  %5194 = vst [vmem:[%s7 + $0x118] sm:$0xff] %v5166
  %5195 = vst [vmem:[%s7 + $0x120] sm:$0xff] %v5169
  %5196 = vst [vmem:[%s7 + $0x128] sm:$0xff] %v5170
  %5197 = vst [vmem:[%s7 + $0x130] sm:$0xff] %v5173
  %5198 = vst [vmem:[%s7 + $0x138] sm:$0xff] %v5174
  %v5199 = vld [vmem:[%s3] sm:$0x77]
  %v5200 = vld [vmem:[#allocation3] sm:$0xff]
  %v5201 = vld [vmem:[#allocation3 + $0x8] sm:$0xff]
  %v5202 = vld [vmem:[#allocation3 + $0x10] sm:$0xff]
  %v5203 = vld [vmem:[#allocation3 + $0x18] sm:$0xff]
  %v5204 = vld [vmem:[#allocation3 + $0x20] sm:$0xff]
  %v5205 = vld [vmem:[#allocation3 + $0x28] sm:$0xff]
  %v5206 = vld [vmem:[#allocation3 + $0x30] sm:$0xff]
  %v5207 = vld [vmem:[#allocation3 + $0x38] sm:$0xff]
  %v5208 = vld [vmem:[#allocation3 + $0x40] sm:$0xff]
  %v5209 = vld [vmem:[#allocation3 + $0x48] sm:$0xff]
  %v5210 = vld [vmem:[#allocation3 + $0x50] sm:$0xff]
  %v5211 = vld [vmem:[#allocation3 + $0x58] sm:$0xff]
  %v5212 = vld [vmem:[#allocation3 + $0x60] sm:$0xff]
  %v5213 = vld [vmem:[#allocation3 + $0x68] sm:$0xff]
  %v5214 = vld [vmem:[#allocation3 + $0x70] sm:$0xff]
  %v5215 = vld [vmem:[#allocation3 + $0x78] sm:$0xff]
  %v5216 = vld [vmem:[#allocation3 + $0x80] sm:$0xff]
  %v5217 = vld [vmem:[#allocation3 + $0x88] sm:$0xff]
  %v5218 = vld [vmem:[#allocation3 + $0x90] sm:$0xff]
  %v5219 = vld [vmem:[#allocation3 + $0x98] sm:$0xff]
  %v5220 = vld [vmem:[#allocation3 + $0xa0] sm:$0xff]
  %v5221 = vld [vmem:[#allocation3 + $0xa8] sm:$0xff]
  %v5222 = vld [vmem:[#allocation3 + $0xb0] sm:$0xff]
  %v5223 = vld [vmem:[#allocation3 + $0xb8] sm:$0xff]
  %v5224 = vld [vmem:[#allocation3 + $0xc0] sm:$0xff]
  %v5225 = vld [vmem:[#allocation3 + $0xc8] sm:$0xff]
  %v5226 = vld [vmem:[#allocation3 + $0xd0] sm:$0xff]
  %v5227 = vld [vmem:[#allocation3 + $0xd8] sm:$0xff]
  %v5228 = vld [vmem:[#allocation3 + $0xe0] sm:$0xff]
  %v5229 = vld [vmem:[#allocation3 + $0xe8] sm:$0xff]
  %v5230 = vld [vmem:[#allocation3 + $0xf0] sm:$0xff]
  %v5231 = vld [vmem:[#allocation3 + $0xf8] sm:$0xff]
  %v5232 = vld [vmem:[#allocation3 + $0x100] sm:$0xff]
  %v5233 = vld [vmem:[#allocation3 + $0x108] sm:$0xff]
  %v5234 = vld [vmem:[#allocation3 + $0x110] sm:$0xff]
  %v5235 = vld [vmem:[#allocation3 + $0x118] sm:$0xff]
  %v5236 = vld [vmem:[#allocation3 + $0x120] sm:$0xff]
  %v5237 = vld [vmem:[#allocation3 + $0x128] sm:$0xff]
  %v5238 = vld [vmem:[#allocation3 + $0x130] sm:$0xff]
  %v5239 = vld [vmem:[#allocation3 + $0x138] sm:$0xff]
  %v5240 = vld [vmem:[%s4] sm:$0x1f]
  %5242 = vset.pattern.permute.xlu0 0
  %5243 = vperm.xlu0 %5242, %v5240
  %v5244 = vpop.permute.xlu0 %5243
  %v5247 = vunpack.c.l.b16 %v5199
  %v5248 = vunpack.c.h.b16 %v5199
  %v5249 = vpack.c.b16 %v5247, %v5247
  %v5250 = vpack.c.b16 %v5248, %v5248
  %v5292 = vunpack.c.l.b16 %v5200
  %v5293 = vunpack.c.h.b16 %v5200
  %v5294 = vunpack.c.l.b16 %v5201
  %v5295 = vunpack.c.h.b16 %v5201
  %v5296 = vunpack.c.l.b16 %v5202
  %v5297 = vunpack.c.h.b16 %v5202
  %v5298 = vunpack.c.l.b16 %v5203
  %v5299 = vunpack.c.h.b16 %v5203
  %v5300 = vunpack.c.l.b16 %v5204
  %v5301 = vunpack.c.h.b16 %v5204
  %v5302 = vunpack.c.l.b16 %v5205
  %v5303 = vunpack.c.h.b16 %v5205
  %v5304 = vunpack.c.l.b16 %v5206
  %v5305 = vunpack.c.h.b16 %v5206
  %v5306 = vunpack.c.l.b16 %v5207
  %v5307 = vunpack.c.h.b16 %v5207
  %v5308 = vunpack.c.l.b16 %v5208
  %v5309 = vunpack.c.h.b16 %v5208
  %v5310 = vunpack.c.l.b16 %v5209
  %v5311 = vunpack.c.h.b16 %v5209
  %v5312 = vunpack.c.l.b16 %v5210
  %v5313 = vunpack.c.h.b16 %v5210
  %v5314 = vunpack.c.l.b16 %v5211
  %v5315 = vunpack.c.h.b16 %v5211
  %v5316 = vunpack.c.l.b16 %v5212
  %v5317 = vunpack.c.h.b16 %v5212
  %v5318 = vunpack.c.l.b16 %v5213
  %v5319 = vunpack.c.h.b16 %v5213
  %v5320 = vunpack.c.l.b16 %v5214
  %v5321 = vunpack.c.h.b16 %v5214
  %v5322 = vunpack.c.l.b16 %v5215
  %v5323 = vunpack.c.h.b16 %v5215
  %v5324 = vunpack.c.l.b16 %v5216
  %v5325 = vunpack.c.h.b16 %v5216
  %v5326 = vunpack.c.l.b16 %v5217
  %v5327 = vunpack.c.h.b16 %v5217
  %v5328 = vunpack.c.l.b16 %v5218
  %v5329 = vunpack.c.h.b16 %v5218
  %v5330 = vunpack.c.l.b16 %v5219
  %v5331 = vunpack.c.h.b16 %v5219
  %v5332 = vunpack.c.l.b16 %v5220
  %v5333 = vunpack.c.h.b16 %v5220
  %v5334 = vunpack.c.l.b16 %v5221
  %v5335 = vunpack.c.h.b16 %v5221
  %v5336 = vunpack.c.l.b16 %v5222
  %v5337 = vunpack.c.h.b16 %v5222
  %v5338 = vunpack.c.l.b16 %v5223
  %v5339 = vunpack.c.h.b16 %v5223
  %v5340 = vunpack.c.l.b16 %v5224
  %v5341 = vunpack.c.h.b16 %v5224
  %v5342 = vunpack.c.l.b16 %v5225
  %v5343 = vunpack.c.h.b16 %v5225
  %v5344 = vunpack.c.l.b16 %v5226
  %v5345 = vunpack.c.h.b16 %v5226
  %v5346 = vunpack.c.l.b16 %v5227
  %v5347 = vunpack.c.h.b16 %v5227
  %v5348 = vunpack.c.l.b16 %v5228
  %v5349 = vunpack.c.h.b16 %v5228
  %v5350 = vunpack.c.l.b16 %v5229
  %v5351 = vunpack.c.h.b16 %v5229
  %v5352 = vunpack.c.l.b16 %v5230
  %v5353 = vunpack.c.h.b16 %v5230
  %v5354 = vunpack.c.l.b16 %v5231
  %v5355 = vunpack.c.h.b16 %v5231
  %v5356 = vunpack.c.l.b16 %v5232
  %v5357 = vunpack.c.h.b16 %v5232
  %v5358 = vunpack.c.l.b16 %v5233
  %v5359 = vunpack.c.h.b16 %v5233
  %v5360 = vunpack.c.l.b16 %v5234
  %v5361 = vunpack.c.h.b16 %v5234
  %v5362 = vunpack.c.l.b16 %v5235
  %v5363 = vunpack.c.h.b16 %v5235
  %v5364 = vunpack.c.l.b16 %v5236
  %v5365 = vunpack.c.h.b16 %v5236
  %v5366 = vunpack.c.l.b16 %v5237
  %v5367 = vunpack.c.h.b16 %v5237
  %v5368 = vunpack.c.l.b16 %v5238
  %v5369 = vunpack.c.h.b16 %v5238
  %v5370 = vunpack.c.l.b16 %v5239
  %v5371 = vunpack.c.h.b16 %v5239
  %v5372 = vpack.c.b16 %v5296, %v5292
  %v5373 = vpack.c.b16 %v5297, %v5293
  %v5374 = vpack.c.b16 %v5298, %v5294
  %v5375 = vpack.c.b16 %v5299, %v5295
  %v5376 = vpack.c.b16 %v5304, %v5300
  %v5377 = vpack.c.b16 %v5305, %v5301
  %v5378 = vpack.c.b16 %v5306, %v5302
  %v5379 = vpack.c.b16 %v5307, %v5303
  %v5380 = vpack.c.b16 %v5312, %v5308
  %v5381 = vpack.c.b16 %v5313, %v5309
  %v5382 = vpack.c.b16 %v5314, %v5310
  %v5383 = vpack.c.b16 %v5315, %v5311
  %v5384 = vpack.c.b16 %v5320, %v5316
  %v5385 = vpack.c.b16 %v5321, %v5317
  %v5386 = vpack.c.b16 %v5322, %v5318
  %v5387 = vpack.c.b16 %v5323, %v5319
  %v5388 = vpack.c.b16 %v5328, %v5324
  %v5389 = vpack.c.b16 %v5329, %v5325
  %v5390 = vpack.c.b16 %v5330, %v5326
  %v5391 = vpack.c.b16 %v5331, %v5327
  %v5392 = vpack.c.b16 %v5336, %v5332
  %v5393 = vpack.c.b16 %v5337, %v5333
  %v5394 = vpack.c.b16 %v5338, %v5334
  %v5395 = vpack.c.b16 %v5339, %v5335
  %v5396 = vpack.c.b16 %v5344, %v5340
  %v5397 = vpack.c.b16 %v5345, %v5341
  %v5398 = vpack.c.b16 %v5346, %v5342
  %v5399 = vpack.c.b16 %v5347, %v5343
  %v5400 = vpack.c.b16 %v5352, %v5348
  %v5401 = vpack.c.b16 %v5353, %v5349
  %v5402 = vpack.c.b16 %v5354, %v5350
  %v5403 = vpack.c.b16 %v5355, %v5351
  %v5404 = vpack.c.b16 %v5360, %v5356
  %v5405 = vpack.c.b16 %v5361, %v5357
  %v5406 = vpack.c.b16 %v5362, %v5358
  %v5407 = vpack.c.b16 %v5363, %v5359
  %v5408 = vpack.c.b16 %v5368, %v5364
  %v5409 = vpack.c.b16 %v5369, %v5365
  %v5410 = vpack.c.b16 %v5370, %v5366
  %v5411 = vpack.c.b16 %v5371, %v5367
  %vm5452 = vcmask 261120
  %v5454 = vsel %vm5452, %v5250, 0
  %5456 = vmatpush.bf16.msra.mxu0 %v5400
  %5457 = vmatpush.bf16.msra.mxu0 %v5396
  %5458 = vmatpush.bf16.msra.mxu0 %v5392
  %5459 = vmatpush.bf16.msra.mxu0 %v5388
  %5460 = vmatpush.bf16.msra.mxu0 %v5384
  %5461 = vmatpush.bf16.msra.mxu0 %v5380
  %5462 = vmatpush.bf16.msra.mxu0 %v5376
  %5463 = vmatpush.bf16.msra.mxu0 %v5372
  %5464 = vmatmul.bf16.gmra.mxu0 %v5249
  %v5465 = vpop.f32.mrf.mxu0
  %v5466 = vadd.f32 %v5244, %v5465
  %v5467 = vpop.f32.mrf.mxu0
  %5468 = vdwg.mxu0
  %5469 = vmatpush.bf16.msra.mxu0 0
  %5470 = vmatpush.bf16.msra.mxu0 0
  %5471 = vmatpush.bf16.msra.mxu0 0
  %5472 = vmatpush.bf16.msra.mxu0 0
  %5473 = vmatpush.bf16.msra.mxu0 0
  %5474 = vmatpush.bf16.msra.mxu0 0
  %5475 = vmatpush.bf16.msra.mxu0 %v5408
  %5476 = vmatpush.bf16.msra.mxu0 %v5404
  %5477 = vmatmul.bf16.gmra.mxu0 %v5454
  %v5478 = vpop.f32.mrf.mxu0
  %v5479 = vadd.f32 %v5466, %v5478
  %v5480 = vpop.f32.mrf.mxu0
  %5481 = vdwg.mxu0
  %5482 = vmatpush.bf16.msra.mxu0 %v5401
  %5483 = vmatpush.bf16.msra.mxu0 %v5397
  %5484 = vmatpush.bf16.msra.mxu0 %v5393
  %5485 = vmatpush.bf16.msra.mxu0 %v5389
  %5486 = vmatpush.bf16.msra.mxu0 %v5385
  %5487 = vmatpush.bf16.msra.mxu0 %v5381
  %5488 = vmatpush.bf16.msra.mxu0 %v5377
  %5489 = vmatpush.bf16.msra.mxu0 %v5373
  %5490 = vmatmul.bf16.gmra.mxu0 %v5249
  %v5491 = vpop.f32.mrf.mxu0
  %v5492 = vadd.f32 %v5244, %v5491
  %v5493 = vpop.f32.mrf.mxu0
  %5494 = vdwg.mxu0
  %5495 = vmatpush.bf16.msra.mxu0 0
  %5496 = vmatpush.bf16.msra.mxu0 0
  %5497 = vmatpush.bf16.msra.mxu0 0
  %5498 = vmatpush.bf16.msra.mxu0 0
  %5499 = vmatpush.bf16.msra.mxu0 0
  %5500 = vmatpush.bf16.msra.mxu0 0
  %5501 = vmatpush.bf16.msra.mxu0 %v5409
  %5502 = vmatpush.bf16.msra.mxu0 %v5405
  %5503 = vmatmul.bf16.gmra.mxu0 %v5454
  %v5504 = vpop.f32.mrf.mxu0
  %v5505 = vadd.f32 %v5492, %v5504
  %v5506 = vpop.f32.mrf.mxu0
  %5507 = vdwg.mxu0
  %5508 = vmatpush.bf16.msra.mxu0 %v5402
  %5509 = vmatpush.bf16.msra.mxu0 %v5398
  %5510 = vmatpush.bf16.msra.mxu0 %v5394
  %5511 = vmatpush.bf16.msra.mxu0 %v5390
  %5512 = vmatpush.bf16.msra.mxu0 %v5386
  %5513 = vmatpush.bf16.msra.mxu0 %v5382
  %5514 = vmatpush.bf16.msra.mxu0 %v5378
  %5515 = vmatpush.bf16.msra.mxu0 %v5374
  %5516 = vmatmul.bf16.gmra.mxu0 %v5249
  %v5517 = vpop.f32.mrf.mxu0
  %v5518 = vadd.f32 %v5244, %v5517
  %v5519 = vpop.f32.mrf.mxu0
  %5520 = vdwg.mxu0
  %5521 = vmatpush.bf16.msra.mxu0 0
  %5522 = vmatpush.bf16.msra.mxu0 0
  %5523 = vmatpush.bf16.msra.mxu0 0
  %5524 = vmatpush.bf16.msra.mxu0 0
  %5525 = vmatpush.bf16.msra.mxu0 0
  %5526 = vmatpush.bf16.msra.mxu0 0
  %5527 = vmatpush.bf16.msra.mxu0 %v5410
  %5528 = vmatpush.bf16.msra.mxu0 %v5406
  %5529 = vmatmul.bf16.gmra.mxu0 %v5454
  %v5530 = vpop.f32.mrf.mxu0
  %v5531 = vadd.f32 %v5518, %v5530
  %v5532 = vpop.f32.mrf.mxu0
  %5533 = vdwg.mxu0
  %5534 = vmatpush.bf16.msra.mxu0 %v5403
  %5535 = vmatpush.bf16.msra.mxu0 %v5399
  %5536 = vmatpush.bf16.msra.mxu0 %v5395
  %5537 = vmatpush.bf16.msra.mxu0 %v5391
  %5538 = vmatpush.bf16.msra.mxu0 %v5387
  %5539 = vmatpush.bf16.msra.mxu0 %v5383
  %5540 = vmatpush.bf16.msra.mxu0 %v5379
  %5541 = vmatpush.bf16.msra.mxu0 %v5375
  %5542 = vmatmul.bf16.gmra.mxu0 %v5249
  %v5543 = vpop.f32.mrf.mxu0
  %v5544 = vadd.f32 %v5244, %v5543
  %v5545 = vpop.f32.mrf.mxu0
  %5546 = vdwg.mxu0
  %5547 = vmatpush.bf16.msra.mxu0 0
  %5548 = vmatpush.bf16.msra.mxu0 0
  %5549 = vmatpush.bf16.msra.mxu0 0
  %5550 = vmatpush.bf16.msra.mxu0 0
  %5551 = vmatpush.bf16.msra.mxu0 0
  %5552 = vmatpush.bf16.msra.mxu0 0
  %5553 = vmatpush.bf16.msra.mxu0 %v5411
  %5554 = vmatpush.bf16.msra.mxu0 %v5407
  %5555 = vmatmul.bf16.gmra.mxu0 %v5454
  %v5556 = vpop.f32.mrf.mxu0
  %v5557 = vadd.f32 %v5544, %v5556
  %v5558 = vpop.f32.mrf.mxu0
  %5559 = vdwg.mxu0
  %v5560 = vxor.u32 %v5479, 2147483648
  %v5561 = vxor.u32 %v5505, 2147483648
  %v5562 = vxor.u32 %v5531, 2147483648
  %v5563 = vxor.u32 %v5557, 2147483648
  %v5564 = vmul.f32 %v5560, 1.442695
  %v5565 = vpow.pop %v5564
  %v5566 = vmul.f32 %v5561, 1.442695
  %v5567 = vpow.pop %v5566
  %v5568 = vmul.f32 %v5562, 1.442695
  %v5569 = vpow.pop %v5568
  %v5570 = vmul.f32 %v5563, 1.442695
  %v5571 = vpow.pop %v5570
  %v5572 = vadd.f32 %v5565, 1.0
  %v5573 = vadd.f32 %v5567, 1.0
  %v5574 = vadd.f32 %v5569, 1.0
  %v5575 = vadd.f32 %v5571, 1.0
  %v5576 = vrcp.pop %v5572
  %v5577 = vmul.f32 %v5572, %v5576
  %v5578 = vsub.f32 1.0, %v5577
  %v5579 = vmul.f32 %v5576, %v5578
  %v5580 = vadd.f32 %v5576, %v5579
  %vm5581 = vweird.f32 %v5572
  %vm5582 = vweird.f32 %v5576
  %vm5583 = vmor %vm5581, %vm5582
  %v5584 = vsel %vm5583, %v5576, %v5580
  %v5585 = vand.u32 2147483647, %v5572
  %vm5586 = vcmp.eq.f32.partialorder %v5585, 8.507059e+37
  %v5587 = vand.u32 %v5572, 2147483648
  %v5588 = vor.u32 1.1754944e-38, %v5587
  %v5589 = vsel %vm5586, %v5588, %v5584
  %v5590 = vmul.f32 1.0, %v5589
  %v5591 = vrcp.pop %v5573
  %v5592 = vmul.f32 %v5573, %v5591
  %v5593 = vsub.f32 1.0, %v5592
  %v5594 = vmul.f32 %v5591, %v5593
  %v5595 = vadd.f32 %v5591, %v5594
  %vm5596 = vweird.f32 %v5573
  %vm5597 = vweird.f32 %v5591
  %vm5598 = vmor %vm5596, %vm5597
  %v5599 = vsel %vm5598, %v5591, %v5595
  %v5600 = vand.u32 2147483647, %v5573
  %vm5601 = vcmp.eq.f32.partialorder %v5600, 8.507059e+37
  %v5602 = vand.u32 %v5573, 2147483648
  %v5603 = vor.u32 1.1754944e-38, %v5602
  %v5604 = vsel %vm5601, %v5603, %v5599
  %v5605 = vmul.f32 1.0, %v5604
  %v5606 = vrcp.pop %v5574
  %v5607 = vmul.f32 %v5574, %v5606
  %v5608 = vsub.f32 1.0, %v5607
  %v5609 = vmul.f32 %v5606, %v5608
  %v5610 = vadd.f32 %v5606, %v5609
  %vm5611 = vweird.f32 %v5574
  %vm5612 = vweird.f32 %v5606
  %vm5613 = vmor %vm5611, %vm5612
  %v5614 = vsel %vm5613, %v5606, %v5610
  %v5615 = vand.u32 2147483647, %v5574
  %vm5616 = vcmp.eq.f32.partialorder %v5615, 8.507059e+37
  %v5617 = vand.u32 %v5574, 2147483648
  %v5618 = vor.u32 1.1754944e-38, %v5617
  %v5619 = vsel %vm5616, %v5618, %v5614
  %v5620 = vmul.f32 1.0, %v5619
  %v5621 = vrcp.pop %v5575
  %v5622 = vmul.f32 %v5575, %v5621
  %v5623 = vsub.f32 1.0, %v5622
  %v5624 = vmul.f32 %v5621, %v5623
  %v5625 = vadd.f32 %v5621, %v5624
  %vm5626 = vweird.f32 %v5575
  %vm5627 = vweird.f32 %v5621
  %vm5628 = vmor %vm5626, %vm5627
  %v5629 = vsel %vm5628, %v5621, %v5625
  %v5630 = vand.u32 2147483647, %v5575
  %vm5631 = vcmp.eq.f32.partialorder %v5630, 8.507059e+37
  %v5632 = vand.u32 %v5575, 2147483648
  %v5633 = vor.u32 1.1754944e-38, %v5632
  %v5634 = vsel %vm5631, %v5633, %v5629
  %v5635 = vmul.f32 1.0, %v5634
  %v5636 = vld [vmem:[%s5] sm:$0xff]
  %v5637 = vld [vmem:[%s5 + $0x8] sm:$0xff]
  %v5638 = vperm.slane %v5590, 4
  %v5639 = vperm.slane %v5605, 4
  %v5640 = vperm.slane %v5620, 4
  %v5641 = vperm.slane %v5635, 4
  %v5646 = vrot.slane %v5639, 4
  %v5647 = vrot.slane %v5641, 4
  %vm5648 = vcmask 1043456
  %v5649 = vsel %vm5648, %v5638, %v5646
  %v5650 = vsel %vm5648, %v5640, %v5647
  %v5653 = vmul.f32 %v5636, %v5649
  %v5654 = vmul.f32 %v5637, %v5650
  %v5655 = vsub.f32 1.0, %v5590
  %v5656 = vsub.f32 1.0, %v5605
  %v5657 = vsub.f32 1.0, %v5620
  %v5658 = vsub.f32 1.0, %v5635
  %v5659 = vperm.slane %v5655, 4
  %v5660 = vperm.slane %v5656, 4
  %v5661 = vperm.slane %v5657, 4
  %v5662 = vperm.slane %v5658, 4
  %v5663 = vmul.f32 %v5479, %v5659
  %v5664 = vmul.f32 %v5505, %v5660
  %v5665 = vmul.f32 %v5531, %v5661
  %v5666 = vmul.f32 %v5557, %v5662
  %v5671 = vrot.slane %v5664, 4
  %v5672 = vrot.slane %v5666, 4
  %v5673 = vsel %vm5648, %v5663, %v5671
  %v5674 = vsel %vm5648, %v5665, %v5672
  %v5677 = vadd.f32 %v5653, %v5673
  %v5678 = vadd.f32 %v5654, %v5674
  %5679 = vst [vmem:[%s6] sm:$0xff] %v5677
  %5680 = vst [vmem:[%s6 + $0x8] sm:$0xff] %v5678
  // Predicated region
  $region26: #{video_predictor_forward.1} parent=0 // pred_check
    _
  $region27: #{video_predictor_forward.1} parent=0 // pred_check_branch
    %5682 = sbr.rel (0) target = $region29
  $region28: #{video_predictor_forward.1} parent=0 // pred_region
    _
  $region29: #{video_predictor_forward.1} parent=0 // pred_fallthru
    _
  // Predicated region
  $region30: #{video_predictor_forward.1} parent=0 // pred_check
    _
  $region31: #{video_predictor_forward.1} parent=0 // pred_check_branch
    %5684 = sbr.rel (0) target = $region33
  $region32: #{video_predictor_forward.1} parent=0 // pred_region
    _
  $region33: #{video_predictor_forward.1} parent=0 // pred_fallthru
    _
  // Predicated region
  $region34: #{video_predictor_forward.1} parent=0 // pred_check
    _
  $region35: #{video_predictor_forward.1} parent=0 // pred_check_branch
    %5686 = sbr.rel (0) target = $region37
  $region36: #{video_predictor_forward.1} parent=0 // pred_region
    _
  $region37: #{video_predictor_forward.1} parent=0 // pred_fallthru
    _
  // Predicated region
  $region38: #{video_predictor_forward.1} parent=0 // pred_check
    _
  $region39: #{video_predictor_forward.1} parent=0 // pred_check_branch
    %5688 = sbr.rel (0) target = $region41
  $region40: #{video_predictor_forward.1} parent=0 // pred_region
    _
  $region41: #{video_predictor_forward.1} parent=0 // pred_fallthru
    _

</llo_original>
